<compile_context>
chip_gen: v7x
topology: tpu7x:2x2x1
jax: 0.10.0
libtpu: 0.0.40
codegen_flags: <defaults>
</compile_context>

<pallas_src>
import functools

import jax
import jax.numpy as jnp
from jax import lax
from jax.experimental import pallas as pl
from jax.experimental.pallas import tpu as pltpu


def user_graph_sample_kernel(graph_ref, wmat_ref, feat_ref, out_ref, *, num_k, unroll):
    # graph_ref: SMEM [U_pad*K] int32  flattened neighbor indices
    # wmat_ref : SMEM [U_pad*K] f32    flattened per-neighbor weights
    # feat_ref : VMEM [N, D]           full feature table (resident, single-buffered)
    # out_ref  : VMEM [TU, D]          output tile for this grid step
    tu, d = out_ref.shape
    n_nodes = feat_ref.shape[0]
    tile_base = pl.program_id(0) * tu * num_k

    def user_body(u, carry):
        off = tile_base + u * num_k
        acc = jnp.zeros((1, d), jnp.float32)
        # K is a small static constant -> fully unrolled gather + FMA chain.
        for k in range(num_k):
            idx = graph_ref[off + k]
            # Clamp so padded / out-of-range indices never read OOB VMEM.
            idx = jnp.clip(idx, 0, n_nodes - 1)
            w = wmat_ref[off + k].astype(jnp.float32)
            row = feat_ref[pl.ds(idx, 1), :].astype(jnp.float32)   # [1, D]
            acc = acc + w * row
        out_ref[pl.ds(u, 1), :] = acc.astype(out_ref.dtype)
        return carry

    lax.fori_loop(0, tu, user_body, 0, unroll=unroll)


def user_graph_sample(features, user_graph, user_matrix, *, tu=None):
    n_nodes, dim = features.shape
    num_user, num_k = user_graph.shape
    assert user_matrix.shape == (num_user, num_k)
    itemsize = features.dtype.itemsize

    # --- generation-aware user tiling --------------------------------------
    # v5e/v6e: one TensorCore -> a single big tile (grid=(1,)) is cheapest.
    # v7x: two TensorCores -> split only when there is enough work per core.
    if tu is None:
        tu = num_user if num_user <= 512 else -(-num_user // 2)
        tu = min(tu, 1024)
    tu = max(8, -(-tu // 8) * 8)              # sublane-multiple tile height
    u_pad = -(-num_user // tu) * tu

    if u_pad != num_user:
        pad = u_pad - num_user
        # Padded users: index 0 with weight 0 -> output row is exactly 0.
        user_graph = jnp.pad(user_graph, ((0, pad), (0, 0)))
        user_matrix = jnp.pad(user_matrix, ((0, pad), (0, 0)))

    # Flattened 1-D SMEM operands (avoids 2-D SMEM lane padding to 128).
    graph_flat = user_graph.reshape(-1).astype(jnp.int32)
    wmat_flat = user_matrix.reshape(-1).astype(jnp.float32)

    # --- VMEM budget capped by the actual per-core capacity ----------------
    feat_bytes = n_nodes * dim * itemsize
    out_tile_bytes = tu * dim * itemsize
    try:
        vmem_cap = int(pltpu.get_tpu_info().vmem_capacity_bytes)
    except Exception:
        vmem_cap = 64 << 20                   # conservative: v7x per-core VMEM
    # features resident single-buffered; output tiles double-buffered.
    need = feat_bytes + 2 * out_tile_bytes + (4 << 20)
    vmem_limit = int(min(int(vmem_cap * 0.85), max(32 << 20, need)))

    grid = (u_pad // tu,)
    cost = pl.CostEstimate(
        flops=2 * u_pad * num_k * dim,
        transcendentals=0,
        bytes_accessed=(feat_bytes
                        + graph_flat.size * 4
                        + wmat_flat.size * 4
                        + u_pad * dim * itemsize),
    )

    kernel = functools.partial(
        user_graph_sample_kernel,
        num_k=num_k,
        unroll=bool(tu <= 64),                # small static trip counts: unroll
    )

    out = pl.pallas_call(
        kernel,
        out_shape=jax.ShapeDtypeStruct((u_pad, dim), features.dtype),
        grid=grid,
        in_specs=[
            pl.BlockSpec(memory_space=pltpu.MemorySpace.SMEM),   # graph (flat, whole)
            pl.BlockSpec(memory_space=pltpu.MemorySpace.SMEM),   # weights (flat, whole)
            pl.BlockSpec(memory_space=pltpu.MemorySpace.VMEM),   # features (whole, resident)
        ],
        out_specs=pl.BlockSpec((tu, dim), lambda i: (i, 0)),
        compiler_params=pltpu.CompilerParams(
            dimension_semantics=("parallel",),
            vmem_limit_bytes=vmem_limit,
        ),
        cost_estimate=cost,
    )(graph_flat, wmat_flat, features)

    return out[:num_user]


if __name__ == "__main__":
    key = jax.random.PRNGKey(0)
    k1, k2, k3 = jax.random.split(key, 3)

    # Small shapes consistent with the module: num_user=16, K=8 neighbors,
    # dim_latent=128, node table of 32 rows.
    num_user, num_k, dim_latent, num_nodes = 16, 8, 128, 32

    features = jax.random.normal(k1, (num_nodes, dim_latent), dtype=jnp.float32)
    user_graph = jax.random.randint(k2, (num_user, num_k), 0, num_nodes, dtype=jnp.int32)
    user_matrix = jax.random.normal(k3, (num_user, num_k), dtype=jnp.float32)

    out = jax.block_until_ready(user_graph_sample(features, user_graph, user_matrix))

    # Pure-JAX reference of the PyTorch forward.
    ref = jnp.einsum("uk,ukd->ud", user_matrix, features[user_graph])
    assert out.shape == (num_user, dim_latent)
    assert jnp.allclose(out, ref, atol=1e-4, rtol=1e-4), float(jnp.max(jnp.abs(out - ref)))
    print("KERNEL_OK")
</pallas_src>

<mosaic_0001>
module attributes {stable_mosaic.version = 11 : i64} {
  func.func @user_graph_sample_kernel(%arg0: i32, %arg1: memref<128xi32, #tpu.memory_space<smem>>, %arg2: memref<128xf32, #tpu.memory_space<smem>>, %arg3: memref<32x128xf32, #tpu.memory_space<vmem>>, %arg4: memref<16x128xf32, #tpu.memory_space<vmem>>) attributes {dimension_semantics = [#tpu.dimension_semantics<parallel>], iteration_bounds = array<i64: 1>, scalar_prefetch = 0 : i64, scratch_operands = 0 : i64, tpu.core_type = #tpu.core_type<tc>, window_params = [{transform_indices = @transform_0, window_bounds = array<i64: 128>}, {transform_indices = @transform_1, window_bounds = array<i64: 128>}, {pipeline_mode = #tpu.pipeline_mode<synchronous>, transform_indices = @transform_2, window_bounds = array<i64: 32, 128>}, {transform_indices = @transform_3, window_bounds = array<i64: 16, 128>}]} {
    %c16_i32 = arith.constant 16 : i32
    %0 = arith.muli %arg0, %c16_i32 : i32
    %c8_i32 = arith.constant 8 : i32
    %1 = arith.muli %0, %c8_i32 : i32
    %c0_i32 = arith.constant 0 : i32
    %c8_i32_0 = arith.constant 8 : i32
    %2 = arith.muli %c0_i32, %c8_i32_0 : i32
    %3 = arith.addi %1, %2 : i32
    %cst = arith.constant 0.000000e+00 : f32
    %4 = vector.broadcast %cst : f32 to vector<1x128xf32>
    %c0_i32_1 = arith.constant 0 : i32
    %5 = arith.addi %3, %c0_i32_1 : i32
    %6 = arith.index_cast %5 : i32 to index
    %7 = memref.load %arg1[%6] : memref<128xi32, #tpu.memory_space<smem>>
    %c0_i32_2 = arith.constant 0 : i32
    %c31_i32 = arith.constant 31 : i32
    %8 = arith.maxsi %c0_i32_2, %7 : i32
    %9 = arith.minsi %c31_i32, %8 : i32
    %c0_i32_3 = arith.constant 0 : i32
    %10 = arith.addi %3, %c0_i32_3 : i32
    %11 = arith.index_cast %10 : i32 to index
    %12 = memref.load %arg2[%11] : memref<128xf32, #tpu.memory_space<smem>>
    %13 = arith.index_cast %9 : i32 to index
    %c0 = arith.constant 0 : index
    %14 = vector.load %arg3[%13, %c0] : memref<32x128xf32, #tpu.memory_space<vmem>>, vector<1x128xf32>
    %15 = vector.broadcast %12 : f32 to vector<1x128xf32>
    %16 = arith.mulf %15, %14 : vector<1x128xf32>
    %17 = arith.addf %4, %16 : vector<1x128xf32>
    %c1_i32 = arith.constant 1 : i32
    %18 = arith.addi %3, %c1_i32 : i32
    %19 = arith.index_cast %18 : i32 to index
    %20 = memref.load %arg1[%19] : memref<128xi32, #tpu.memory_space<smem>>
    %c0_i32_4 = arith.constant 0 : i32
    %c31_i32_5 = arith.constant 31 : i32
    %21 = arith.maxsi %c0_i32_4, %20 : i32
    %22 = arith.minsi %c31_i32_5, %21 : i32
    %c1_i32_6 = arith.constant 1 : i32
    %23 = arith.addi %3, %c1_i32_6 : i32
    %24 = arith.index_cast %23 : i32 to index
    %25 = memref.load %arg2[%24] : memref<128xf32, #tpu.memory_space<smem>>
    %26 = arith.index_cast %22 : i32 to index
    %c0_7 = arith.constant 0 : index
    %27 = vector.load %arg3[%26, %c0_7] : memref<32x128xf32, #tpu.memory_space<vmem>>, vector<1x128xf32>
    %28 = vector.broadcast %25 : f32 to vector<1x128xf32>
    %29 = arith.mulf %28, %27 : vector<1x128xf32>
    %30 = arith.addf %17, %29 : vector<1x128xf32>
    %c2_i32 = arith.constant 2 : i32
    %31 = arith.addi %3, %c2_i32 : i32
    %32 = arith.index_cast %31 : i32 to index
    %33 = memref.load %arg1[%32] : memref<128xi32, #tpu.memory_space<smem>>
    %c0_i32_8 = arith.constant 0 : i32
    %c31_i32_9 = arith.constant 31 : i32
    %34 = arith.maxsi %c0_i32_8, %33 : i32
    %35 = arith.minsi %c31_i32_9, %34 : i32
    %c2_i32_10 = arith.constant 2 : i32
    %36 = arith.addi %3, %c2_i32_10 : i32
    %37 = arith.index_cast %36 : i32 to index
    %38 = memref.load %arg2[%37] : memref<128xf32, #tpu.memory_space<smem>>
    %39 = arith.index_cast %35 : i32 to index
    %c0_11 = arith.constant 0 : index
    %40 = vector.load %arg3[%39, %c0_11] : memref<32x128xf32, #tpu.memory_space<vmem>>, vector<1x128xf32>
    %41 = vector.broadcast %38 : f32 to vector<1x128xf32>
    %42 = arith.mulf %41, %40 : vector<1x128xf32>
    %43 = arith.addf %30, %42 : vector<1x128xf32>
    %c3_i32 = arith.constant 3 : i32
    %44 = arith.addi %3, %c3_i32 : i32
    %45 = arith.index_cast %44 : i32 to index
    %46 = memref.load %arg1[%45] : memref<128xi32, #tpu.memory_space<smem>>
    %c0_i32_12 = arith.constant 0 : i32
    %c31_i32_13 = arith.constant 31 : i32
    %47 = arith.maxsi %c0_i32_12, %46 : i32
    %48 = arith.minsi %c31_i32_13, %47 : i32
    %c3_i32_14 = arith.constant 3 : i32
    %49 = arith.addi %3, %c3_i32_14 : i32
    %50 = arith.index_cast %49 : i32 to index
    %51 = memref.load %arg2[%50] : memref<128xf32, #tpu.memory_space<smem>>
    %52 = arith.index_cast %48 : i32 to index
    %c0_15 = arith.constant 0 : index
    %53 = vector.load %arg3[%52, %c0_15] : memref<32x128xf32, #tpu.memory_space<vmem>>, vector<1x128xf32>
    %54 = vector.broadcast %51 : f32 to vector<1x128xf32>
    %55 = arith.mulf %54, %53 : vector<1x128xf32>
    %56 = arith.addf %43, %55 : vector<1x128xf32>
    %c4_i32 = arith.constant 4 : i32
    %57 = arith.addi %3, %c4_i32 : i32
    %58 = arith.index_cast %57 : i32 to index
    %59 = memref.load %arg1[%58] : memref<128xi32, #tpu.memory_space<smem>>
    %c0_i32_16 = arith.constant 0 : i32
    %c31_i32_17 = arith.constant 31 : i32
    %60 = arith.maxsi %c0_i32_16, %59 : i32
    %61 = arith.minsi %c31_i32_17, %60 : i32
    %c4_i32_18 = arith.constant 4 : i32
    %62 = arith.addi %3, %c4_i32_18 : i32
    %63 = arith.index_cast %62 : i32 to index
    %64 = memref.load %arg2[%63] : memref<128xf32, #tpu.memory_space<smem>>
    %65 = arith.index_cast %61 : i32 to index
    %c0_19 = arith.constant 0 : index
    %66 = vector.load %arg3[%65, %c0_19] : memref<32x128xf32, #tpu.memory_space<vmem>>, vector<1x128xf32>
    %67 = vector.broadcast %64 : f32 to vector<1x128xf32>
    %68 = arith.mulf %67, %66 : vector<1x128xf32>
    %69 = arith.addf %56, %68 : vector<1x128xf32>
    %c5_i32 = arith.constant 5 : i32
    %70 = arith.addi %3, %c5_i32 : i32
    %71 = arith.index_cast %70 : i32 to index
    %72 = memref.load %arg1[%71] : memref<128xi32, #tpu.memory_space<smem>>
    %c0_i32_20 = arith.constant 0 : i32
    %c31_i32_21 = arith.constant 31 : i32
    %73 = arith.maxsi %c0_i32_20, %72 : i32
    %74 = arith.minsi %c31_i32_21, %73 : i32
    %c5_i32_22 = arith.constant 5 : i32
    %75 = arith.addi %3, %c5_i32_22 : i32
    %76 = arith.index_cast %75 : i32 to index
    %77 = memref.load %arg2[%76] : memref<128xf32, #tpu.memory_space<smem>>
    %78 = arith.index_cast %74 : i32 to index
    %c0_23 = arith.constant 0 : index
    %79 = vector.load %arg3[%78, %c0_23] : memref<32x128xf32, #tpu.memory_space<vmem>>, vector<1x128xf32>
    %80 = vector.broadcast %77 : f32 to vector<1x128xf32>
    %81 = arith.mulf %80, %79 : vector<1x128xf32>
    %82 = arith.addf %69, %81 : vector<1x128xf32>
    %c6_i32 = arith.constant 6 : i32
    %83 = arith.addi %3, %c6_i32 : i32
    %84 = arith.index_cast %83 : i32 to index
    %85 = memref.load %arg1[%84] : memref<128xi32, #tpu.memory_space<smem>>
    %c0_i32_24 = arith.constant 0 : i32
    %c31_i32_25 = arith.constant 31 : i32
    %86 = arith.maxsi %c0_i32_24, %85 : i32
    %87 = arith.minsi %c31_i32_25, %86 : i32
    %c6_i32_26 = arith.constant 6 : i32
    %88 = arith.addi %3, %c6_i32_26 : i32
    %89 = arith.index_cast %88 : i32 to index
    %90 = memref.load %arg2[%89] : memref<128xf32, #tpu.memory_space<smem>>
    %91 = arith.index_cast %87 : i32 to index
    %c0_27 = arith.constant 0 : index
    %92 = vector.load %arg3[%91, %c0_27] : memref<32x128xf32, #tpu.memory_space<vmem>>, vector<1x128xf32>
    %93 = vector.broadcast %90 : f32 to vector<1x128xf32>
    %94 = arith.mulf %93, %92 : vector<1x128xf32>
    %95 = arith.addf %82, %94 : vector<1x128xf32>
    %c7_i32 = arith.constant 7 : i32
    %96 = arith.addi %3, %c7_i32 : i32
    %97 = arith.index_cast %96 : i32 to index
    %98 = memref.load %arg1[%97] : memref<128xi32, #tpu.memory_space<smem>>
    %c0_i32_28 = arith.constant 0 : i32
    %c31_i32_29 = arith.constant 31 : i32
    %99 = arith.maxsi %c0_i32_28, %98 : i32
    %100 = arith.minsi %c31_i32_29, %99 : i32
    %c7_i32_30 = arith.constant 7 : i32
    %101 = arith.addi %3, %c7_i32_30 : i32
    %102 = arith.index_cast %101 : i32 to index
    %103 = memref.load %arg2[%102] : memref<128xf32, #tpu.memory_space<smem>>
    %104 = arith.index_cast %100 : i32 to index
    %c0_31 = arith.constant 0 : index
    %105 = vector.load %arg3[%104, %c0_31] : memref<32x128xf32, #tpu.memory_space<vmem>>, vector<1x128xf32>
    %106 = vector.broadcast %103 : f32 to vector<1x128xf32>
    %107 = arith.mulf %106, %105 : vector<1x128xf32>
    %108 = arith.addf %95, %107 : vector<1x128xf32>
    %109 = arith.index_cast %c0_i32 : i32 to index
    %c0_32 = arith.constant 0 : index
    %110 = vector.load %arg4[%109, %c0_32] : memref<16x128xf32, #tpu.memory_space<vmem>>, vector<1x128xf32>
    tpu.vector_store %arg4[%109, %c0_32], %108 {strides = array<i32>} : memref<16x128xf32, #tpu.memory_space<vmem>>, vector<1x128xf32>,
    %c1_i32_33 = arith.constant 1 : i32
    %c8_i32_34 = arith.constant 8 : i32
    %111 = arith.muli %c1_i32_33, %c8_i32_34 : i32
    %112 = arith.addi %1, %111 : i32
    %cst_35 = arith.constant 0.000000e+00 : f32
    %113 = vector.broadcast %cst_35 : f32 to vector<1x128xf32>
    %c0_i32_36 = arith.constant 0 : i32
    %114 = arith.addi %112, %c0_i32_36 : i32
    %115 = arith.index_cast %114 : i32 to index
    %116 = memref.load %arg1[%115] : memref<128xi32, #tpu.memory_space<smem>>
    %c0_i32_37 = arith.constant 0 : i32
    %c31_i32_38 = arith.constant 31 : i32
    %117 = arith.maxsi %c0_i32_37, %116 : i32
    %118 = arith.minsi %c31_i32_38, %117 : i32
    %c0_i32_39 = arith.constant 0 : i32
    %119 = arith.addi %112, %c0_i32_39 : i32
    %120 = arith.index_cast %119 : i32 to index
    %121 = memref.load %arg2[%120] : memref<128xf32, #tpu.memory_space<smem>>
    %122 = arith.index_cast %118 : i32 to index
    %c0_40 = arith.constant 0 : index
    %123 = vector.load %arg3[%122, %c0_40] : memref<32x128xf32, #tpu.memory_space<vmem>>, vector<1x128xf32>
    %124 = vector.broadcast %121 : f32 to vector<1x128xf32>
    %125 = arith.mulf %124, %123 : vector<1x128xf32>
    %126 = arith.addf %113, %125 : vector<1x128xf32>
    %c1_i32_41 = arith.constant 1 : i32
    %127 = arith.addi %112, %c1_i32_41 : i32
    %128 = arith.index_cast %127 : i32 to index
    %129 = memref.load %arg1[%128] : memref<128xi32, #tpu.memory_space<smem>>
    %c0_i32_42 = arith.constant 0 : i32
    %c31_i32_43 = arith.constant 31 : i32
    %130 = arith.maxsi %c0_i32_42, %129 : i32
    %131 = arith.minsi %c31_i32_43, %130 : i32
    %c1_i32_44 = arith.constant 1 : i32
    %132 = arith.addi %112, %c1_i32_44 : i32
    %133 = arith.index_cast %132 : i32 to index
    %134 = memref.load %arg2[%133] : memref<128xf32, #tpu.memory_space<smem>>
    %135 = arith.index_cast %131 : i32 to index
    %c0_45 = arith.constant 0 : index
    %136 = vector.load %arg3[%135, %c0_45] : memref<32x128xf32, #tpu.memory_space<vmem>>, vector<1x128xf32>
    %137 = vector.broadcast %134 : f32 to vector<1x128xf32>
    %138 = arith.mulf %137, %136 : vector<1x128xf32>
    %139 = arith.addf %126, %138 : vector<1x128xf32>
    %c2_i32_46 = arith.constant 2 : i32
    %140 = arith.addi %112, %c2_i32_46 : i32
    %141 = arith.index_cast %140 : i32 to index
    %142 = memref.load %arg1[%141] : memref<128xi32, #tpu.memory_space<smem>>
    %c0_i32_47 = arith.constant 0 : i32
    %c31_i32_48 = arith.constant 31 : i32
    %143 = arith.maxsi %c0_i32_47, %142 : i32
    %144 = arith.minsi %c31_i32_48, %143 : i32
    %c2_i32_49 = arith.constant 2 : i32
    %145 = arith.addi %112, %c2_i32_49 : i32
    %146 = arith.index_cast %145 : i32 to index
    %147 = memref.load %arg2[%146] : memref<128xf32, #tpu.memory_space<smem>>
    %148 = arith.index_cast %144 : i32 to index
    %c0_50 = arith.constant 0 : index
    %149 = vector.load %arg3[%148, %c0_50] : memref<32x128xf32, #tpu.memory_space<vmem>>, vector<1x128xf32>
    %150 = vector.broadcast %147 : f32 to vector<1x128xf32>
    %151 = arith.mulf %150, %149 : vector<1x128xf32>
    %152 = arith.addf %139, %151 : vector<1x128xf32>
    %c3_i32_51 = arith.constant 3 : i32
    %153 = arith.addi %112, %c3_i32_51 : i32
    %154 = arith.index_cast %153 : i32 to index
    %155 = memref.load %arg1[%154] : memref<128xi32, #tpu.memory_space<smem>>
    %c0_i32_52 = arith.constant 0 : i32
    %c31_i32_53 = arith.constant 31 : i32
    %156 = arith.maxsi %c0_i32_52, %155 : i32
    %157 = arith.minsi %c31_i32_53, %156 : i32
    %c3_i32_54 = arith.constant 3 : i32
    %158 = arith.addi %112, %c3_i32_54 : i32
    %159 = arith.index_cast %158 : i32 to index
    %160 = memref.load %arg2[%159] : memref<128xf32, #tpu.memory_space<smem>>
    %161 = arith.index_cast %157 : i32 to index
    %c0_55 = arith.constant 0 : index
    %162 = vector.load %arg3[%161, %c0_55] : memref<32x128xf32, #tpu.memory_space<vmem>>, vector<1x128xf32>
    %163 = vector.broadcast %160 : f32 to vector<1x128xf32>
    %164 = arith.mulf %163, %162 : vector<1x128xf32>
    %165 = arith.addf %152, %164 : vector<1x128xf32>
    %c4_i32_56 = arith.constant 4 : i32
    %166 = arith.addi %112, %c4_i32_56 : i32
    %167 = arith.index_cast %166 : i32 to index
    %168 = memref.load %arg1[%167] : memref<128xi32, #tpu.memory_space<smem>>
    %c0_i32_57 = arith.constant 0 : i32
    %c31_i32_58 = arith.constant 31 : i32
    %169 = arith.maxsi %c0_i32_57, %168 : i32
    %170 = arith.minsi %c31_i32_58, %169 : i32
    %c4_i32_59 = arith.constant 4 : i32
    %171 = arith.addi %112, %c4_i32_59 : i32
    %172 = arith.index_cast %171 : i32 to index
    %173 = memref.load %arg2[%172] : memref<128xf32, #tpu.memory_space<smem>>
    %174 = arith.index_cast %170 : i32 to index
    %c0_60 = arith.constant 0 : index
    %175 = vector.load %arg3[%174, %c0_60] : memref<32x128xf32, #tpu.memory_space<vmem>>, vector<1x128xf32>
    %176 = vector.broadcast %173 : f32 to vector<1x128xf32>
    %177 = arith.mulf %176, %175 : vector<1x128xf32>
    %178 = arith.addf %165, %177 : vector<1x128xf32>
    %c5_i32_61 = arith.constant 5 : i32
    %179 = arith.addi %112, %c5_i32_61 : i32
    %180 = arith.index_cast %179 : i32 to index
    %181 = memref.load %arg1[%180] : memref<128xi32, #tpu.memory_space<smem>>
    %c0_i32_62 = arith.constant 0 : i32
    %c31_i32_63 = arith.constant 31 : i32
    %182 = arith.maxsi %c0_i32_62, %181 : i32
    %183 = arith.minsi %c31_i32_63, %182 : i32
    %c5_i32_64 = arith.constant 5 : i32
    %184 = arith.addi %112, %c5_i32_64 : i32
    %185 = arith.index_cast %184 : i32 to index
    %186 = memref.load %arg2[%185] : memref<128xf32, #tpu.memory_space<smem>>
    %187 = arith.index_cast %183 : i32 to index
    %c0_65 = arith.constant 0 : index
    %188 = vector.load %arg3[%187, %c0_65] : memref<32x128xf32, #tpu.memory_space<vmem>>, vector<1x128xf32>
    %189 = vector.broadcast %186 : f32 to vector<1x128xf32>
    %190 = arith.mulf %189, %188 : vector<1x128xf32>
    %191 = arith.addf %178, %190 : vector<1x128xf32>
    %c6_i32_66 = arith.constant 6 : i32
    %192 = arith.addi %112, %c6_i32_66 : i32
    %193 = arith.index_cast %192 : i32 to index
    %194 = memref.load %arg1[%193] : memref<128xi32, #tpu.memory_space<smem>>
    %c0_i32_67 = arith.constant 0 : i32
    %c31_i32_68 = arith.constant 31 : i32
    %195 = arith.maxsi %c0_i32_67, %194 : i32
    %196 = arith.minsi %c31_i32_68, %195 : i32
    %c6_i32_69 = arith.constant 6 : i32
    %197 = arith.addi %112, %c6_i32_69 : i32
    %198 = arith.index_cast %197 : i32 to index
    %199 = memref.load %arg2[%198] : memref<128xf32, #tpu.memory_space<smem>>
    %200 = arith.index_cast %196 : i32 to index
    %c0_70 = arith.constant 0 : index
    %201 = vector.load %arg3[%200, %c0_70] : memref<32x128xf32, #tpu.memory_space<vmem>>, vector<1x128xf32>
    %202 = vector.broadcast %199 : f32 to vector<1x128xf32>
    %203 = arith.mulf %202, %201 : vector<1x128xf32>
    %204 = arith.addf %191, %203 : vector<1x128xf32>
    %c7_i32_71 = arith.constant 7 : i32
    %205 = arith.addi %112, %c7_i32_71 : i32
    %206 = arith.index_cast %205 : i32 to index
    %207 = memref.load %arg1[%206] : memref<128xi32, #tpu.memory_space<smem>>
    %c0_i32_72 = arith.constant 0 : i32
    %c31_i32_73 = arith.constant 31 : i32
    %208 = arith.maxsi %c0_i32_72, %207 : i32
    %209 = arith.minsi %c31_i32_73, %208 : i32
    %c7_i32_74 = arith.constant 7 : i32
    %210 = arith.addi %112, %c7_i32_74 : i32
    %211 = arith.index_cast %210 : i32 to index
    %212 = memref.load %arg2[%211] : memref<128xf32, #tpu.memory_space<smem>>
    %213 = arith.index_cast %209 : i32 to index
    %c0_75 = arith.constant 0 : index
    %214 = vector.load %arg3[%213, %c0_75] : memref<32x128xf32, #tpu.memory_space<vmem>>, vector<1x128xf32>
    %215 = vector.broadcast %212 : f32 to vector<1x128xf32>
    %216 = arith.mulf %215, %214 : vector<1x128xf32>
    %217 = arith.addf %204, %216 : vector<1x128xf32>
    %218 = arith.index_cast %c1_i32_33 : i32 to index
    %c0_76 = arith.constant 0 : index
    %219 = vector.load %arg4[%218, %c0_76] : memref<16x128xf32, #tpu.memory_space<vmem>>, vector<1x128xf32>
    tpu.vector_store %arg4[%218, %c0_76], %217 {strides = array<i32>} : memref<16x128xf32, #tpu.memory_space<vmem>>, vector<1x128xf32>,
    %c2_i32_77 = arith.constant 2 : i32
    %c8_i32_78 = arith.constant 8 : i32
    %220 = arith.muli %c2_i32_77, %c8_i32_78 : i32
    %221 = arith.addi %1, %220 : i32
    %cst_79 = arith.constant 0.000000e+00 : f32
    %222 = vector.broadcast %cst_79 : f32 to vector<1x128xf32>
    %c0_i32_80 = arith.constant 0 : i32
    %223 = arith.addi %221, %c0_i32_80 : i32
    %224 = arith.index_cast %223 : i32 to index
    %225 = memref.load %arg1[%224] : memref<128xi32, #tpu.memory_space<smem>>
    %c0_i32_81 = arith.constant 0 : i32
    %c31_i32_82 = arith.constant 31 : i32
    %226 = arith.maxsi %c0_i32_81, %225 : i32
    %227 = arith.minsi %c31_i32_82, %226 : i32
    %c0_i32_83 = arith.constant 0 : i32
    %228 = arith.addi %221, %c0_i32_83 : i32
    %229 = arith.index_cast %228 : i32 to index
    %230 = memref.load %arg2[%229] : memref<128xf32, #tpu.memory_space<smem>>
    %231 = arith.index_cast %227 : i32 to index
    %c0_84 = arith.constant 0 : index
    %232 = vector.load %arg3[%231, %c0_84] : memref<32x128xf32, #tpu.memory_space<vmem>>, vector<1x128xf32>
    %233 = vector.broadcast %230 : f32 to vector<1x128xf32>
    %234 = arith.mulf %233, %232 : vector<1x128xf32>
    %235 = arith.addf %222, %234 : vector<1x128xf32>
    %c1_i32_85 = arith.constant 1 : i32
    %236 = arith.addi %221, %c1_i32_85 : i32
    %237 = arith.index_cast %236 : i32 to index
    %238 = memref.load %arg1[%237] : memref<128xi32, #tpu.memory_space<smem>>
    %c0_i32_86 = arith.constant 0 : i32
    %c31_i32_87 = arith.constant 31 : i32
    %239 = arith.maxsi %c0_i32_86, %238 : i32
    %240 = arith.minsi %c31_i32_87, %239 : i32
    %c1_i32_88 = arith.constant 1 : i32
    %241 = arith.addi %221, %c1_i32_88 : i32
    %242 = arith.index_cast %241 : i32 to index
    %243 = memref.load %arg2[%242] : memref<128xf32, #tpu.memory_space<smem>>
    %244 = arith.index_cast %240 : i32 to index
    %c0_89 = arith.constant 0 : index
    %245 = vector.load %arg3[%244, %c0_89] : memref<32x128xf32, #tpu.memory_space<vmem>>, vector<1x128xf32>
    %246 = vector.broadcast %243 : f32 to vector<1x128xf32>
    %247 = arith.mulf %246, %245 : vector<1x128xf32>
    %248 = arith.addf %235, %247 : vector<1x128xf32>
    %c2_i32_90 = arith.constant 2 : i32
    %249 = arith.addi %221, %c2_i32_90 : i32
    %250 = arith.index_cast %249 : i32 to index
    %251 = memref.load %arg1[%250] : memref<128xi32, #tpu.memory_space<smem>>
    %c0_i32_91 = arith.constant 0 : i32
    %c31_i32_92 = arith.constant 31 : i32
    %252 = arith.maxsi %c0_i32_91, %251 : i32
    %253 = arith.minsi %c31_i32_92, %252 : i32
    %c2_i32_93 = arith.constant 2 : i32
    %254 = arith.addi %221, %c2_i32_93 : i32
    %255 = arith.index_cast %254 : i32 to index
    %256 = memref.load %arg2[%255] : memref<128xf32, #tpu.memory_space<smem>>
    %257 = arith.index_cast %253 : i32 to index
    %c0_94 = arith.constant 0 : index
    %258 = vector.load %arg3[%257, %c0_94] : memref<32x128xf32, #tpu.memory_space<vmem>>, vector<1x128xf32>
    %259 = vector.broadcast %256 : f32 to vector<1x128xf32>
    %260 = arith.mulf %259, %258 : vector<1x128xf32>
    %261 = arith.addf %248, %260 : vector<1x128xf32>
    %c3_i32_95 = arith.constant 3 : i32
    %262 = arith.addi %221, %c3_i32_95 : i32
    %263 = arith.index_cast %262 : i32 to index
    %264 = memref.load %arg1[%263] : memref<128xi32, #tpu.memory_space<smem>>
    %c0_i32_96 = arith.constant 0 : i32
    %c31_i32_97 = arith.constant 31 : i32
    %265 = arith.maxsi %c0_i32_96, %264 : i32
    %266 = arith.minsi %c31_i32_97, %265 : i32
    %c3_i32_98 = arith.constant 3 : i32
    %267 = arith.addi %221, %c3_i32_98 : i32
    %268 = arith.index_cast %267 : i32 to index
    %269 = memref.load %arg2[%268] : memref<128xf32, #tpu.memory_space<smem>>
    %270 = arith.index_cast %266 : i32 to index
    %c0_99 = arith.constant 0 : index
    %271 = vector.load %arg3[%270, %c0_99] : memref<32x128xf32, #tpu.memory_space<vmem>>, vector<1x128xf32>
    %272 = vector.broadcast %269 : f32 to vector<1x128xf32>
    %273 = arith.mulf %272, %271 : vector<1x128xf32>
    %274 = arith.addf %261, %273 : vector<1x128xf32>
    %c4_i32_100 = arith.constant 4 : i32
    %275 = arith.addi %221, %c4_i32_100 : i32
    %276 = arith.index_cast %275 : i32 to index
    %277 = memref.load %arg1[%276] : memref<128xi32, #tpu.memory_space<smem>>
    %c0_i32_101 = arith.constant 0 : i32
    %c31_i32_102 = arith.constant 31 : i32
    %278 = arith.maxsi %c0_i32_101, %277 : i32
    %279 = arith.minsi %c31_i32_102, %278 : i32
    %c4_i32_103 = arith.constant 4 : i32
    %280 = arith.addi %221, %c4_i32_103 : i32
    %281 = arith.index_cast %280 : i32 to index
    %282 = memref.load %arg2[%281] : memref<128xf32, #tpu.memory_space<smem>>
    %283 = arith.index_cast %279 : i32 to index
    %c0_104 = arith.constant 0 : index
    %284 = vector.load %arg3[%283, %c0_104] : memref<32x128xf32, #tpu.memory_space<vmem>>, vector<1x128xf32>
    %285 = vector.broadcast %282 : f32 to vector<1x128xf32>
    %286 = arith.mulf %285, %284 : vector<1x128xf32>
    %287 = arith.addf %274, %286 : vector<1x128xf32>
    %c5_i32_105 = arith.constant 5 : i32
    %288 = arith.addi %221, %c5_i32_105 : i32
    %289 = arith.index_cast %288 : i32 to index
    %290 = memref.load %arg1[%289] : memref<128xi32, #tpu.memory_space<smem>>
    %c0_i32_106 = arith.constant 0 : i32
    %c31_i32_107 = arith.constant 31 : i32
    %291 = arith.maxsi %c0_i32_106, %290 : i32
    %292 = arith.minsi %c31_i32_107, %291 : i32
    %c5_i32_108 = arith.constant 5 : i32
    %293 = arith.addi %221, %c5_i32_108 : i32
    %294 = arith.index_cast %293 : i32 to index
    %295 = memref.load %arg2[%294] : memref<128xf32, #tpu.memory_space<smem>>
    %296 = arith.index_cast %292 : i32 to index
    %c0_109 = arith.constant 0 : index
    %297 = vector.load %arg3[%296, %c0_109] : memref<32x128xf32, #tpu.memory_space<vmem>>, vector<1x128xf32>
    %298 = vector.broadcast %295 : f32 to vector<1x128xf32>
    %299 = arith.mulf %298, %297 : vector<1x128xf32>
    %300 = arith.addf %287, %299 : vector<1x128xf32>
    %c6_i32_110 = arith.constant 6 : i32
    %301 = arith.addi %221, %c6_i32_110 : i32
    %302 = arith.index_cast %301 : i32 to index
    %303 = memref.load %arg1[%302] : memref<128xi32, #tpu.memory_space<smem>>
    %c0_i32_111 = arith.constant 0 : i32
    %c31_i32_112 = arith.constant 31 : i32
    %304 = arith.maxsi %c0_i32_111, %303 : i32
    %305 = arith.minsi %c31_i32_112, %304 : i32
    %c6_i32_113 = arith.constant 6 : i32
    %306 = arith.addi %221, %c6_i32_113 : i32
    %307 = arith.index_cast %306 : i32 to index
    %308 = memref.load %arg2[%307] : memref<128xf32, #tpu.memory_space<smem>>
    %309 = arith.index_cast %305 : i32 to index
    %c0_114 = arith.constant 0 : index
    %310 = vector.load %arg3[%309, %c0_114] : memref<32x128xf32, #tpu.memory_space<vmem>>, vector<1x128xf32>
    %311 = vector.broadcast %308 : f32 to vector<1x128xf32>
    %312 = arith.mulf %311, %310 : vector<1x128xf32>
    %313 = arith.addf %300, %312 : vector<1x128xf32>
    %c7_i32_115 = arith.constant 7 : i32
    %314 = arith.addi %221, %c7_i32_115 : i32
    %315 = arith.index_cast %314 : i32 to index
    %316 = memref.load %arg1[%315] : memref<128xi32, #tpu.memory_space<smem>>
    %c0_i32_116 = arith.constant 0 : i32
    %c31_i32_117 = arith.constant 31 : i32
    %317 = arith.maxsi %c0_i32_116, %316 : i32
    %318 = arith.minsi %c31_i32_117, %317 : i32
    %c7_i32_118 = arith.constant 7 : i32
    %319 = arith.addi %221, %c7_i32_118 : i32
    %320 = arith.index_cast %319 : i32 to index
    %321 = memref.load %arg2[%320] : memref<128xf32, #tpu.memory_space<smem>>
    %322 = arith.index_cast %318 : i32 to index
    %c0_119 = arith.constant 0 : index
    %323 = vector.load %arg3[%322, %c0_119] : memref<32x128xf32, #tpu.memory_space<vmem>>, vector<1x128xf32>
    %324 = vector.broadcast %321 : f32 to vector<1x128xf32>
    %325 = arith.mulf %324, %323 : vector<1x128xf32>
    %326 = arith.addf %313, %325 : vector<1x128xf32>
    %327 = arith.index_cast %c2_i32_77 : i32 to index
    %c0_120 = arith.constant 0 : index
    %328 = vector.load %arg4[%327, %c0_120] : memref<16x128xf32, #tpu.memory_space<vmem>>, vector<1x128xf32>
    tpu.vector_store %arg4[%327, %c0_120], %326 {strides = array<i32>} : memref<16x128xf32, #tpu.memory_space<vmem>>, vector<1x128xf32>,
    %c3_i32_121 = arith.constant 3 : i32
    %c8_i32_122 = arith.constant 8 : i32
    %329 = arith.muli %c3_i32_121, %c8_i32_122 : i32
    %330 = arith.addi %1, %329 : i32
    %cst_123 = arith.constant 0.000000e+00 : f32
    %331 = vector.broadcast %cst_123 : f32 to vector<1x128xf32>
    %c0_i32_124 = arith.constant 0 : i32
    %332 = arith.addi %330, %c0_i32_124 : i32
    %333 = arith.index_cast %332 : i32 to index
    %334 = memref.load %arg1[%333] : memref<128xi32, #tpu.memory_space<smem>>
    %c0_i32_125 = arith.constant 0 : i32
    %c31_i32_126 = arith.constant 31 : i32
    %335 = arith.maxsi %c0_i32_125, %334 : i32
    %336 = arith.minsi %c31_i32_126, %335 : i32
    %c0_i32_127 = arith.constant 0 : i32
    %337 = arith.addi %330, %c0_i32_127 : i32
    %338 = arith.index_cast %337 : i32 to index
    %339 = memref.load %arg2[%338] : memref<128xf32, #tpu.memory_space<smem>>
    %340 = arith.index_cast %336 : i32 to index
    %c0_128 = arith.constant 0 : index
    %341 = vector.load %arg3[%340, %c0_128] : memref<32x128xf32, #tpu.memory_space<vmem>>, vector<1x128xf32>
    %342 = vector.broadcast %339 : f32 to vector<1x128xf32>
    %343 = arith.mulf %342, %341 : vector<1x128xf32>
    %344 = arith.addf %331, %343 : vector<1x128xf32>
    %c1_i32_129 = arith.constant 1 : i32
    %345 = arith.addi %330, %c1_i32_129 : i32
    %346 = arith.index_cast %345 : i32 to index
    %347 = memref.load %arg1[%346] : memref<128xi32, #tpu.memory_space<smem>>
    %c0_i32_130 = arith.constant 0 : i32
    %c31_i32_131 = arith.constant 31 : i32
    %348 = arith.maxsi %c0_i32_130, %347 : i32
    %349 = arith.minsi %c31_i32_131, %348 : i32
    %c1_i32_132 = arith.constant 1 : i32
    %350 = arith.addi %330, %c1_i32_132 : i32
    %351 = arith.index_cast %350 : i32 to index
    %352 = memref.load %arg2[%351] : memref<128xf32, #tpu.memory_space<smem>>
    %353 = arith.index_cast %349 : i32 to index
    %c0_133 = arith.constant 0 : index
    %354 = vector.load %arg3[%353, %c0_133] : memref<32x128xf32, #tpu.memory_space<vmem>>, vector<1x128xf32>
    %355 = vector.broadcast %352 : f32 to vector<1x128xf32>
    %356 = arith.mulf %355, %354 : vector<1x128xf32>
    %357 = arith.addf %344, %356 : vector<1x128xf32>
    %c2_i32_134 = arith.constant 2 : i32
    %358 = arith.addi %330, %c2_i32_134 : i32
    %359 = arith.index_cast %358 : i32 to index
    %360 = memref.load %arg1[%359] : memref<128xi32, #tpu.memory_space<smem>>
    %c0_i32_135 = arith.constant 0 : i32
    %c31_i32_136 = arith.constant 31 : i32
    %361 = arith.maxsi %c0_i32_135, %360 : i32
    %362 = arith.minsi %c31_i32_136, %361 : i32
    %c2_i32_137 = arith.constant 2 : i32
    %363 = arith.addi %330, %c2_i32_137 : i32
    %364 = arith.index_cast %363 : i32 to index
    %365 = memref.load %arg2[%364] : memref<128xf32, #tpu.memory_space<smem>>
    %366 = arith.index_cast %362 : i32 to index
    %c0_138 = arith.constant 0 : index
    %367 = vector.load %arg3[%366, %c0_138] : memref<32x128xf32, #tpu.memory_space<vmem>>, vector<1x128xf32>
    %368 = vector.broadcast %365 : f32 to vector<1x128xf32>
    %369 = arith.mulf %368, %367 : vector<1x128xf32>
    %370 = arith.addf %357, %369 : vector<1x128xf32>
    %c3_i32_139 = arith.constant 3 : i32
    %371 = arith.addi %330, %c3_i32_139 : i32
    %372 = arith.index_cast %371 : i32 to index
    %373 = memref.load %arg1[%372] : memref<128xi32, #tpu.memory_space<smem>>
    %c0_i32_140 = arith.constant 0 : i32
    %c31_i32_141 = arith.constant 31 : i32
    %374 = arith.maxsi %c0_i32_140, %373 : i32
    %375 = arith.minsi %c31_i32_141, %374 : i32
    %c3_i32_142 = arith.constant 3 : i32
    %376 = arith.addi %330, %c3_i32_142 : i32
    %377 = arith.index_cast %376 : i32 to index
    %378 = memref.load %arg2[%377] : memref<128xf32, #tpu.memory_space<smem>>
    %379 = arith.index_cast %375 : i32 to index
    %c0_143 = arith.constant 0 : index
    %380 = vector.load %arg3[%379, %c0_143] : memref<32x128xf32, #tpu.memory_space<vmem>>, vector<1x128xf32>
    %381 = vector.broadcast %378 : f32 to vector<1x128xf32>
    %382 = arith.mulf %381, %380 : vector<1x128xf32>
    %383 = arith.addf %370, %382 : vector<1x128xf32>
    %c4_i32_144 = arith.constant 4 : i32
    %384 = arith.addi %330, %c4_i32_144 : i32
    %385 = arith.index_cast %384 : i32 to index
    %386 = memref.load %arg1[%385] : memref<128xi32, #tpu.memory_space<smem>>
    %c0_i32_145 = arith.constant 0 : i32
    %c31_i32_146 = arith.constant 31 : i32
    %387 = arith.maxsi %c0_i32_145, %386 : i32
    %388 = arith.minsi %c31_i32_146, %387 : i32
    %c4_i32_147 = arith.constant 4 : i32
    %389 = arith.addi %330, %c4_i32_147 : i32
    %390 = arith.index_cast %389 : i32 to index
    %391 = memref.load %arg2[%390] : memref<128xf32, #tpu.memory_space<smem>>
    %392 = arith.index_cast %388 : i32 to index
    %c0_148 = arith.constant 0 : index
    %393 = vector.load %arg3[%392, %c0_148] : memref<32x128xf32, #tpu.memory_space<vmem>>, vector<1x128xf32>
    %394 = vector.broadcast %391 : f32 to vector<1x128xf32>
    %395 = arith.mulf %394, %393 : vector<1x128xf32>
    %396 = arith.addf %383, %395 : vector<1x128xf32>
    %c5_i32_149 = arith.constant 5 : i32
    %397 = arith.addi %330, %c5_i32_149 : i32
    %398 = arith.index_cast %397 : i32 to index
    %399 = memref.load %arg1[%398] : memref<128xi32, #tpu.memory_space<smem>>
    %c0_i32_150 = arith.constant 0 : i32
    %c31_i32_151 = arith.constant 31 : i32
    %400 = arith.maxsi %c0_i32_150, %399 : i32
    %401 = arith.minsi %c31_i32_151, %400 : i32
    %c5_i32_152 = arith.constant 5 : i32
    %402 = arith.addi %330, %c5_i32_152 : i32
    %403 = arith.index_cast %402 : i32 to index
    %404 = memref.load %arg2[%403] : memref<128xf32, #tpu.memory_space<smem>>
    %405 = arith.index_cast %401 : i32 to index
    %c0_153 = arith.constant 0 : index
    %406 = vector.load %arg3[%405, %c0_153] : memref<32x128xf32, #tpu.memory_space<vmem>>, vector<1x128xf32>
    %407 = vector.broadcast %404 : f32 to vector<1x128xf32>
    %408 = arith.mulf %407, %406 : vector<1x128xf32>
    %409 = arith.addf %396, %408 : vector<1x128xf32>
    %c6_i32_154 = arith.constant 6 : i32
    %410 = arith.addi %330, %c6_i32_154 : i32
    %411 = arith.index_cast %410 : i32 to index
    %412 = memref.load %arg1[%411] : memref<128xi32, #tpu.memory_space<smem>>
    %c0_i32_155 = arith.constant 0 : i32
    %c31_i32_156 = arith.constant 31 : i32
    %413 = arith.maxsi %c0_i32_155, %412 : i32
    %414 = arith.minsi %c31_i32_156, %413 : i32
    %c6_i32_157 = arith.constant 6 : i32
    %415 = arith.addi %330, %c6_i32_157 : i32
    %416 = arith.index_cast %415 : i32 to index
    %417 = memref.load %arg2[%416] : memref<128xf32, #tpu.memory_space<smem>>
    %418 = arith.index_cast %414 : i32 to index
    %c0_158 = arith.constant 0 : index
    %419 = vector.load %arg3[%418, %c0_158] : memref<32x128xf32, #tpu.memory_space<vmem>>, vector<1x128xf32>
    %420 = vector.broadcast %417 : f32 to vector<1x128xf32>
    %421 = arith.mulf %420, %419 : vector<1x128xf32>
    %422 = arith.addf %409, %421 : vector<1x128xf32>
    %c7_i32_159 = arith.constant 7 : i32
    %423 = arith.addi %330, %c7_i32_159 : i32
    %424 = arith.index_cast %423 : i32 to index
    %425 = memref.load %arg1[%424] : memref<128xi32, #tpu.memory_space<smem>>
    %c0_i32_160 = arith.constant 0 : i32
    %c31_i32_161 = arith.constant 31 : i32
    %426 = arith.maxsi %c0_i32_160, %425 : i32
    %427 = arith.minsi %c31_i32_161, %426 : i32
    %c7_i32_162 = arith.constant 7 : i32
    %428 = arith.addi %330, %c7_i32_162 : i32
    %429 = arith.index_cast %428 : i32 to index
    %430 = memref.load %arg2[%429] : memref<128xf32, #tpu.memory_space<smem>>
    %431 = arith.index_cast %427 : i32 to index
    %c0_163 = arith.constant 0 : index
    %432 = vector.load %arg3[%431, %c0_163] : memref<32x128xf32, #tpu.memory_space<vmem>>, vector<1x128xf32>
    %433 = vector.broadcast %430 : f32 to vector<1x128xf32>
    %434 = arith.mulf %433, %432 : vector<1x128xf32>
    %435 = arith.addf %422, %434 : vector<1x128xf32>
    %436 = arith.index_cast %c3_i32_121 : i32 to index
    %c0_164 = arith.constant 0 : index
    %437 = vector.load %arg4[%436, %c0_164] : memref<16x128xf32, #tpu.memory_space<vmem>>, vector<1x128xf32>
    tpu.vector_store %arg4[%436, %c0_164], %435 {strides = array<i32>} : memref<16x128xf32, #tpu.memory_space<vmem>>, vector<1x128xf32>,
    %c4_i32_165 = arith.constant 4 : i32
    %c8_i32_166 = arith.constant 8 : i32
    %438 = arith.muli %c4_i32_165, %c8_i32_166 : i32
    %439 = arith.addi %1, %438 : i32
    %cst_167 = arith.constant 0.000000e+00 : f32
    %440 = vector.broadcast %cst_167 : f32 to vector<1x128xf32>
    %c0_i32_168 = arith.constant 0 : i32
    %441 = arith.addi %439, %c0_i32_168 : i32
    %442 = arith.index_cast %441 : i32 to index
    %443 = memref.load %arg1[%442] : memref<128xi32, #tpu.memory_space<smem>>
    %c0_i32_169 = arith.constant 0 : i32
    %c31_i32_170 = arith.constant 31 : i32
    %444 = arith.maxsi %c0_i32_169, %443 : i32
    %445 = arith.minsi %c31_i32_170, %444 : i32
    %c0_i32_171 = arith.constant 0 : i32
    %446 = arith.addi %439, %c0_i32_171 : i32
    %447 = arith.index_cast %446 : i32 to index
    %448 = memref.load %arg2[%447] : memref<128xf32, #tpu.memory_space<smem>>
    %449 = arith.index_cast %445 : i32 to index
    %c0_172 = arith.constant 0 : index
    %450 = vector.load %arg3[%449, %c0_172] : memref<32x128xf32, #tpu.memory_space<vmem>>, vector<1x128xf32>
    %451 = vector.broadcast %448 : f32 to vector<1x128xf32>
    %452 = arith.mulf %451, %450 : vector<1x128xf32>
    %453 = arith.addf %440, %452 : vector<1x128xf32>
    %c1_i32_173 = arith.constant 1 : i32
    %454 = arith.addi %439, %c1_i32_173 : i32
    %455 = arith.index_cast %454 : i32 to index
    %456 = memref.load %arg1[%455] : memref<128xi32, #tpu.memory_space<smem>>
    %c0_i32_174 = arith.constant 0 : i32
    %c31_i32_175 = arith.constant 31 : i32
    %457 = arith.maxsi %c0_i32_174, %456 : i32
    %458 = arith.minsi %c31_i32_175, %457 : i32
    %c1_i32_176 = arith.constant 1 : i32
    %459 = arith.addi %439, %c1_i32_176 : i32
    %460 = arith.index_cast %459 : i32 to index
    %461 = memref.load %arg2[%460] : memref<128xf32, #tpu.memory_space<smem>>
    %462 = arith.index_cast %458 : i32 to index
    %c0_177 = arith.constant 0 : index
    %463 = vector.load %arg3[%462, %c0_177] : memref<32x128xf32, #tpu.memory_space<vmem>>, vector<1x128xf32>
    %464 = vector.broadcast %461 : f32 to vector<1x128xf32>
    %465 = arith.mulf %464, %463 : vector<1x128xf32>
    %466 = arith.addf %453, %465 : vector<1x128xf32>
    %c2_i32_178 = arith.constant 2 : i32
    %467 = arith.addi %439, %c2_i32_178 : i32
    %468 = arith.index_cast %467 : i32 to index
    %469 = memref.load %arg1[%468] : memref<128xi32, #tpu.memory_space<smem>>
    %c0_i32_179 = arith.constant 0 : i32
    %c31_i32_180 = arith.constant 31 : i32
    %470 = arith.maxsi %c0_i32_179, %469 : i32
    %471 = arith.minsi %c31_i32_180, %470 : i32
    %c2_i32_181 = arith.constant 2 : i32
    %472 = arith.addi %439, %c2_i32_181 : i32
    %473 = arith.index_cast %472 : i32 to index
    %474 = memref.load %arg2[%473] : memref<128xf32, #tpu.memory_space<smem>>
    %475 = arith.index_cast %471 : i32 to index
    %c0_182 = arith.constant 0 : index
    %476 = vector.load %arg3[%475, %c0_182] : memref<32x128xf32, #tpu.memory_space<vmem>>, vector<1x128xf32>
    %477 = vector.broadcast %474 : f32 to vector<1x128xf32>
    %478 = arith.mulf %477, %476 : vector<1x128xf32>
    %479 = arith.addf %466, %478 : vector<1x128xf32>
    %c3_i32_183 = arith.constant 3 : i32
    %480 = arith.addi %439, %c3_i32_183 : i32
    %481 = arith.index_cast %480 : i32 to index
    %482 = memref.load %arg1[%481] : memref<128xi32, #tpu.memory_space<smem>>
    %c0_i32_184 = arith.constant 0 : i32
    %c31_i32_185 = arith.constant 31 : i32
    %483 = arith.maxsi %c0_i32_184, %482 : i32
    %484 = arith.minsi %c31_i32_185, %483 : i32
    %c3_i32_186 = arith.constant 3 : i32
    %485 = arith.addi %439, %c3_i32_186 : i32
    %486 = arith.index_cast %485 : i32 to index
    %487 = memref.load %arg2[%486] : memref<128xf32, #tpu.memory_space<smem>>
    %488 = arith.index_cast %484 : i32 to index
    %c0_187 = arith.constant 0 : index
    %489 = vector.load %arg3[%488, %c0_187] : memref<32x128xf32, #tpu.memory_space<vmem>>, vector<1x128xf32>
    %490 = vector.broadcast %487 : f32 to vector<1x128xf32>
    %491 = arith.mulf %490, %489 : vector<1x128xf32>
    %492 = arith.addf %479, %491 : vector<1x128xf32>
    %c4_i32_188 = arith.constant 4 : i32
    %493 = arith.addi %439, %c4_i32_188 : i32
    %494 = arith.index_cast %493 : i32 to index
    %495 = memref.load %arg1[%494] : memref<128xi32, #tpu.memory_space<smem>>
    %c0_i32_189 = arith.constant 0 : i32
    %c31_i32_190 = arith.constant 31 : i32
    %496 = arith.maxsi %c0_i32_189, %495 : i32
    %497 = arith.minsi %c31_i32_190, %496 : i32
    %c4_i32_191 = arith.constant 4 : i32
    %498 = arith.addi %439, %c4_i32_191 : i32
    %499 = arith.index_cast %498 : i32 to index
    %500 = memref.load %arg2[%499] : memref<128xf32, #tpu.memory_space<smem>>
    %501 = arith.index_cast %497 : i32 to index
    %c0_192 = arith.constant 0 : index
    %502 = vector.load %arg3[%501, %c0_192] : memref<32x128xf32, #tpu.memory_space<vmem>>, vector<1x128xf32>
    %503 = vector.broadcast %500 : f32 to vector<1x128xf32>
    %504 = arith.mulf %503, %502 : vector<1x128xf32>
    %505 = arith.addf %492, %504 : vector<1x128xf32>
    %c5_i32_193 = arith.constant 5 : i32
    %506 = arith.addi %439, %c5_i32_193 : i32
    %507 = arith.index_cast %506 : i32 to index
    %508 = memref.load %arg1[%507] : memref<128xi32, #tpu.memory_space<smem>>
    %c0_i32_194 = arith.constant 0 : i32
    %c31_i32_195 = arith.constant 31 : i32
    %509 = arith.maxsi %c0_i32_194, %508 : i32
    %510 = arith.minsi %c31_i32_195, %509 : i32
    %c5_i32_196 = arith.constant 5 : i32
    %511 = arith.addi %439, %c5_i32_196 : i32
    %512 = arith.index_cast %511 : i32 to index
    %513 = memref.load %arg2[%512] : memref<128xf32, #tpu.memory_space<smem>>
    %514 = arith.index_cast %510 : i32 to index
    %c0_197 = arith.constant 0 : index
    %515 = vector.load %arg3[%514, %c0_197] : memref<32x128xf32, #tpu.memory_space<vmem>>, vector<1x128xf32>
    %516 = vector.broadcast %513 : f32 to vector<1x128xf32>
    %517 = arith.mulf %516, %515 : vector<1x128xf32>
    %518 = arith.addf %505, %517 : vector<1x128xf32>
    %c6_i32_198 = arith.constant 6 : i32
    %519 = arith.addi %439, %c6_i32_198 : i32
    %520 = arith.index_cast %519 : i32 to index
    %521 = memref.load %arg1[%520] : memref<128xi32, #tpu.memory_space<smem>>
    %c0_i32_199 = arith.constant 0 : i32
    %c31_i32_200 = arith.constant 31 : i32
    %522 = arith.maxsi %c0_i32_199, %521 : i32
    %523 = arith.minsi %c31_i32_200, %522 : i32
    %c6_i32_201 = arith.constant 6 : i32
    %524 = arith.addi %439, %c6_i32_201 : i32
    %525 = arith.index_cast %524 : i32 to index
    %526 = memref.load %arg2[%525] : memref<128xf32, #tpu.memory_space<smem>>
    %527 = arith.index_cast %523 : i32 to index
    %c0_202 = arith.constant 0 : index
    %528 = vector.load %arg3[%527, %c0_202] : memref<32x128xf32, #tpu.memory_space<vmem>>, vector<1x128xf32>
    %529 = vector.broadcast %526 : f32 to vector<1x128xf32>
    %530 = arith.mulf %529, %528 : vector<1x128xf32>
    %531 = arith.addf %518, %530 : vector<1x128xf32>
    %c7_i32_203 = arith.constant 7 : i32
    %532 = arith.addi %439, %c7_i32_203 : i32
    %533 = arith.index_cast %532 : i32 to index
    %534 = memref.load %arg1[%533] : memref<128xi32, #tpu.memory_space<smem>>
    %c0_i32_204 = arith.constant 0 : i32
    %c31_i32_205 = arith.constant 31 : i32
    %535 = arith.maxsi %c0_i32_204, %534 : i32
    %536 = arith.minsi %c31_i32_205, %535 : i32
    %c7_i32_206 = arith.constant 7 : i32
    %537 = arith.addi %439, %c7_i32_206 : i32
    %538 = arith.index_cast %537 : i32 to index
    %539 = memref.load %arg2[%538] : memref<128xf32, #tpu.memory_space<smem>>
    %540 = arith.index_cast %536 : i32 to index
    %c0_207 = arith.constant 0 : index
    %541 = vector.load %arg3[%540, %c0_207] : memref<32x128xf32, #tpu.memory_space<vmem>>, vector<1x128xf32>
    %542 = vector.broadcast %539 : f32 to vector<1x128xf32>
    %543 = arith.mulf %542, %541 : vector<1x128xf32>
    %544 = arith.addf %531, %543 : vector<1x128xf32>
    %545 = arith.index_cast %c4_i32_165 : i32 to index
    %c0_208 = arith.constant 0 : index
    %546 = vector.load %arg4[%545, %c0_208] : memref<16x128xf32, #tpu.memory_space<vmem>>, vector<1x128xf32>
    tpu.vector_store %arg4[%545, %c0_208], %544 {strides = array<i32>} : memref<16x128xf32, #tpu.memory_space<vmem>>, vector<1x128xf32>,
    %c5_i32_209 = arith.constant 5 : i32
    %c8_i32_210 = arith.constant 8 : i32
    %547 = arith.muli %c5_i32_209, %c8_i32_210 : i32
    %548 = arith.addi %1, %547 : i32
    %cst_211 = arith.constant 0.000000e+00 : f32
    %549 = vector.broadcast %cst_211 : f32 to vector<1x128xf32>
    %c0_i32_212 = arith.constant 0 : i32
    %550 = arith.addi %548, %c0_i32_212 : i32
    %551 = arith.index_cast %550 : i32 to index
    %552 = memref.load %arg1[%551] : memref<128xi32, #tpu.memory_space<smem>>
    %c0_i32_213 = arith.constant 0 : i32
    %c31_i32_214 = arith.constant 31 : i32
    %553 = arith.maxsi %c0_i32_213, %552 : i32
    %554 = arith.minsi %c31_i32_214, %553 : i32
    %c0_i32_215 = arith.constant 0 : i32
    %555 = arith.addi %548, %c0_i32_215 : i32
    %556 = arith.index_cast %555 : i32 to index
    %557 = memref.load %arg2[%556] : memref<128xf32, #tpu.memory_space<smem>>
    %558 = arith.index_cast %554 : i32 to index
    %c0_216 = arith.constant 0 : index
    %559 = vector.load %arg3[%558, %c0_216] : memref<32x128xf32, #tpu.memory_space<vmem>>, vector<1x128xf32>
    %560 = vector.broadcast %557 : f32 to vector<1x128xf32>
    %561 = arith.mulf %560, %559 : vector<1x128xf32>
    %562 = arith.addf %549, %561 : vector<1x128xf32>
    %c1_i32_217 = arith.constant 1 : i32
    %563 = arith.addi %548, %c1_i32_217 : i32
    %564 = arith.index_cast %563 : i32 to index
    %565 = memref.load %arg1[%564] : memref<128xi32, #tpu.memory_space<smem>>
    %c0_i32_218 = arith.constant 0 : i32
    %c31_i32_219 = arith.constant 31 : i32
    %566 = arith.maxsi %c0_i32_218, %565 : i32
    %567 = arith.minsi %c31_i32_219, %566 : i32
    %c1_i32_220 = arith.constant 1 : i32
    %568 = arith.addi %548, %c1_i32_220 : i32
    %569 = arith.index_cast %568 : i32 to index
    %570 = memref.load %arg2[%569] : memref<128xf32, #tpu.memory_space<smem>>
    %571 = arith.index_cast %567 : i32 to index
    %c0_221 = arith.constant 0 : index
    %572 = vector.load %arg3[%571, %c0_221] : memref<32x128xf32, #tpu.memory_space<vmem>>, vector<1x128xf32>
    %573 = vector.broadcast %570 : f32 to vector<1x128xf32>
    %574 = arith.mulf %573, %572 : vector<1x128xf32>
    %575 = arith.addf %562, %574 : vector<1x128xf32>
    %c2_i32_222 = arith.constant 2 : i32
    %576 = arith.addi %548, %c2_i32_222 : i32
    %577 = arith.index_cast %576 : i32 to index
    %578 = memref.load %arg1[%577] : memref<128xi32, #tpu.memory_space<smem>>
    %c0_i32_223 = arith.constant 0 : i32
    %c31_i32_224 = arith.constant 31 : i32
    %579 = arith.maxsi %c0_i32_223, %578 : i32
    %580 = arith.minsi %c31_i32_224, %579 : i32
    %c2_i32_225 = arith.constant 2 : i32
    %581 = arith.addi %548, %c2_i32_225 : i32
    %582 = arith.index_cast %581 : i32 to index
    %583 = memref.load %arg2[%582] : memref<128xf32, #tpu.memory_space<smem>>
    %584 = arith.index_cast %580 : i32 to index
    %c0_226 = arith.constant 0 : index
    %585 = vector.load %arg3[%584, %c0_226] : memref<32x128xf32, #tpu.memory_space<vmem>>, vector<1x128xf32>
    %586 = vector.broadcast %583 : f32 to vector<1x128xf32>
    %587 = arith.mulf %586, %585 : vector<1x128xf32>
    %588 = arith.addf %575, %587 : vector<1x128xf32>
    %c3_i32_227 = arith.constant 3 : i32
    %589 = arith.addi %548, %c3_i32_227 : i32
    %590 = arith.index_cast %589 : i32 to index
    %591 = memref.load %arg1[%590] : memref<128xi32, #tpu.memory_space<smem>>
    %c0_i32_228 = arith.constant 0 : i32
    %c31_i32_229 = arith.constant 31 : i32
    %592 = arith.maxsi %c0_i32_228, %591 : i32
    %593 = arith.minsi %c31_i32_229, %592 : i32
    %c3_i32_230 = arith.constant 3 : i32
    %594 = arith.addi %548, %c3_i32_230 : i32
    %595 = arith.index_cast %594 : i32 to index
    %596 = memref.load %arg2[%595] : memref<128xf32, #tpu.memory_space<smem>>
    %597 = arith.index_cast %593 : i32 to index
    %c0_231 = arith.constant 0 : index
    %598 = vector.load %arg3[%597, %c0_231] : memref<32x128xf32, #tpu.memory_space<vmem>>, vector<1x128xf32>
    %599 = vector.broadcast %596 : f32 to vector<1x128xf32>
    %600 = arith.mulf %599, %598 : vector<1x128xf32>
    %601 = arith.addf %588, %600 : vector<1x128xf32>
    %c4_i32_232 = arith.constant 4 : i32
    %602 = arith.addi %548, %c4_i32_232 : i32
    %603 = arith.index_cast %602 : i32 to index
    %604 = memref.load %arg1[%603] : memref<128xi32, #tpu.memory_space<smem>>
    %c0_i32_233 = arith.constant 0 : i32
    %c31_i32_234 = arith.constant 31 : i32
    %605 = arith.maxsi %c0_i32_233, %604 : i32
    %606 = arith.minsi %c31_i32_234, %605 : i32
    %c4_i32_235 = arith.constant 4 : i32
    %607 = arith.addi %548, %c4_i32_235 : i32
    %608 = arith.index_cast %607 : i32 to index
    %609 = memref.load %arg2[%608] : memref<128xf32, #tpu.memory_space<smem>>
    %610 = arith.index_cast %606 : i32 to index
    %c0_236 = arith.constant 0 : index
    %611 = vector.load %arg3[%610, %c0_236] : memref<32x128xf32, #tpu.memory_space<vmem>>, vector<1x128xf32>
    %612 = vector.broadcast %609 : f32 to vector<1x128xf32>
    %613 = arith.mulf %612, %611 : vector<1x128xf32>
    %614 = arith.addf %601, %613 : vector<1x128xf32>
    %c5_i32_237 = arith.constant 5 : i32
    %615 = arith.addi %548, %c5_i32_237 : i32
    %616 = arith.index_cast %615 : i32 to index
    %617 = memref.load %arg1[%616] : memref<128xi32, #tpu.memory_space<smem>>
    %c0_i32_238 = arith.constant 0 : i32
    %c31_i32_239 = arith.constant 31 : i32
    %618 = arith.maxsi %c0_i32_238, %617 : i32
    %619 = arith.minsi %c31_i32_239, %618 : i32
    %c5_i32_240 = arith.constant 5 : i32
    %620 = arith.addi %548, %c5_i32_240 : i32
    %621 = arith.index_cast %620 : i32 to index
    %622 = memref.load %arg2[%621] : memref<128xf32, #tpu.memory_space<smem>>
    %623 = arith.index_cast %619 : i32 to index
    %c0_241 = arith.constant 0 : index
    %624 = vector.load %arg3[%623, %c0_241] : memref<32x128xf32, #tpu.memory_space<vmem>>, vector<1x128xf32>
    %625 = vector.broadcast %622 : f32 to vector<1x128xf32>
    %626 = arith.mulf %625, %624 : vector<1x128xf32>
    %627 = arith.addf %614, %626 : vector<1x128xf32>
    %c6_i32_242 = arith.constant 6 : i32
    %628 = arith.addi %548, %c6_i32_242 : i32
    %629 = arith.index_cast %628 : i32 to index
    %630 = memref.load %arg1[%629] : memref<128xi32, #tpu.memory_space<smem>>
    %c0_i32_243 = arith.constant 0 : i32
    %c31_i32_244 = arith.constant 31 : i32
    %631 = arith.maxsi %c0_i32_243, %630 : i32
    %632 = arith.minsi %c31_i32_244, %631 : i32
    %c6_i32_245 = arith.constant 6 : i32
    %633 = arith.addi %548, %c6_i32_245 : i32
    %634 = arith.index_cast %633 : i32 to index
    %635 = memref.load %arg2[%634] : memref<128xf32, #tpu.memory_space<smem>>
    %636 = arith.index_cast %632 : i32 to index
    %c0_246 = arith.constant 0 : index
    %637 = vector.load %arg3[%636, %c0_246] : memref<32x128xf32, #tpu.memory_space<vmem>>, vector<1x128xf32>
    %638 = vector.broadcast %635 : f32 to vector<1x128xf32>
    %639 = arith.mulf %638, %637 : vector<1x128xf32>
    %640 = arith.addf %627, %639 : vector<1x128xf32>
    %c7_i32_247 = arith.constant 7 : i32
    %641 = arith.addi %548, %c7_i32_247 : i32
    %642 = arith.index_cast %641 : i32 to index
    %643 = memref.load %arg1[%642] : memref<128xi32, #tpu.memory_space<smem>>
    %c0_i32_248 = arith.constant 0 : i32
    %c31_i32_249 = arith.constant 31 : i32
    %644 = arith.maxsi %c0_i32_248, %643 : i32
    %645 = arith.minsi %c31_i32_249, %644 : i32
    %c7_i32_250 = arith.constant 7 : i32
    %646 = arith.addi %548, %c7_i32_250 : i32
    %647 = arith.index_cast %646 : i32 to index
    %648 = memref.load %arg2[%647] : memref<128xf32, #tpu.memory_space<smem>>
    %649 = arith.index_cast %645 : i32 to index
    %c0_251 = arith.constant 0 : index
    %650 = vector.load %arg3[%649, %c0_251] : memref<32x128xf32, #tpu.memory_space<vmem>>, vector<1x128xf32>
    %651 = vector.broadcast %648 : f32 to vector<1x128xf32>
    %652 = arith.mulf %651, %650 : vector<1x128xf32>
    %653 = arith.addf %640, %652 : vector<1x128xf32>
    %654 = arith.index_cast %c5_i32_209 : i32 to index
    %c0_252 = arith.constant 0 : index
    %655 = vector.load %arg4[%654, %c0_252] : memref<16x128xf32, #tpu.memory_space<vmem>>, vector<1x128xf32>
    tpu.vector_store %arg4[%654, %c0_252], %653 {strides = array<i32>} : memref<16x128xf32, #tpu.memory_space<vmem>>, vector<1x128xf32>,
    %c6_i32_253 = arith.constant 6 : i32
    %c8_i32_254 = arith.constant 8 : i32
    %656 = arith.muli %c6_i32_253, %c8_i32_254 : i32
    %657 = arith.addi %1, %656 : i32
    %cst_255 = arith.constant 0.000000e+00 : f32
    %658 = vector.broadcast %cst_255 : f32 to vector<1x128xf32>
    %c0_i32_256 = arith.constant 0 : i32
    %659 = arith.addi %657, %c0_i32_256 : i32
    %660 = arith.index_cast %659 : i32 to index
    %661 = memref.load %arg1[%660] : memref<128xi32, #tpu.memory_space<smem>>
    %c0_i32_257 = arith.constant 0 : i32
    %c31_i32_258 = arith.constant 31 : i32
    %662 = arith.maxsi %c0_i32_257, %661 : i32
    %663 = arith.minsi %c31_i32_258, %662 : i32
    %c0_i32_259 = arith.constant 0 : i32
    %664 = arith.addi %657, %c0_i32_259 : i32
    %665 = arith.index_cast %664 : i32 to index
    %666 = memref.load %arg2[%665] : memref<128xf32, #tpu.memory_space<smem>>
    %667 = arith.index_cast %663 : i32 to index
    %c0_260 = arith.constant 0 : index
    %668 = vector.load %arg3[%667, %c0_260] : memref<32x128xf32, #tpu.memory_space<vmem>>, vector<1x128xf32>
    %669 = vector.broadcast %666 : f32 to vector<1x128xf32>
    %670 = arith.mulf %669, %668 : vector<1x128xf32>
    %671 = arith.addf %658, %670 : vector<1x128xf32>
    %c1_i32_261 = arith.constant 1 : i32
    %672 = arith.addi %657, %c1_i32_261 : i32
    %673 = arith.index_cast %672 : i32 to index
    %674 = memref.load %arg1[%673] : memref<128xi32, #tpu.memory_space<smem>>
    %c0_i32_262 = arith.constant 0 : i32
    %c31_i32_263 = arith.constant 31 : i32
    %675 = arith.maxsi %c0_i32_262, %674 : i32
    %676 = arith.minsi %c31_i32_263, %675 : i32
    %c1_i32_264 = arith.constant 1 : i32
    %677 = arith.addi %657, %c1_i32_264 : i32
    %678 = arith.index_cast %677 : i32 to index
    %679 = memref.load %arg2[%678] : memref<128xf32, #tpu.memory_space<smem>>
    %680 = arith.index_cast %676 : i32 to index
    %c0_265 = arith.constant 0 : index
    %681 = vector.load %arg3[%680, %c0_265] : memref<32x128xf32, #tpu.memory_space<vmem>>, vector<1x128xf32>
    %682 = vector.broadcast %679 : f32 to vector<1x128xf32>
    %683 = arith.mulf %682, %681 : vector<1x128xf32>
    %684 = arith.addf %671, %683 : vector<1x128xf32>
    %c2_i32_266 = arith.constant 2 : i32
    %685 = arith.addi %657, %c2_i32_266 : i32
    %686 = arith.index_cast %685 : i32 to index
    %687 = memref.load %arg1[%686] : memref<128xi32, #tpu.memory_space<smem>>
    %c0_i32_267 = arith.constant 0 : i32
    %c31_i32_268 = arith.constant 31 : i32
    %688 = arith.maxsi %c0_i32_267, %687 : i32
    %689 = arith.minsi %c31_i32_268, %688 : i32
    %c2_i32_269 = arith.constant 2 : i32
    %690 = arith.addi %657, %c2_i32_269 : i32
    %691 = arith.index_cast %690 : i32 to index
    %692 = memref.load %arg2[%691] : memref<128xf32, #tpu.memory_space<smem>>
    %693 = arith.index_cast %689 : i32 to index
    %c0_270 = arith.constant 0 : index
    %694 = vector.load %arg3[%693, %c0_270] : memref<32x128xf32, #tpu.memory_space<vmem>>, vector<1x128xf32>
    %695 = vector.broadcast %692 : f32 to vector<1x128xf32>
    %696 = arith.mulf %695, %694 : vector<1x128xf32>
    %697 = arith.addf %684, %696 : vector<1x128xf32>
    %c3_i32_271 = arith.constant 3 : i32
    %698 = arith.addi %657, %c3_i32_271 : i32
    %699 = arith.index_cast %698 : i32 to index
    %700 = memref.load %arg1[%699] : memref<128xi32, #tpu.memory_space<smem>>
    %c0_i32_272 = arith.constant 0 : i32
    %c31_i32_273 = arith.constant 31 : i32
    %701 = arith.maxsi %c0_i32_272, %700 : i32
    %702 = arith.minsi %c31_i32_273, %701 : i32
    %c3_i32_274 = arith.constant 3 : i32
    %703 = arith.addi %657, %c3_i32_274 : i32
    %704 = arith.index_cast %703 : i32 to index
    %705 = memref.load %arg2[%704] : memref<128xf32, #tpu.memory_space<smem>>
    %706 = arith.index_cast %702 : i32 to index
    %c0_275 = arith.constant 0 : index
    %707 = vector.load %arg3[%706, %c0_275] : memref<32x128xf32, #tpu.memory_space<vmem>>, vector<1x128xf32>
    %708 = vector.broadcast %705 : f32 to vector<1x128xf32>
    %709 = arith.mulf %708, %707 : vector<1x128xf32>
    %710 = arith.addf %697, %709 : vector<1x128xf32>
    %c4_i32_276 = arith.constant 4 : i32
    %711 = arith.addi %657, %c4_i32_276 : i32
    %712 = arith.index_cast %711 : i32 to index
    %713 = memref.load %arg1[%712] : memref<128xi32, #tpu.memory_space<smem>>
    %c0_i32_277 = arith.constant 0 : i32
    %c31_i32_278 = arith.constant 31 : i32
    %714 = arith.maxsi %c0_i32_277, %713 : i32
    %715 = arith.minsi %c31_i32_278, %714 : i32
    %c4_i32_279 = arith.constant 4 : i32
    %716 = arith.addi %657, %c4_i32_279 : i32
    %717 = arith.index_cast %716 : i32 to index
    %718 = memref.load %arg2[%717] : memref<128xf32, #tpu.memory_space<smem>>
    %719 = arith.index_cast %715 : i32 to index
    %c0_280 = arith.constant 0 : index
    %720 = vector.load %arg3[%719, %c0_280] : memref<32x128xf32, #tpu.memory_space<vmem>>, vector<1x128xf32>
    %721 = vector.broadcast %718 : f32 to vector<1x128xf32>
    %722 = arith.mulf %721, %720 : vector<1x128xf32>
    %723 = arith.addf %710, %722 : vector<1x128xf32>
    %c5_i32_281 = arith.constant 5 : i32
    %724 = arith.addi %657, %c5_i32_281 : i32
    %725 = arith.index_cast %724 : i32 to index
    %726 = memref.load %arg1[%725] : memref<128xi32, #tpu.memory_space<smem>>
    %c0_i32_282 = arith.constant 0 : i32
    %c31_i32_283 = arith.constant 31 : i32
    %727 = arith.maxsi %c0_i32_282, %726 : i32
    %728 = arith.minsi %c31_i32_283, %727 : i32
    %c5_i32_284 = arith.constant 5 : i32
    %729 = arith.addi %657, %c5_i32_284 : i32
    %730 = arith.index_cast %729 : i32 to index
    %731 = memref.load %arg2[%730] : memref<128xf32, #tpu.memory_space<smem>>
    %732 = arith.index_cast %728 : i32 to index
    %c0_285 = arith.constant 0 : index
    %733 = vector.load %arg3[%732, %c0_285] : memref<32x128xf32, #tpu.memory_space<vmem>>, vector<1x128xf32>
    %734 = vector.broadcast %731 : f32 to vector<1x128xf32>
    %735 = arith.mulf %734, %733 : vector<1x128xf32>
    %736 = arith.addf %723, %735 : vector<1x128xf32>
    %c6_i32_286 = arith.constant 6 : i32
    %737 = arith.addi %657, %c6_i32_286 : i32
    %738 = arith.index_cast %737 : i32 to index
    %739 = memref.load %arg1[%738] : memref<128xi32, #tpu.memory_space<smem>>
    %c0_i32_287 = arith.constant 0 : i32
    %c31_i32_288 = arith.constant 31 : i32
    %740 = arith.maxsi %c0_i32_287, %739 : i32
    %741 = arith.minsi %c31_i32_288, %740 : i32
    %c6_i32_289 = arith.constant 6 : i32
    %742 = arith.addi %657, %c6_i32_289 : i32
    %743 = arith.index_cast %742 : i32 to index
    %744 = memref.load %arg2[%743] : memref<128xf32, #tpu.memory_space<smem>>
    %745 = arith.index_cast %741 : i32 to index
    %c0_290 = arith.constant 0 : index
    %746 = vector.load %arg3[%745, %c0_290] : memref<32x128xf32, #tpu.memory_space<vmem>>, vector<1x128xf32>
    %747 = vector.broadcast %744 : f32 to vector<1x128xf32>
    %748 = arith.mulf %747, %746 : vector<1x128xf32>
    %749 = arith.addf %736, %748 : vector<1x128xf32>
    %c7_i32_291 = arith.constant 7 : i32
    %750 = arith.addi %657, %c7_i32_291 : i32
    %751 = arith.index_cast %750 : i32 to index
    %752 = memref.load %arg1[%751] : memref<128xi32, #tpu.memory_space<smem>>
    %c0_i32_292 = arith.constant 0 : i32
    %c31_i32_293 = arith.constant 31 : i32
    %753 = arith.maxsi %c0_i32_292, %752 : i32
    %754 = arith.minsi %c31_i32_293, %753 : i32
    %c7_i32_294 = arith.constant 7 : i32
    %755 = arith.addi %657, %c7_i32_294 : i32
    %756 = arith.index_cast %755 : i32 to index
    %757 = memref.load %arg2[%756] : memref<128xf32, #tpu.memory_space<smem>>
    %758 = arith.index_cast %754 : i32 to index
    %c0_295 = arith.constant 0 : index
    %759 = vector.load %arg3[%758, %c0_295] : memref<32x128xf32, #tpu.memory_space<vmem>>, vector<1x128xf32>
    %760 = vector.broadcast %757 : f32 to vector<1x128xf32>
    %761 = arith.mulf %760, %759 : vector<1x128xf32>
    %762 = arith.addf %749, %761 : vector<1x128xf32>
    %763 = arith.index_cast %c6_i32_253 : i32 to index
    %c0_296 = arith.constant 0 : index
    %764 = vector.load %arg4[%763, %c0_296] : memref<16x128xf32, #tpu.memory_space<vmem>>, vector<1x128xf32>
    tpu.vector_store %arg4[%763, %c0_296], %762 {strides = array<i32>} : memref<16x128xf32, #tpu.memory_space<vmem>>, vector<1x128xf32>,
    %c7_i32_297 = arith.constant 7 : i32
    %c8_i32_298 = arith.constant 8 : i32
    %765 = arith.muli %c7_i32_297, %c8_i32_298 : i32
    %766 = arith.addi %1, %765 : i32
    %cst_299 = arith.constant 0.000000e+00 : f32
    %767 = vector.broadcast %cst_299 : f32 to vector<1x128xf32>
    %c0_i32_300 = arith.constant 0 : i32
    %768 = arith.addi %766, %c0_i32_300 : i32
    %769 = arith.index_cast %768 : i32 to index
    %770 = memref.load %arg1[%769] : memref<128xi32, #tpu.memory_space<smem>>
    %c0_i32_301 = arith.constant 0 : i32
    %c31_i32_302 = arith.constant 31 : i32
    %771 = arith.maxsi %c0_i32_301, %770 : i32
    %772 = arith.minsi %c31_i32_302, %771 : i32
    %c0_i32_303 = arith.constant 0 : i32
    %773 = arith.addi %766, %c0_i32_303 : i32
    %774 = arith.index_cast %773 : i32 to index
    %775 = memref.load %arg2[%774] : memref<128xf32, #tpu.memory_space<smem>>
    %776 = arith.index_cast %772 : i32 to index
    %c0_304 = arith.constant 0 : index
    %777 = vector.load %arg3[%776, %c0_304] : memref<32x128xf32, #tpu.memory_space<vmem>>, vector<1x128xf32>
    %778 = vector.broadcast %775 : f32 to vector<1x128xf32>
    %779 = arith.mulf %778, %777 : vector<1x128xf32>
    %780 = arith.addf %767, %779 : vector<1x128xf32>
    %c1_i32_305 = arith.constant 1 : i32
    %781 = arith.addi %766, %c1_i32_305 : i32
    %782 = arith.index_cast %781 : i32 to index
    %783 = memref.load %arg1[%782] : memref<128xi32, #tpu.memory_space<smem>>
    %c0_i32_306 = arith.constant 0 : i32
    %c31_i32_307 = arith.constant 31 : i32
    %784 = arith.maxsi %c0_i32_306, %783 : i32
    %785 = arith.minsi %c31_i32_307, %784 : i32
    %c1_i32_308 = arith.constant 1 : i32
    %786 = arith.addi %766, %c1_i32_308 : i32
    %787 = arith.index_cast %786 : i32 to index
    %788 = memref.load %arg2[%787] : memref<128xf32, #tpu.memory_space<smem>>
    %789 = arith.index_cast %785 : i32 to index
    %c0_309 = arith.constant 0 : index
    %790 = vector.load %arg3[%789, %c0_309] : memref<32x128xf32, #tpu.memory_space<vmem>>, vector<1x128xf32>
    %791 = vector.broadcast %788 : f32 to vector<1x128xf32>
    %792 = arith.mulf %791, %790 : vector<1x128xf32>
    %793 = arith.addf %780, %792 : vector<1x128xf32>
    %c2_i32_310 = arith.constant 2 : i32
    %794 = arith.addi %766, %c2_i32_310 : i32
    %795 = arith.index_cast %794 : i32 to index
    %796 = memref.load %arg1[%795] : memref<128xi32, #tpu.memory_space<smem>>
    %c0_i32_311 = arith.constant 0 : i32
    %c31_i32_312 = arith.constant 31 : i32
    %797 = arith.maxsi %c0_i32_311, %796 : i32
    %798 = arith.minsi %c31_i32_312, %797 : i32
    %c2_i32_313 = arith.constant 2 : i32
    %799 = arith.addi %766, %c2_i32_313 : i32
    %800 = arith.index_cast %799 : i32 to index
    %801 = memref.load %arg2[%800] : memref<128xf32, #tpu.memory_space<smem>>
    %802 = arith.index_cast %798 : i32 to index
    %c0_314 = arith.constant 0 : index
    %803 = vector.load %arg3[%802, %c0_314] : memref<32x128xf32, #tpu.memory_space<vmem>>, vector<1x128xf32>
    %804 = vector.broadcast %801 : f32 to vector<1x128xf32>
    %805 = arith.mulf %804, %803 : vector<1x128xf32>
    %806 = arith.addf %793, %805 : vector<1x128xf32>
    %c3_i32_315 = arith.constant 3 : i32
    %807 = arith.addi %766, %c3_i32_315 : i32
    %808 = arith.index_cast %807 : i32 to index
    %809 = memref.load %arg1[%808] : memref<128xi32, #tpu.memory_space<smem>>
    %c0_i32_316 = arith.constant 0 : i32
    %c31_i32_317 = arith.constant 31 : i32
    %810 = arith.maxsi %c0_i32_316, %809 : i32
    %811 = arith.minsi %c31_i32_317, %810 : i32
    %c3_i32_318 = arith.constant 3 : i32
    %812 = arith.addi %766, %c3_i32_318 : i32
    %813 = arith.index_cast %812 : i32 to index
    %814 = memref.load %arg2[%813] : memref<128xf32, #tpu.memory_space<smem>>
    %815 = arith.index_cast %811 : i32 to index
    %c0_319 = arith.constant 0 : index
    %816 = vector.load %arg3[%815, %c0_319] : memref<32x128xf32, #tpu.memory_space<vmem>>, vector<1x128xf32>
    %817 = vector.broadcast %814 : f32 to vector<1x128xf32>
    %818 = arith.mulf %817, %816 : vector<1x128xf32>
    %819 = arith.addf %806, %818 : vector<1x128xf32>
    %c4_i32_320 = arith.constant 4 : i32
    %820 = arith.addi %766, %c4_i32_320 : i32
    %821 = arith.index_cast %820 : i32 to index
    %822 = memref.load %arg1[%821] : memref<128xi32, #tpu.memory_space<smem>>
    %c0_i32_321 = arith.constant 0 : i32
    %c31_i32_322 = arith.constant 31 : i32
    %823 = arith.maxsi %c0_i32_321, %822 : i32
    %824 = arith.minsi %c31_i32_322, %823 : i32
    %c4_i32_323 = arith.constant 4 : i32
    %825 = arith.addi %766, %c4_i32_323 : i32
    %826 = arith.index_cast %825 : i32 to index
    %827 = memref.load %arg2[%826] : memref<128xf32, #tpu.memory_space<smem>>
    %828 = arith.index_cast %824 : i32 to index
    %c0_324 = arith.constant 0 : index
    %829 = vector.load %arg3[%828, %c0_324] : memref<32x128xf32, #tpu.memory_space<vmem>>, vector<1x128xf32>
    %830 = vector.broadcast %827 : f32 to vector<1x128xf32>
    %831 = arith.mulf %830, %829 : vector<1x128xf32>
    %832 = arith.addf %819, %831 : vector<1x128xf32>
    %c5_i32_325 = arith.constant 5 : i32
    %833 = arith.addi %766, %c5_i32_325 : i32
    %834 = arith.index_cast %833 : i32 to index
    %835 = memref.load %arg1[%834] : memref<128xi32, #tpu.memory_space<smem>>
    %c0_i32_326 = arith.constant 0 : i32
    %c31_i32_327 = arith.constant 31 : i32
    %836 = arith.maxsi %c0_i32_326, %835 : i32
    %837 = arith.minsi %c31_i32_327, %836 : i32
    %c5_i32_328 = arith.constant 5 : i32
    %838 = arith.addi %766, %c5_i32_328 : i32
    %839 = arith.index_cast %838 : i32 to index
    %840 = memref.load %arg2[%839] : memref<128xf32, #tpu.memory_space<smem>>
    %841 = arith.index_cast %837 : i32 to index
    %c0_329 = arith.constant 0 : index
    %842 = vector.load %arg3[%841, %c0_329] : memref<32x128xf32, #tpu.memory_space<vmem>>, vector<1x128xf32>
    %843 = vector.broadcast %840 : f32 to vector<1x128xf32>
    %844 = arith.mulf %843, %842 : vector<1x128xf32>
    %845 = arith.addf %832, %844 : vector<1x128xf32>
    %c6_i32_330 = arith.constant 6 : i32
    %846 = arith.addi %766, %c6_i32_330 : i32
    %847 = arith.index_cast %846 : i32 to index
    %848 = memref.load %arg1[%847] : memref<128xi32, #tpu.memory_space<smem>>
    %c0_i32_331 = arith.constant 0 : i32
    %c31_i32_332 = arith.constant 31 : i32
    %849 = arith.maxsi %c0_i32_331, %848 : i32
    %850 = arith.minsi %c31_i32_332, %849 : i32
    %c6_i32_333 = arith.constant 6 : i32
    %851 = arith.addi %766, %c6_i32_333 : i32
    %852 = arith.index_cast %851 : i32 to index
    %853 = memref.load %arg2[%852] : memref<128xf32, #tpu.memory_space<smem>>
    %854 = arith.index_cast %850 : i32 to index
    %c0_334 = arith.constant 0 : index
    %855 = vector.load %arg3[%854, %c0_334] : memref<32x128xf32, #tpu.memory_space<vmem>>, vector<1x128xf32>
    %856 = vector.broadcast %853 : f32 to vector<1x128xf32>
    %857 = arith.mulf %856, %855 : vector<1x128xf32>
    %858 = arith.addf %845, %857 : vector<1x128xf32>
    %c7_i32_335 = arith.constant 7 : i32
    %859 = arith.addi %766, %c7_i32_335 : i32
    %860 = arith.index_cast %859 : i32 to index
    %861 = memref.load %arg1[%860] : memref<128xi32, #tpu.memory_space<smem>>
    %c0_i32_336 = arith.constant 0 : i32
    %c31_i32_337 = arith.constant 31 : i32
    %862 = arith.maxsi %c0_i32_336, %861 : i32
    %863 = arith.minsi %c31_i32_337, %862 : i32
    %c7_i32_338 = arith.constant 7 : i32
    %864 = arith.addi %766, %c7_i32_338 : i32
    %865 = arith.index_cast %864 : i32 to index
    %866 = memref.load %arg2[%865] : memref<128xf32, #tpu.memory_space<smem>>
    %867 = arith.index_cast %863 : i32 to index
    %c0_339 = arith.constant 0 : index
    %868 = vector.load %arg3[%867, %c0_339] : memref<32x128xf32, #tpu.memory_space<vmem>>, vector<1x128xf32>
    %869 = vector.broadcast %866 : f32 to vector<1x128xf32>
    %870 = arith.mulf %869, %868 : vector<1x128xf32>
    %871 = arith.addf %858, %870 : vector<1x128xf32>
    %872 = arith.index_cast %c7_i32_297 : i32 to index
    %c0_340 = arith.constant 0 : index
    %873 = vector.load %arg4[%872, %c0_340] : memref<16x128xf32, #tpu.memory_space<vmem>>, vector<1x128xf32>
    tpu.vector_store %arg4[%872, %c0_340], %871 {strides = array<i32>} : memref<16x128xf32, #tpu.memory_space<vmem>>, vector<1x128xf32>,
    %c8_i32_341 = arith.constant 8 : i32
    %c8_i32_342 = arith.constant 8 : i32
    %874 = arith.muli %c8_i32_341, %c8_i32_342 : i32
    %875 = arith.addi %1, %874 : i32
    %cst_343 = arith.constant 0.000000e+00 : f32
    %876 = vector.broadcast %cst_343 : f32 to vector<1x128xf32>
    %c0_i32_344 = arith.constant 0 : i32
    %877 = arith.addi %875, %c0_i32_344 : i32
    %878 = arith.index_cast %877 : i32 to index
    %879 = memref.load %arg1[%878] : memref<128xi32, #tpu.memory_space<smem>>
    %c0_i32_345 = arith.constant 0 : i32
    %c31_i32_346 = arith.constant 31 : i32
    %880 = arith.maxsi %c0_i32_345, %879 : i32
    %881 = arith.minsi %c31_i32_346, %880 : i32
    %c0_i32_347 = arith.constant 0 : i32
    %882 = arith.addi %875, %c0_i32_347 : i32
    %883 = arith.index_cast %882 : i32 to index
    %884 = memref.load %arg2[%883] : memref<128xf32, #tpu.memory_space<smem>>
    %885 = arith.index_cast %881 : i32 to index
    %c0_348 = arith.constant 0 : index
    %886 = vector.load %arg3[%885, %c0_348] : memref<32x128xf32, #tpu.memory_space<vmem>>, vector<1x128xf32>
    %887 = vector.broadcast %884 : f32 to vector<1x128xf32>
    %888 = arith.mulf %887, %886 : vector<1x128xf32>
    %889 = arith.addf %876, %888 : vector<1x128xf32>
    %c1_i32_349 = arith.constant 1 : i32
    %890 = arith.addi %875, %c1_i32_349 : i32
    %891 = arith.index_cast %890 : i32 to index
    %892 = memref.load %arg1[%891] : memref<128xi32, #tpu.memory_space<smem>>
    %c0_i32_350 = arith.constant 0 : i32
    %c31_i32_351 = arith.constant 31 : i32
    %893 = arith.maxsi %c0_i32_350, %892 : i32
    %894 = arith.minsi %c31_i32_351, %893 : i32
    %c1_i32_352 = arith.constant 1 : i32
    %895 = arith.addi %875, %c1_i32_352 : i32
    %896 = arith.index_cast %895 : i32 to index
    %897 = memref.load %arg2[%896] : memref<128xf32, #tpu.memory_space<smem>>
    %898 = arith.index_cast %894 : i32 to index
    %c0_353 = arith.constant 0 : index
    %899 = vector.load %arg3[%898, %c0_353] : memref<32x128xf32, #tpu.memory_space<vmem>>, vector<1x128xf32>
    %900 = vector.broadcast %897 : f32 to vector<1x128xf32>
    %901 = arith.mulf %900, %899 : vector<1x128xf32>
    %902 = arith.addf %889, %901 : vector<1x128xf32>
    %c2_i32_354 = arith.constant 2 : i32
    %903 = arith.addi %875, %c2_i32_354 : i32
    %904 = arith.index_cast %903 : i32 to index
    %905 = memref.load %arg1[%904] : memref<128xi32, #tpu.memory_space<smem>>
    %c0_i32_355 = arith.constant 0 : i32
    %c31_i32_356 = arith.constant 31 : i32
    %906 = arith.maxsi %c0_i32_355, %905 : i32
    %907 = arith.minsi %c31_i32_356, %906 : i32
    %c2_i32_357 = arith.constant 2 : i32
    %908 = arith.addi %875, %c2_i32_357 : i32
    %909 = arith.index_cast %908 : i32 to index
    %910 = memref.load %arg2[%909] : memref<128xf32, #tpu.memory_space<smem>>
    %911 = arith.index_cast %907 : i32 to index
    %c0_358 = arith.constant 0 : index
    %912 = vector.load %arg3[%911, %c0_358] : memref<32x128xf32, #tpu.memory_space<vmem>>, vector<1x128xf32>
    %913 = vector.broadcast %910 : f32 to vector<1x128xf32>
    %914 = arith.mulf %913, %912 : vector<1x128xf32>
    %915 = arith.addf %902, %914 : vector<1x128xf32>
    %c3_i32_359 = arith.constant 3 : i32
    %916 = arith.addi %875, %c3_i32_359 : i32
    %917 = arith.index_cast %916 : i32 to index
    %918 = memref.load %arg1[%917] : memref<128xi32, #tpu.memory_space<smem>>
    %c0_i32_360 = arith.constant 0 : i32
    %c31_i32_361 = arith.constant 31 : i32
    %919 = arith.maxsi %c0_i32_360, %918 : i32
    %920 = arith.minsi %c31_i32_361, %919 : i32
    %c3_i32_362 = arith.constant 3 : i32
    %921 = arith.addi %875, %c3_i32_362 : i32
    %922 = arith.index_cast %921 : i32 to index
    %923 = memref.load %arg2[%922] : memref<128xf32, #tpu.memory_space<smem>>
    %924 = arith.index_cast %920 : i32 to index
    %c0_363 = arith.constant 0 : index
    %925 = vector.load %arg3[%924, %c0_363] : memref<32x128xf32, #tpu.memory_space<vmem>>, vector<1x128xf32>
    %926 = vector.broadcast %923 : f32 to vector<1x128xf32>
    %927 = arith.mulf %926, %925 : vector<1x128xf32>
    %928 = arith.addf %915, %927 : vector<1x128xf32>
    %c4_i32_364 = arith.constant 4 : i32
    %929 = arith.addi %875, %c4_i32_364 : i32
    %930 = arith.index_cast %929 : i32 to index
    %931 = memref.load %arg1[%930] : memref<128xi32, #tpu.memory_space<smem>>
    %c0_i32_365 = arith.constant 0 : i32
    %c31_i32_366 = arith.constant 31 : i32
    %932 = arith.maxsi %c0_i32_365, %931 : i32
    %933 = arith.minsi %c31_i32_366, %932 : i32
    %c4_i32_367 = arith.constant 4 : i32
    %934 = arith.addi %875, %c4_i32_367 : i32
    %935 = arith.index_cast %934 : i32 to index
    %936 = memref.load %arg2[%935] : memref<128xf32, #tpu.memory_space<smem>>
    %937 = arith.index_cast %933 : i32 to index
    %c0_368 = arith.constant 0 : index
    %938 = vector.load %arg3[%937, %c0_368] : memref<32x128xf32, #tpu.memory_space<vmem>>, vector<1x128xf32>
    %939 = vector.broadcast %936 : f32 to vector<1x128xf32>
    %940 = arith.mulf %939, %938 : vector<1x128xf32>
    %941 = arith.addf %928, %940 : vector<1x128xf32>
    %c5_i32_369 = arith.constant 5 : i32
    %942 = arith.addi %875, %c5_i32_369 : i32
    %943 = arith.index_cast %942 : i32 to index
    %944 = memref.load %arg1[%943] : memref<128xi32, #tpu.memory_space<smem>>
    %c0_i32_370 = arith.constant 0 : i32
    %c31_i32_371 = arith.constant 31 : i32
    %945 = arith.maxsi %c0_i32_370, %944 : i32
    %946 = arith.minsi %c31_i32_371, %945 : i32
    %c5_i32_372 = arith.constant 5 : i32
    %947 = arith.addi %875, %c5_i32_372 : i32
    %948 = arith.index_cast %947 : i32 to index
    %949 = memref.load %arg2[%948] : memref<128xf32, #tpu.memory_space<smem>>
    %950 = arith.index_cast %946 : i32 to index
    %c0_373 = arith.constant 0 : index
    %951 = vector.load %arg3[%950, %c0_373] : memref<32x128xf32, #tpu.memory_space<vmem>>, vector<1x128xf32>
    %952 = vector.broadcast %949 : f32 to vector<1x128xf32>
    %953 = arith.mulf %952, %951 : vector<1x128xf32>
    %954 = arith.addf %941, %953 : vector<1x128xf32>
    %c6_i32_374 = arith.constant 6 : i32
    %955 = arith.addi %875, %c6_i32_374 : i32
    %956 = arith.index_cast %955 : i32 to index
    %957 = memref.load %arg1[%956] : memref<128xi32, #tpu.memory_space<smem>>
    %c0_i32_375 = arith.constant 0 : i32
    %c31_i32_376 = arith.constant 31 : i32
    %958 = arith.maxsi %c0_i32_375, %957 : i32
    %959 = arith.minsi %c31_i32_376, %958 : i32
    %c6_i32_377 = arith.constant 6 : i32
    %960 = arith.addi %875, %c6_i32_377 : i32
    %961 = arith.index_cast %960 : i32 to index
    %962 = memref.load %arg2[%961] : memref<128xf32, #tpu.memory_space<smem>>
    %963 = arith.index_cast %959 : i32 to index
    %c0_378 = arith.constant 0 : index
    %964 = vector.load %arg3[%963, %c0_378] : memref<32x128xf32, #tpu.memory_space<vmem>>, vector<1x128xf32>
    %965 = vector.broadcast %962 : f32 to vector<1x128xf32>
    %966 = arith.mulf %965, %964 : vector<1x128xf32>
    %967 = arith.addf %954, %966 : vector<1x128xf32>
    %c7_i32_379 = arith.constant 7 : i32
    %968 = arith.addi %875, %c7_i32_379 : i32
    %969 = arith.index_cast %968 : i32 to index
    %970 = memref.load %arg1[%969] : memref<128xi32, #tpu.memory_space<smem>>
    %c0_i32_380 = arith.constant 0 : i32
    %c31_i32_381 = arith.constant 31 : i32
    %971 = arith.maxsi %c0_i32_380, %970 : i32
    %972 = arith.minsi %c31_i32_381, %971 : i32
    %c7_i32_382 = arith.constant 7 : i32
    %973 = arith.addi %875, %c7_i32_382 : i32
    %974 = arith.index_cast %973 : i32 to index
    %975 = memref.load %arg2[%974] : memref<128xf32, #tpu.memory_space<smem>>
    %976 = arith.index_cast %972 : i32 to index
    %c0_383 = arith.constant 0 : index
    %977 = vector.load %arg3[%976, %c0_383] : memref<32x128xf32, #tpu.memory_space<vmem>>, vector<1x128xf32>
    %978 = vector.broadcast %975 : f32 to vector<1x128xf32>
    %979 = arith.mulf %978, %977 : vector<1x128xf32>
    %980 = arith.addf %967, %979 : vector<1x128xf32>
    %981 = arith.index_cast %c8_i32_341 : i32 to index
    %c0_384 = arith.constant 0 : index
    %982 = vector.load %arg4[%981, %c0_384] : memref<16x128xf32, #tpu.memory_space<vmem>>, vector<1x128xf32>
    tpu.vector_store %arg4[%981, %c0_384], %980 {strides = array<i32>} : memref<16x128xf32, #tpu.memory_space<vmem>>, vector<1x128xf32>,
    %c9_i32 = arith.constant 9 : i32
    %c8_i32_385 = arith.constant 8 : i32
    %983 = arith.muli %c9_i32, %c8_i32_385 : i32
    %984 = arith.addi %1, %983 : i32
    %cst_386 = arith.constant 0.000000e+00 : f32
    %985 = vector.broadcast %cst_386 : f32 to vector<1x128xf32>
    %c0_i32_387 = arith.constant 0 : i32
    %986 = arith.addi %984, %c0_i32_387 : i32
    %987 = arith.index_cast %986 : i32 to index
    %988 = memref.load %arg1[%987] : memref<128xi32, #tpu.memory_space<smem>>
    %c0_i32_388 = arith.constant 0 : i32
    %c31_i32_389 = arith.constant 31 : i32
    %989 = arith.maxsi %c0_i32_388, %988 : i32
    %990 = arith.minsi %c31_i32_389, %989 : i32
    %c0_i32_390 = arith.constant 0 : i32
    %991 = arith.addi %984, %c0_i32_390 : i32
    %992 = arith.index_cast %991 : i32 to index
    %993 = memref.load %arg2[%992] : memref<128xf32, #tpu.memory_space<smem>>
    %994 = arith.index_cast %990 : i32 to index
    %c0_391 = arith.constant 0 : index
    %995 = vector.load %arg3[%994, %c0_391] : memref<32x128xf32, #tpu.memory_space<vmem>>, vector<1x128xf32>
    %996 = vector.broadcast %993 : f32 to vector<1x128xf32>
    %997 = arith.mulf %996, %995 : vector<1x128xf32>
    %998 = arith.addf %985, %997 : vector<1x128xf32>
    %c1_i32_392 = arith.constant 1 : i32
    %999 = arith.addi %984, %c1_i32_392 : i32
    %1000 = arith.index_cast %999 : i32 to index
    %1001 = memref.load %arg1[%1000] : memref<128xi32, #tpu.memory_space<smem>>
    %c0_i32_393 = arith.constant 0 : i32
    %c31_i32_394 = arith.constant 31 : i32
    %1002 = arith.maxsi %c0_i32_393, %1001 : i32
    %1003 = arith.minsi %c31_i32_394, %1002 : i32
    %c1_i32_395 = arith.constant 1 : i32
    %1004 = arith.addi %984, %c1_i32_395 : i32
    %1005 = arith.index_cast %1004 : i32 to index
    %1006 = memref.load %arg2[%1005] : memref<128xf32, #tpu.memory_space<smem>>
    %1007 = arith.index_cast %1003 : i32 to index
    %c0_396 = arith.constant 0 : index
    %1008 = vector.load %arg3[%1007, %c0_396] : memref<32x128xf32, #tpu.memory_space<vmem>>, vector<1x128xf32>
    %1009 = vector.broadcast %1006 : f32 to vector<1x128xf32>
    %1010 = arith.mulf %1009, %1008 : vector<1x128xf32>
    %1011 = arith.addf %998, %1010 : vector<1x128xf32>
    %c2_i32_397 = arith.constant 2 : i32
    %1012 = arith.addi %984, %c2_i32_397 : i32
    %1013 = arith.index_cast %1012 : i32 to index
    %1014 = memref.load %arg1[%1013] : memref<128xi32, #tpu.memory_space<smem>>
    %c0_i32_398 = arith.constant 0 : i32
    %c31_i32_399 = arith.constant 31 : i32
    %1015 = arith.maxsi %c0_i32_398, %1014 : i32
    %1016 = arith.minsi %c31_i32_399, %1015 : i32
    %c2_i32_400 = arith.constant 2 : i32
    %1017 = arith.addi %984, %c2_i32_400 : i32
    %1018 = arith.index_cast %1017 : i32 to index
    %1019 = memref.load %arg2[%1018] : memref<128xf32, #tpu.memory_space<smem>>
    %1020 = arith.index_cast %1016 : i32 to index
    %c0_401 = arith.constant 0 : index
    %1021 = vector.load %arg3[%1020, %c0_401] : memref<32x128xf32, #tpu.memory_space<vmem>>, vector<1x128xf32>
    %1022 = vector.broadcast %1019 : f32 to vector<1x128xf32>
    %1023 = arith.mulf %1022, %1021 : vector<1x128xf32>
    %1024 = arith.addf %1011, %1023 : vector<1x128xf32>
    %c3_i32_402 = arith.constant 3 : i32
    %1025 = arith.addi %984, %c3_i32_402 : i32
    %1026 = arith.index_cast %1025 : i32 to index
    %1027 = memref.load %arg1[%1026] : memref<128xi32, #tpu.memory_space<smem>>
    %c0_i32_403 = arith.constant 0 : i32
    %c31_i32_404 = arith.constant 31 : i32
    %1028 = arith.maxsi %c0_i32_403, %1027 : i32
    %1029 = arith.minsi %c31_i32_404, %1028 : i32
    %c3_i32_405 = arith.constant 3 : i32
    %1030 = arith.addi %984, %c3_i32_405 : i32
    %1031 = arith.index_cast %1030 : i32 to index
    %1032 = memref.load %arg2[%1031] : memref<128xf32, #tpu.memory_space<smem>>
    %1033 = arith.index_cast %1029 : i32 to index
    %c0_406 = arith.constant 0 : index
    %1034 = vector.load %arg3[%1033, %c0_406] : memref<32x128xf32, #tpu.memory_space<vmem>>, vector<1x128xf32>
    %1035 = vector.broadcast %1032 : f32 to vector<1x128xf32>
    %1036 = arith.mulf %1035, %1034 : vector<1x128xf32>
    %1037 = arith.addf %1024, %1036 : vector<1x128xf32>
    %c4_i32_407 = arith.constant 4 : i32
    %1038 = arith.addi %984, %c4_i32_407 : i32
    %1039 = arith.index_cast %1038 : i32 to index
    %1040 = memref.load %arg1[%1039] : memref<128xi32, #tpu.memory_space<smem>>
    %c0_i32_408 = arith.constant 0 : i32
    %c31_i32_409 = arith.constant 31 : i32
    %1041 = arith.maxsi %c0_i32_408, %1040 : i32
    %1042 = arith.minsi %c31_i32_409, %1041 : i32
    %c4_i32_410 = arith.constant 4 : i32
    %1043 = arith.addi %984, %c4_i32_410 : i32
    %1044 = arith.index_cast %1043 : i32 to index
    %1045 = memref.load %arg2[%1044] : memref<128xf32, #tpu.memory_space<smem>>
    %1046 = arith.index_cast %1042 : i32 to index
    %c0_411 = arith.constant 0 : index
    %1047 = vector.load %arg3[%1046, %c0_411] : memref<32x128xf32, #tpu.memory_space<vmem>>, vector<1x128xf32>
    %1048 = vector.broadcast %1045 : f32 to vector<1x128xf32>
    %1049 = arith.mulf %1048, %1047 : vector<1x128xf32>
    %1050 = arith.addf %1037, %1049 : vector<1x128xf32>
    %c5_i32_412 = arith.constant 5 : i32
    %1051 = arith.addi %984, %c5_i32_412 : i32
    %1052 = arith.index_cast %1051 : i32 to index
    %1053 = memref.load %arg1[%1052] : memref<128xi32, #tpu.memory_space<smem>>
    %c0_i32_413 = arith.constant 0 : i32
    %c31_i32_414 = arith.constant 31 : i32
    %1054 = arith.maxsi %c0_i32_413, %1053 : i32
    %1055 = arith.minsi %c31_i32_414, %1054 : i32
    %c5_i32_415 = arith.constant 5 : i32
    %1056 = arith.addi %984, %c5_i32_415 : i32
    %1057 = arith.index_cast %1056 : i32 to index
    %1058 = memref.load %arg2[%1057] : memref<128xf32, #tpu.memory_space<smem>>
    %1059 = arith.index_cast %1055 : i32 to index
    %c0_416 = arith.constant 0 : index
    %1060 = vector.load %arg3[%1059, %c0_416] : memref<32x128xf32, #tpu.memory_space<vmem>>, vector<1x128xf32>
    %1061 = vector.broadcast %1058 : f32 to vector<1x128xf32>
    %1062 = arith.mulf %1061, %1060 : vector<1x128xf32>
    %1063 = arith.addf %1050, %1062 : vector<1x128xf32>
    %c6_i32_417 = arith.constant 6 : i32
    %1064 = arith.addi %984, %c6_i32_417 : i32
    %1065 = arith.index_cast %1064 : i32 to index
    %1066 = memref.load %arg1[%1065] : memref<128xi32, #tpu.memory_space<smem>>
    %c0_i32_418 = arith.constant 0 : i32
    %c31_i32_419 = arith.constant 31 : i32
    %1067 = arith.maxsi %c0_i32_418, %1066 : i32
    %1068 = arith.minsi %c31_i32_419, %1067 : i32
    %c6_i32_420 = arith.constant 6 : i32
    %1069 = arith.addi %984, %c6_i32_420 : i32
    %1070 = arith.index_cast %1069 : i32 to index
    %1071 = memref.load %arg2[%1070] : memref<128xf32, #tpu.memory_space<smem>>
    %1072 = arith.index_cast %1068 : i32 to index
    %c0_421 = arith.constant 0 : index
    %1073 = vector.load %arg3[%1072, %c0_421] : memref<32x128xf32, #tpu.memory_space<vmem>>, vector<1x128xf32>
    %1074 = vector.broadcast %1071 : f32 to vector<1x128xf32>
    %1075 = arith.mulf %1074, %1073 : vector<1x128xf32>
    %1076 = arith.addf %1063, %1075 : vector<1x128xf32>
    %c7_i32_422 = arith.constant 7 : i32
    %1077 = arith.addi %984, %c7_i32_422 : i32
    %1078 = arith.index_cast %1077 : i32 to index
    %1079 = memref.load %arg1[%1078] : memref<128xi32, #tpu.memory_space<smem>>
    %c0_i32_423 = arith.constant 0 : i32
    %c31_i32_424 = arith.constant 31 : i32
    %1080 = arith.maxsi %c0_i32_423, %1079 : i32
    %1081 = arith.minsi %c31_i32_424, %1080 : i32
    %c7_i32_425 = arith.constant 7 : i32
    %1082 = arith.addi %984, %c7_i32_425 : i32
    %1083 = arith.index_cast %1082 : i32 to index
    %1084 = memref.load %arg2[%1083] : memref<128xf32, #tpu.memory_space<smem>>
    %1085 = arith.index_cast %1081 : i32 to index
    %c0_426 = arith.constant 0 : index
    %1086 = vector.load %arg3[%1085, %c0_426] : memref<32x128xf32, #tpu.memory_space<vmem>>, vector<1x128xf32>
    %1087 = vector.broadcast %1084 : f32 to vector<1x128xf32>
    %1088 = arith.mulf %1087, %1086 : vector<1x128xf32>
    %1089 = arith.addf %1076, %1088 : vector<1x128xf32>
    %1090 = arith.index_cast %c9_i32 : i32 to index
    %c0_427 = arith.constant 0 : index
    %1091 = vector.load %arg4[%1090, %c0_427] : memref<16x128xf32, #tpu.memory_space<vmem>>, vector<1x128xf32>
    tpu.vector_store %arg4[%1090, %c0_427], %1089 {strides = array<i32>} : memref<16x128xf32, #tpu.memory_space<vmem>>, vector<1x128xf32>,
    %c10_i32 = arith.constant 10 : i32
    %c8_i32_428 = arith.constant 8 : i32
    %1092 = arith.muli %c10_i32, %c8_i32_428 : i32
    %1093 = arith.addi %1, %1092 : i32
    %cst_429 = arith.constant 0.000000e+00 : f32
    %1094 = vector.broadcast %cst_429 : f32 to vector<1x128xf32>
    %c0_i32_430 = arith.constant 0 : i32
    %1095 = arith.addi %1093, %c0_i32_430 : i32
    %1096 = arith.index_cast %1095 : i32 to index
    %1097 = memref.load %arg1[%1096] : memref<128xi32, #tpu.memory_space<smem>>
    %c0_i32_431 = arith.constant 0 : i32
    %c31_i32_432 = arith.constant 31 : i32
    %1098 = arith.maxsi %c0_i32_431, %1097 : i32
    %1099 = arith.minsi %c31_i32_432, %1098 : i32
    %c0_i32_433 = arith.constant 0 : i32
    %1100 = arith.addi %1093, %c0_i32_433 : i32
    %1101 = arith.index_cast %1100 : i32 to index
    %1102 = memref.load %arg2[%1101] : memref<128xf32, #tpu.memory_space<smem>>
    %1103 = arith.index_cast %1099 : i32 to index
    %c0_434 = arith.constant 0 : index
    %1104 = vector.load %arg3[%1103, %c0_434] : memref<32x128xf32, #tpu.memory_space<vmem>>, vector<1x128xf32>
    %1105 = vector.broadcast %1102 : f32 to vector<1x128xf32>
    %1106 = arith.mulf %1105, %1104 : vector<1x128xf32>
    %1107 = arith.addf %1094, %1106 : vector<1x128xf32>
    %c1_i32_435 = arith.constant 1 : i32
    %1108 = arith.addi %1093, %c1_i32_435 : i32
    %1109 = arith.index_cast %1108 : i32 to index
    %1110 = memref.load %arg1[%1109] : memref<128xi32, #tpu.memory_space<smem>>
    %c0_i32_436 = arith.constant 0 : i32
    %c31_i32_437 = arith.constant 31 : i32
    %1111 = arith.maxsi %c0_i32_436, %1110 : i32
    %1112 = arith.minsi %c31_i32_437, %1111 : i32
    %c1_i32_438 = arith.constant 1 : i32
    %1113 = arith.addi %1093, %c1_i32_438 : i32
    %1114 = arith.index_cast %1113 : i32 to index
    %1115 = memref.load %arg2[%1114] : memref<128xf32, #tpu.memory_space<smem>>
    %1116 = arith.index_cast %1112 : i32 to index
    %c0_439 = arith.constant 0 : index
    %1117 = vector.load %arg3[%1116, %c0_439] : memref<32x128xf32, #tpu.memory_space<vmem>>, vector<1x128xf32>
    %1118 = vector.broadcast %1115 : f32 to vector<1x128xf32>
    %1119 = arith.mulf %1118, %1117 : vector<1x128xf32>
    %1120 = arith.addf %1107, %1119 : vector<1x128xf32>
    %c2_i32_440 = arith.constant 2 : i32
    %1121 = arith.addi %1093, %c2_i32_440 : i32
    %1122 = arith.index_cast %1121 : i32 to index
    %1123 = memref.load %arg1[%1122] : memref<128xi32, #tpu.memory_space<smem>>
    %c0_i32_441 = arith.constant 0 : i32
    %c31_i32_442 = arith.constant 31 : i32
    %1124 = arith.maxsi %c0_i32_441, %1123 : i32
    %1125 = arith.minsi %c31_i32_442, %1124 : i32
    %c2_i32_443 = arith.constant 2 : i32
    %1126 = arith.addi %1093, %c2_i32_443 : i32
    %1127 = arith.index_cast %1126 : i32 to index
    %1128 = memref.load %arg2[%1127] : memref<128xf32, #tpu.memory_space<smem>>
    %1129 = arith.index_cast %1125 : i32 to index
    %c0_444 = arith.constant 0 : index
    %1130 = vector.load %arg3[%1129, %c0_444] : memref<32x128xf32, #tpu.memory_space<vmem>>, vector<1x128xf32>
    %1131 = vector.broadcast %1128 : f32 to vector<1x128xf32>
    %1132 = arith.mulf %1131, %1130 : vector<1x128xf32>
    %1133 = arith.addf %1120, %1132 : vector<1x128xf32>
    %c3_i32_445 = arith.constant 3 : i32
    %1134 = arith.addi %1093, %c3_i32_445 : i32
    %1135 = arith.index_cast %1134 : i32 to index
    %1136 = memref.load %arg1[%1135] : memref<128xi32, #tpu.memory_space<smem>>
    %c0_i32_446 = arith.constant 0 : i32
    %c31_i32_447 = arith.constant 31 : i32
    %1137 = arith.maxsi %c0_i32_446, %1136 : i32
    %1138 = arith.minsi %c31_i32_447, %1137 : i32
    %c3_i32_448 = arith.constant 3 : i32
    %1139 = arith.addi %1093, %c3_i32_448 : i32
    %1140 = arith.index_cast %1139 : i32 to index
    %1141 = memref.load %arg2[%1140] : memref<128xf32, #tpu.memory_space<smem>>
    %1142 = arith.index_cast %1138 : i32 to index
    %c0_449 = arith.constant 0 : index
    %1143 = vector.load %arg3[%1142, %c0_449] : memref<32x128xf32, #tpu.memory_space<vmem>>, vector<1x128xf32>
    %1144 = vector.broadcast %1141 : f32 to vector<1x128xf32>
    %1145 = arith.mulf %1144, %1143 : vector<1x128xf32>
    %1146 = arith.addf %1133, %1145 : vector<1x128xf32>
    %c4_i32_450 = arith.constant 4 : i32
    %1147 = arith.addi %1093, %c4_i32_450 : i32
    %1148 = arith.index_cast %1147 : i32 to index
    %1149 = memref.load %arg1[%1148] : memref<128xi32, #tpu.memory_space<smem>>
    %c0_i32_451 = arith.constant 0 : i32
    %c31_i32_452 = arith.constant 31 : i32
    %1150 = arith.maxsi %c0_i32_451, %1149 : i32
    %1151 = arith.minsi %c31_i32_452, %1150 : i32
    %c4_i32_453 = arith.constant 4 : i32
    %1152 = arith.addi %1093, %c4_i32_453 : i32
    %1153 = arith.index_cast %1152 : i32 to index
    %1154 = memref.load %arg2[%1153] : memref<128xf32, #tpu.memory_space<smem>>
    %1155 = arith.index_cast %1151 : i32 to index
    %c0_454 = arith.constant 0 : index
    %1156 = vector.load %arg3[%1155, %c0_454] : memref<32x128xf32, #tpu.memory_space<vmem>>, vector<1x128xf32>
    %1157 = vector.broadcast %1154 : f32 to vector<1x128xf32>
    %1158 = arith.mulf %1157, %1156 : vector<1x128xf32>
    %1159 = arith.addf %1146, %1158 : vector<1x128xf32>
    %c5_i32_455 = arith.constant 5 : i32
    %1160 = arith.addi %1093, %c5_i32_455 : i32
    %1161 = arith.index_cast %1160 : i32 to index
    %1162 = memref.load %arg1[%1161] : memref<128xi32, #tpu.memory_space<smem>>
    %c0_i32_456 = arith.constant 0 : i32
    %c31_i32_457 = arith.constant 31 : i32
    %1163 = arith.maxsi %c0_i32_456, %1162 : i32
    %1164 = arith.minsi %c31_i32_457, %1163 : i32
    %c5_i32_458 = arith.constant 5 : i32
    %1165 = arith.addi %1093, %c5_i32_458 : i32
    %1166 = arith.index_cast %1165 : i32 to index
    %1167 = memref.load %arg2[%1166] : memref<128xf32, #tpu.memory_space<smem>>
    %1168 = arith.index_cast %1164 : i32 to index
    %c0_459 = arith.constant 0 : index
    %1169 = vector.load %arg3[%1168, %c0_459] : memref<32x128xf32, #tpu.memory_space<vmem>>, vector<1x128xf32>
    %1170 = vector.broadcast %1167 : f32 to vector<1x128xf32>
    %1171 = arith.mulf %1170, %1169 : vector<1x128xf32>
    %1172 = arith.addf %1159, %1171 : vector<1x128xf32>
    %c6_i32_460 = arith.constant 6 : i32
    %1173 = arith.addi %1093, %c6_i32_460 : i32
    %1174 = arith.index_cast %1173 : i32 to index
    %1175 = memref.load %arg1[%1174] : memref<128xi32, #tpu.memory_space<smem>>
    %c0_i32_461 = arith.constant 0 : i32
    %c31_i32_462 = arith.constant 31 : i32
    %1176 = arith.maxsi %c0_i32_461, %1175 : i32
    %1177 = arith.minsi %c31_i32_462, %1176 : i32
    %c6_i32_463 = arith.constant 6 : i32
    %1178 = arith.addi %1093, %c6_i32_463 : i32
    %1179 = arith.index_cast %1178 : i32 to index
    %1180 = memref.load %arg2[%1179] : memref<128xf32, #tpu.memory_space<smem>>
    %1181 = arith.index_cast %1177 : i32 to index
    %c0_464 = arith.constant 0 : index
    %1182 = vector.load %arg3[%1181, %c0_464] : memref<32x128xf32, #tpu.memory_space<vmem>>, vector<1x128xf32>
    %1183 = vector.broadcast %1180 : f32 to vector<1x128xf32>
    %1184 = arith.mulf %1183, %1182 : vector<1x128xf32>
    %1185 = arith.addf %1172, %1184 : vector<1x128xf32>
    %c7_i32_465 = arith.constant 7 : i32
    %1186 = arith.addi %1093, %c7_i32_465 : i32
    %1187 = arith.index_cast %1186 : i32 to index
    %1188 = memref.load %arg1[%1187] : memref<128xi32, #tpu.memory_space<smem>>
    %c0_i32_466 = arith.constant 0 : i32
    %c31_i32_467 = arith.constant 31 : i32
    %1189 = arith.maxsi %c0_i32_466, %1188 : i32
    %1190 = arith.minsi %c31_i32_467, %1189 : i32
    %c7_i32_468 = arith.constant 7 : i32
    %1191 = arith.addi %1093, %c7_i32_468 : i32
    %1192 = arith.index_cast %1191 : i32 to index
    %1193 = memref.load %arg2[%1192] : memref<128xf32, #tpu.memory_space<smem>>
    %1194 = arith.index_cast %1190 : i32 to index
    %c0_469 = arith.constant 0 : index
    %1195 = vector.load %arg3[%1194, %c0_469] : memref<32x128xf32, #tpu.memory_space<vmem>>, vector<1x128xf32>
    %1196 = vector.broadcast %1193 : f32 to vector<1x128xf32>
    %1197 = arith.mulf %1196, %1195 : vector<1x128xf32>
    %1198 = arith.addf %1185, %1197 : vector<1x128xf32>
    %1199 = arith.index_cast %c10_i32 : i32 to index
    %c0_470 = arith.constant 0 : index
    %1200 = vector.load %arg4[%1199, %c0_470] : memref<16x128xf32, #tpu.memory_space<vmem>>, vector<1x128xf32>
    tpu.vector_store %arg4[%1199, %c0_470], %1198 {strides = array<i32>} : memref<16x128xf32, #tpu.memory_space<vmem>>, vector<1x128xf32>,
    %c11_i32 = arith.constant 11 : i32
    %c8_i32_471 = arith.constant 8 : i32
    %1201 = arith.muli %c11_i32, %c8_i32_471 : i32
    %1202 = arith.addi %1, %1201 : i32
    %cst_472 = arith.constant 0.000000e+00 : f32
    %1203 = vector.broadcast %cst_472 : f32 to vector<1x128xf32>
    %c0_i32_473 = arith.constant 0 : i32
    %1204 = arith.addi %1202, %c0_i32_473 : i32
    %1205 = arith.index_cast %1204 : i32 to index
    %1206 = memref.load %arg1[%1205] : memref<128xi32, #tpu.memory_space<smem>>
    %c0_i32_474 = arith.constant 0 : i32
    %c31_i32_475 = arith.constant 31 : i32
    %1207 = arith.maxsi %c0_i32_474, %1206 : i32
    %1208 = arith.minsi %c31_i32_475, %1207 : i32
    %c0_i32_476 = arith.constant 0 : i32
    %1209 = arith.addi %1202, %c0_i32_476 : i32
    %1210 = arith.index_cast %1209 : i32 to index
    %1211 = memref.load %arg2[%1210] : memref<128xf32, #tpu.memory_space<smem>>
    %1212 = arith.index_cast %1208 : i32 to index
    %c0_477 = arith.constant 0 : index
    %1213 = vector.load %arg3[%1212, %c0_477] : memref<32x128xf32, #tpu.memory_space<vmem>>, vector<1x128xf32>
    %1214 = vector.broadcast %1211 : f32 to vector<1x128xf32>
    %1215 = arith.mulf %1214, %1213 : vector<1x128xf32>
    %1216 = arith.addf %1203, %1215 : vector<1x128xf32>
    %c1_i32_478 = arith.constant 1 : i32
    %1217 = arith.addi %1202, %c1_i32_478 : i32
    %1218 = arith.index_cast %1217 : i32 to index
    %1219 = memref.load %arg1[%1218] : memref<128xi32, #tpu.memory_space<smem>>
    %c0_i32_479 = arith.constant 0 : i32
    %c31_i32_480 = arith.constant 31 : i32
    %1220 = arith.maxsi %c0_i32_479, %1219 : i32
    %1221 = arith.minsi %c31_i32_480, %1220 : i32
    %c1_i32_481 = arith.constant 1 : i32
    %1222 = arith.addi %1202, %c1_i32_481 : i32
    %1223 = arith.index_cast %1222 : i32 to index
    %1224 = memref.load %arg2[%1223] : memref<128xf32, #tpu.memory_space<smem>>
    %1225 = arith.index_cast %1221 : i32 to index
    %c0_482 = arith.constant 0 : index
    %1226 = vector.load %arg3[%1225, %c0_482] : memref<32x128xf32, #tpu.memory_space<vmem>>, vector<1x128xf32>
    %1227 = vector.broadcast %1224 : f32 to vector<1x128xf32>
    %1228 = arith.mulf %1227, %1226 : vector<1x128xf32>
    %1229 = arith.addf %1216, %1228 : vector<1x128xf32>
    %c2_i32_483 = arith.constant 2 : i32
    %1230 = arith.addi %1202, %c2_i32_483 : i32
    %1231 = arith.index_cast %1230 : i32 to index
    %1232 = memref.load %arg1[%1231] : memref<128xi32, #tpu.memory_space<smem>>
    %c0_i32_484 = arith.constant 0 : i32
    %c31_i32_485 = arith.constant 31 : i32
    %1233 = arith.maxsi %c0_i32_484, %1232 : i32
    %1234 = arith.minsi %c31_i32_485, %1233 : i32
    %c2_i32_486 = arith.constant 2 : i32
    %1235 = arith.addi %1202, %c2_i32_486 : i32
    %1236 = arith.index_cast %1235 : i32 to index
    %1237 = memref.load %arg2[%1236] : memref<128xf32, #tpu.memory_space<smem>>
    %1238 = arith.index_cast %1234 : i32 to index
    %c0_487 = arith.constant 0 : index
    %1239 = vector.load %arg3[%1238, %c0_487] : memref<32x128xf32, #tpu.memory_space<vmem>>, vector<1x128xf32>
    %1240 = vector.broadcast %1237 : f32 to vector<1x128xf32>
    %1241 = arith.mulf %1240, %1239 : vector<1x128xf32>
    %1242 = arith.addf %1229, %1241 : vector<1x128xf32>
    %c3_i32_488 = arith.constant 3 : i32
    %1243 = arith.addi %1202, %c3_i32_488 : i32
    %1244 = arith.index_cast %1243 : i32 to index
    %1245 = memref.load %arg1[%1244] : memref<128xi32, #tpu.memory_space<smem>>
    %c0_i32_489 = arith.constant 0 : i32
    %c31_i32_490 = arith.constant 31 : i32
    %1246 = arith.maxsi %c0_i32_489, %1245 : i32
    %1247 = arith.minsi %c31_i32_490, %1246 : i32
    %c3_i32_491 = arith.constant 3 : i32
    %1248 = arith.addi %1202, %c3_i32_491 : i32
    %1249 = arith.index_cast %1248 : i32 to index
    %1250 = memref.load %arg2[%1249] : memref<128xf32, #tpu.memory_space<smem>>
    %1251 = arith.index_cast %1247 : i32 to index
    %c0_492 = arith.constant 0 : index
    %1252 = vector.load %arg3[%1251, %c0_492] : memref<32x128xf32, #tpu.memory_space<vmem>>, vector<1x128xf32>
    %1253 = vector.broadcast %1250 : f32 to vector<1x128xf32>
    %1254 = arith.mulf %1253, %1252 : vector<1x128xf32>
    %1255 = arith.addf %1242, %1254 : vector<1x128xf32>
    %c4_i32_493 = arith.constant 4 : i32
    %1256 = arith.addi %1202, %c4_i32_493 : i32
    %1257 = arith.index_cast %1256 : i32 to index
    %1258 = memref.load %arg1[%1257] : memref<128xi32, #tpu.memory_space<smem>>
    %c0_i32_494 = arith.constant 0 : i32
    %c31_i32_495 = arith.constant 31 : i32
    %1259 = arith.maxsi %c0_i32_494, %1258 : i32
    %1260 = arith.minsi %c31_i32_495, %1259 : i32
    %c4_i32_496 = arith.constant 4 : i32
    %1261 = arith.addi %1202, %c4_i32_496 : i32
    %1262 = arith.index_cast %1261 : i32 to index
    %1263 = memref.load %arg2[%1262] : memref<128xf32, #tpu.memory_space<smem>>
    %1264 = arith.index_cast %1260 : i32 to index
    %c0_497 = arith.constant 0 : index
    %1265 = vector.load %arg3[%1264, %c0_497] : memref<32x128xf32, #tpu.memory_space<vmem>>, vector<1x128xf32>
    %1266 = vector.broadcast %1263 : f32 to vector<1x128xf32>
    %1267 = arith.mulf %1266, %1265 : vector<1x128xf32>
    %1268 = arith.addf %1255, %1267 : vector<1x128xf32>
    %c5_i32_498 = arith.constant 5 : i32
    %1269 = arith.addi %1202, %c5_i32_498 : i32
    %1270 = arith.index_cast %1269 : i32 to index
    %1271 = memref.load %arg1[%1270] : memref<128xi32, #tpu.memory_space<smem>>
    %c0_i32_499 = arith.constant 0 : i32
    %c31_i32_500 = arith.constant 31 : i32
    %1272 = arith.maxsi %c0_i32_499, %1271 : i32
    %1273 = arith.minsi %c31_i32_500, %1272 : i32
    %c5_i32_501 = arith.constant 5 : i32
    %1274 = arith.addi %1202, %c5_i32_501 : i32
    %1275 = arith.index_cast %1274 : i32 to index
    %1276 = memref.load %arg2[%1275] : memref<128xf32, #tpu.memory_space<smem>>
    %1277 = arith.index_cast %1273 : i32 to index
    %c0_502 = arith.constant 0 : index
    %1278 = vector.load %arg3[%1277, %c0_502] : memref<32x128xf32, #tpu.memory_space<vmem>>, vector<1x128xf32>
    %1279 = vector.broadcast %1276 : f32 to vector<1x128xf32>
    %1280 = arith.mulf %1279, %1278 : vector<1x128xf32>
    %1281 = arith.addf %1268, %1280 : vector<1x128xf32>
    %c6_i32_503 = arith.constant 6 : i32
    %1282 = arith.addi %1202, %c6_i32_503 : i32
    %1283 = arith.index_cast %1282 : i32 to index
    %1284 = memref.load %arg1[%1283] : memref<128xi32, #tpu.memory_space<smem>>
    %c0_i32_504 = arith.constant 0 : i32
    %c31_i32_505 = arith.constant 31 : i32
    %1285 = arith.maxsi %c0_i32_504, %1284 : i32
    %1286 = arith.minsi %c31_i32_505, %1285 : i32
    %c6_i32_506 = arith.constant 6 : i32
    %1287 = arith.addi %1202, %c6_i32_506 : i32
    %1288 = arith.index_cast %1287 : i32 to index
    %1289 = memref.load %arg2[%1288] : memref<128xf32, #tpu.memory_space<smem>>
    %1290 = arith.index_cast %1286 : i32 to index
    %c0_507 = arith.constant 0 : index
    %1291 = vector.load %arg3[%1290, %c0_507] : memref<32x128xf32, #tpu.memory_space<vmem>>, vector<1x128xf32>
    %1292 = vector.broadcast %1289 : f32 to vector<1x128xf32>
    %1293 = arith.mulf %1292, %1291 : vector<1x128xf32>
    %1294 = arith.addf %1281, %1293 : vector<1x128xf32>
    %c7_i32_508 = arith.constant 7 : i32
    %1295 = arith.addi %1202, %c7_i32_508 : i32
    %1296 = arith.index_cast %1295 : i32 to index
    %1297 = memref.load %arg1[%1296] : memref<128xi32, #tpu.memory_space<smem>>
    %c0_i32_509 = arith.constant 0 : i32
    %c31_i32_510 = arith.constant 31 : i32
    %1298 = arith.maxsi %c0_i32_509, %1297 : i32
    %1299 = arith.minsi %c31_i32_510, %1298 : i32
    %c7_i32_511 = arith.constant 7 : i32
    %1300 = arith.addi %1202, %c7_i32_511 : i32
    %1301 = arith.index_cast %1300 : i32 to index
    %1302 = memref.load %arg2[%1301] : memref<128xf32, #tpu.memory_space<smem>>
    %1303 = arith.index_cast %1299 : i32 to index
    %c0_512 = arith.constant 0 : index
    %1304 = vector.load %arg3[%1303, %c0_512] : memref<32x128xf32, #tpu.memory_space<vmem>>, vector<1x128xf32>
    %1305 = vector.broadcast %1302 : f32 to vector<1x128xf32>
    %1306 = arith.mulf %1305, %1304 : vector<1x128xf32>
    %1307 = arith.addf %1294, %1306 : vector<1x128xf32>
    %1308 = arith.index_cast %c11_i32 : i32 to index
    %c0_513 = arith.constant 0 : index
    %1309 = vector.load %arg4[%1308, %c0_513] : memref<16x128xf32, #tpu.memory_space<vmem>>, vector<1x128xf32>
    tpu.vector_store %arg4[%1308, %c0_513], %1307 {strides = array<i32>} : memref<16x128xf32, #tpu.memory_space<vmem>>, vector<1x128xf32>,
    %c12_i32 = arith.constant 12 : i32
    %c8_i32_514 = arith.constant 8 : i32
    %1310 = arith.muli %c12_i32, %c8_i32_514 : i32
    %1311 = arith.addi %1, %1310 : i32
    %cst_515 = arith.constant 0.000000e+00 : f32
    %1312 = vector.broadcast %cst_515 : f32 to vector<1x128xf32>
    %c0_i32_516 = arith.constant 0 : i32
    %1313 = arith.addi %1311, %c0_i32_516 : i32
    %1314 = arith.index_cast %1313 : i32 to index
    %1315 = memref.load %arg1[%1314] : memref<128xi32, #tpu.memory_space<smem>>
    %c0_i32_517 = arith.constant 0 : i32
    %c31_i32_518 = arith.constant 31 : i32
    %1316 = arith.maxsi %c0_i32_517, %1315 : i32
    %1317 = arith.minsi %c31_i32_518, %1316 : i32
    %c0_i32_519 = arith.constant 0 : i32
    %1318 = arith.addi %1311, %c0_i32_519 : i32
    %1319 = arith.index_cast %1318 : i32 to index
    %1320 = memref.load %arg2[%1319] : memref<128xf32, #tpu.memory_space<smem>>
    %1321 = arith.index_cast %1317 : i32 to index
    %c0_520 = arith.constant 0 : index
    %1322 = vector.load %arg3[%1321, %c0_520] : memref<32x128xf32, #tpu.memory_space<vmem>>, vector<1x128xf32>
    %1323 = vector.broadcast %1320 : f32 to vector<1x128xf32>
    %1324 = arith.mulf %1323, %1322 : vector<1x128xf32>
    %1325 = arith.addf %1312, %1324 : vector<1x128xf32>
    %c1_i32_521 = arith.constant 1 : i32
    %1326 = arith.addi %1311, %c1_i32_521 : i32
    %1327 = arith.index_cast %1326 : i32 to index
    %1328 = memref.load %arg1[%1327] : memref<128xi32, #tpu.memory_space<smem>>
    %c0_i32_522 = arith.constant 0 : i32
    %c31_i32_523 = arith.constant 31 : i32
    %1329 = arith.maxsi %c0_i32_522, %1328 : i32
    %1330 = arith.minsi %c31_i32_523, %1329 : i32
    %c1_i32_524 = arith.constant 1 : i32
    %1331 = arith.addi %1311, %c1_i32_524 : i32
    %1332 = arith.index_cast %1331 : i32 to index
    %1333 = memref.load %arg2[%1332] : memref<128xf32, #tpu.memory_space<smem>>
    %1334 = arith.index_cast %1330 : i32 to index
    %c0_525 = arith.constant 0 : index
    %1335 = vector.load %arg3[%1334, %c0_525] : memref<32x128xf32, #tpu.memory_space<vmem>>, vector<1x128xf32>
    %1336 = vector.broadcast %1333 : f32 to vector<1x128xf32>
    %1337 = arith.mulf %1336, %1335 : vector<1x128xf32>
    %1338 = arith.addf %1325, %1337 : vector<1x128xf32>
    %c2_i32_526 = arith.constant 2 : i32
    %1339 = arith.addi %1311, %c2_i32_526 : i32
    %1340 = arith.index_cast %1339 : i32 to index
    %1341 = memref.load %arg1[%1340] : memref<128xi32, #tpu.memory_space<smem>>
    %c0_i32_527 = arith.constant 0 : i32
    %c31_i32_528 = arith.constant 31 : i32
    %1342 = arith.maxsi %c0_i32_527, %1341 : i32
    %1343 = arith.minsi %c31_i32_528, %1342 : i32
    %c2_i32_529 = arith.constant 2 : i32
    %1344 = arith.addi %1311, %c2_i32_529 : i32
    %1345 = arith.index_cast %1344 : i32 to index
    %1346 = memref.load %arg2[%1345] : memref<128xf32, #tpu.memory_space<smem>>
    %1347 = arith.index_cast %1343 : i32 to index
    %c0_530 = arith.constant 0 : index
    %1348 = vector.load %arg3[%1347, %c0_530] : memref<32x128xf32, #tpu.memory_space<vmem>>, vector<1x128xf32>
    %1349 = vector.broadcast %1346 : f32 to vector<1x128xf32>
    %1350 = arith.mulf %1349, %1348 : vector<1x128xf32>
    %1351 = arith.addf %1338, %1350 : vector<1x128xf32>
    %c3_i32_531 = arith.constant 3 : i32
    %1352 = arith.addi %1311, %c3_i32_531 : i32
    %1353 = arith.index_cast %1352 : i32 to index
    %1354 = memref.load %arg1[%1353] : memref<128xi32, #tpu.memory_space<smem>>
    %c0_i32_532 = arith.constant 0 : i32
    %c31_i32_533 = arith.constant 31 : i32
    %1355 = arith.maxsi %c0_i32_532, %1354 : i32
    %1356 = arith.minsi %c31_i32_533, %1355 : i32
    %c3_i32_534 = arith.constant 3 : i32
    %1357 = arith.addi %1311, %c3_i32_534 : i32
    %1358 = arith.index_cast %1357 : i32 to index
    %1359 = memref.load %arg2[%1358] : memref<128xf32, #tpu.memory_space<smem>>
    %1360 = arith.index_cast %1356 : i32 to index
    %c0_535 = arith.constant 0 : index
    %1361 = vector.load %arg3[%1360, %c0_535] : memref<32x128xf32, #tpu.memory_space<vmem>>, vector<1x128xf32>
    %1362 = vector.broadcast %1359 : f32 to vector<1x128xf32>
    %1363 = arith.mulf %1362, %1361 : vector<1x128xf32>
    %1364 = arith.addf %1351, %1363 : vector<1x128xf32>
    %c4_i32_536 = arith.constant 4 : i32
    %1365 = arith.addi %1311, %c4_i32_536 : i32
    %1366 = arith.index_cast %1365 : i32 to index
    %1367 = memref.load %arg1[%1366] : memref<128xi32, #tpu.memory_space<smem>>
    %c0_i32_537 = arith.constant 0 : i32
    %c31_i32_538 = arith.constant 31 : i32
    %1368 = arith.maxsi %c0_i32_537, %1367 : i32
    %1369 = arith.minsi %c31_i32_538, %1368 : i32
    %c4_i32_539 = arith.constant 4 : i32
    %1370 = arith.addi %1311, %c4_i32_539 : i32
    %1371 = arith.index_cast %1370 : i32 to index
    %1372 = memref.load %arg2[%1371] : memref<128xf32, #tpu.memory_space<smem>>
    %1373 = arith.index_cast %1369 : i32 to index
    %c0_540 = arith.constant 0 : index
    %1374 = vector.load %arg3[%1373, %c0_540] : memref<32x128xf32, #tpu.memory_space<vmem>>, vector<1x128xf32>
    %1375 = vector.broadcast %1372 : f32 to vector<1x128xf32>
    %1376 = arith.mulf %1375, %1374 : vector<1x128xf32>
    %1377 = arith.addf %1364, %1376 : vector<1x128xf32>
    %c5_i32_541 = arith.constant 5 : i32
    %1378 = arith.addi %1311, %c5_i32_541 : i32
    %1379 = arith.index_cast %1378 : i32 to index
    %1380 = memref.load %arg1[%1379] : memref<128xi32, #tpu.memory_space<smem>>
    %c0_i32_542 = arith.constant 0 : i32
    %c31_i32_543 = arith.constant 31 : i32
    %1381 = arith.maxsi %c0_i32_542, %1380 : i32
    %1382 = arith.minsi %c31_i32_543, %1381 : i32
    %c5_i32_544 = arith.constant 5 : i32
    %1383 = arith.addi %1311, %c5_i32_544 : i32
    %1384 = arith.index_cast %1383 : i32 to index
    %1385 = memref.load %arg2[%1384] : memref<128xf32, #tpu.memory_space<smem>>
    %1386 = arith.index_cast %1382 : i32 to index
    %c0_545 = arith.constant 0 : index
    %1387 = vector.load %arg3[%1386, %c0_545] : memref<32x128xf32, #tpu.memory_space<vmem>>, vector<1x128xf32>
    %1388 = vector.broadcast %1385 : f32 to vector<1x128xf32>
    %1389 = arith.mulf %1388, %1387 : vector<1x128xf32>
    %1390 = arith.addf %1377, %1389 : vector<1x128xf32>
    %c6_i32_546 = arith.constant 6 : i32
    %1391 = arith.addi %1311, %c6_i32_546 : i32
    %1392 = arith.index_cast %1391 : i32 to index
    %1393 = memref.load %arg1[%1392] : memref<128xi32, #tpu.memory_space<smem>>
    %c0_i32_547 = arith.constant 0 : i32
    %c31_i32_548 = arith.constant 31 : i32
    %1394 = arith.maxsi %c0_i32_547, %1393 : i32
    %1395 = arith.minsi %c31_i32_548, %1394 : i32
    %c6_i32_549 = arith.constant 6 : i32
    %1396 = arith.addi %1311, %c6_i32_549 : i32
    %1397 = arith.index_cast %1396 : i32 to index
    %1398 = memref.load %arg2[%1397] : memref<128xf32, #tpu.memory_space<smem>>
    %1399 = arith.index_cast %1395 : i32 to index
    %c0_550 = arith.constant 0 : index
    %1400 = vector.load %arg3[%1399, %c0_550] : memref<32x128xf32, #tpu.memory_space<vmem>>, vector<1x128xf32>
    %1401 = vector.broadcast %1398 : f32 to vector<1x128xf32>
    %1402 = arith.mulf %1401, %1400 : vector<1x128xf32>
    %1403 = arith.addf %1390, %1402 : vector<1x128xf32>
    %c7_i32_551 = arith.constant 7 : i32
    %1404 = arith.addi %1311, %c7_i32_551 : i32
    %1405 = arith.index_cast %1404 : i32 to index
    %1406 = memref.load %arg1[%1405] : memref<128xi32, #tpu.memory_space<smem>>
    %c0_i32_552 = arith.constant 0 : i32
    %c31_i32_553 = arith.constant 31 : i32
    %1407 = arith.maxsi %c0_i32_552, %1406 : i32
    %1408 = arith.minsi %c31_i32_553, %1407 : i32
    %c7_i32_554 = arith.constant 7 : i32
    %1409 = arith.addi %1311, %c7_i32_554 : i32
    %1410 = arith.index_cast %1409 : i32 to index
    %1411 = memref.load %arg2[%1410] : memref<128xf32, #tpu.memory_space<smem>>
    %1412 = arith.index_cast %1408 : i32 to index
    %c0_555 = arith.constant 0 : index
    %1413 = vector.load %arg3[%1412, %c0_555] : memref<32x128xf32, #tpu.memory_space<vmem>>, vector<1x128xf32>
    %1414 = vector.broadcast %1411 : f32 to vector<1x128xf32>
    %1415 = arith.mulf %1414, %1413 : vector<1x128xf32>
    %1416 = arith.addf %1403, %1415 : vector<1x128xf32>
    %1417 = arith.index_cast %c12_i32 : i32 to index
    %c0_556 = arith.constant 0 : index
    %1418 = vector.load %arg4[%1417, %c0_556] : memref<16x128xf32, #tpu.memory_space<vmem>>, vector<1x128xf32>
    tpu.vector_store %arg4[%1417, %c0_556], %1416 {strides = array<i32>} : memref<16x128xf32, #tpu.memory_space<vmem>>, vector<1x128xf32>,
    %c13_i32 = arith.constant 13 : i32
    %c8_i32_557 = arith.constant 8 : i32
    %1419 = arith.muli %c13_i32, %c8_i32_557 : i32
    %1420 = arith.addi %1, %1419 : i32
    %cst_558 = arith.constant 0.000000e+00 : f32
    %1421 = vector.broadcast %cst_558 : f32 to vector<1x128xf32>
    %c0_i32_559 = arith.constant 0 : i32
    %1422 = arith.addi %1420, %c0_i32_559 : i32
    %1423 = arith.index_cast %1422 : i32 to index
    %1424 = memref.load %arg1[%1423] : memref<128xi32, #tpu.memory_space<smem>>
    %c0_i32_560 = arith.constant 0 : i32
    %c31_i32_561 = arith.constant 31 : i32
    %1425 = arith.maxsi %c0_i32_560, %1424 : i32
    %1426 = arith.minsi %c31_i32_561, %1425 : i32
    %c0_i32_562 = arith.constant 0 : i32
    %1427 = arith.addi %1420, %c0_i32_562 : i32
    %1428 = arith.index_cast %1427 : i32 to index
    %1429 = memref.load %arg2[%1428] : memref<128xf32, #tpu.memory_space<smem>>
    %1430 = arith.index_cast %1426 : i32 to index
    %c0_563 = arith.constant 0 : index
    %1431 = vector.load %arg3[%1430, %c0_563] : memref<32x128xf32, #tpu.memory_space<vmem>>, vector<1x128xf32>
    %1432 = vector.broadcast %1429 : f32 to vector<1x128xf32>
    %1433 = arith.mulf %1432, %1431 : vector<1x128xf32>
    %1434 = arith.addf %1421, %1433 : vector<1x128xf32>
    %c1_i32_564 = arith.constant 1 : i32
    %1435 = arith.addi %1420, %c1_i32_564 : i32
    %1436 = arith.index_cast %1435 : i32 to index
    %1437 = memref.load %arg1[%1436] : memref<128xi32, #tpu.memory_space<smem>>
    %c0_i32_565 = arith.constant 0 : i32
    %c31_i32_566 = arith.constant 31 : i32
    %1438 = arith.maxsi %c0_i32_565, %1437 : i32
    %1439 = arith.minsi %c31_i32_566, %1438 : i32
    %c1_i32_567 = arith.constant 1 : i32
    %1440 = arith.addi %1420, %c1_i32_567 : i32
    %1441 = arith.index_cast %1440 : i32 to index
    %1442 = memref.load %arg2[%1441] : memref<128xf32, #tpu.memory_space<smem>>
    %1443 = arith.index_cast %1439 : i32 to index
    %c0_568 = arith.constant 0 : index
    %1444 = vector.load %arg3[%1443, %c0_568] : memref<32x128xf32, #tpu.memory_space<vmem>>, vector<1x128xf32>
    %1445 = vector.broadcast %1442 : f32 to vector<1x128xf32>
    %1446 = arith.mulf %1445, %1444 : vector<1x128xf32>
    %1447 = arith.addf %1434, %1446 : vector<1x128xf32>
    %c2_i32_569 = arith.constant 2 : i32
    %1448 = arith.addi %1420, %c2_i32_569 : i32
    %1449 = arith.index_cast %1448 : i32 to index
    %1450 = memref.load %arg1[%1449] : memref<128xi32, #tpu.memory_space<smem>>
    %c0_i32_570 = arith.constant 0 : i32
    %c31_i32_571 = arith.constant 31 : i32
    %1451 = arith.maxsi %c0_i32_570, %1450 : i32
    %1452 = arith.minsi %c31_i32_571, %1451 : i32
    %c2_i32_572 = arith.constant 2 : i32
    %1453 = arith.addi %1420, %c2_i32_572 : i32
    %1454 = arith.index_cast %1453 : i32 to index
    %1455 = memref.load %arg2[%1454] : memref<128xf32, #tpu.memory_space<smem>>
    %1456 = arith.index_cast %1452 : i32 to index
    %c0_573 = arith.constant 0 : index
    %1457 = vector.load %arg3[%1456, %c0_573] : memref<32x128xf32, #tpu.memory_space<vmem>>, vector<1x128xf32>
    %1458 = vector.broadcast %1455 : f32 to vector<1x128xf32>
    %1459 = arith.mulf %1458, %1457 : vector<1x128xf32>
    %1460 = arith.addf %1447, %1459 : vector<1x128xf32>
    %c3_i32_574 = arith.constant 3 : i32
    %1461 = arith.addi %1420, %c3_i32_574 : i32
    %1462 = arith.index_cast %1461 : i32 to index
    %1463 = memref.load %arg1[%1462] : memref<128xi32, #tpu.memory_space<smem>>
    %c0_i32_575 = arith.constant 0 : i32
    %c31_i32_576 = arith.constant 31 : i32
    %1464 = arith.maxsi %c0_i32_575, %1463 : i32
    %1465 = arith.minsi %c31_i32_576, %1464 : i32
    %c3_i32_577 = arith.constant 3 : i32
    %1466 = arith.addi %1420, %c3_i32_577 : i32
    %1467 = arith.index_cast %1466 : i32 to index
    %1468 = memref.load %arg2[%1467] : memref<128xf32, #tpu.memory_space<smem>>
    %1469 = arith.index_cast %1465 : i32 to index
    %c0_578 = arith.constant 0 : index
    %1470 = vector.load %arg3[%1469, %c0_578] : memref<32x128xf32, #tpu.memory_space<vmem>>, vector<1x128xf32>
    %1471 = vector.broadcast %1468 : f32 to vector<1x128xf32>
    %1472 = arith.mulf %1471, %1470 : vector<1x128xf32>
    %1473 = arith.addf %1460, %1472 : vector<1x128xf32>
    %c4_i32_579 = arith.constant 4 : i32
    %1474 = arith.addi %1420, %c4_i32_579 : i32
    %1475 = arith.index_cast %1474 : i32 to index
    %1476 = memref.load %arg1[%1475] : memref<128xi32, #tpu.memory_space<smem>>
    %c0_i32_580 = arith.constant 0 : i32
    %c31_i32_581 = arith.constant 31 : i32
    %1477 = arith.maxsi %c0_i32_580, %1476 : i32
    %1478 = arith.minsi %c31_i32_581, %1477 : i32
    %c4_i32_582 = arith.constant 4 : i32
    %1479 = arith.addi %1420, %c4_i32_582 : i32
    %1480 = arith.index_cast %1479 : i32 to index
    %1481 = memref.load %arg2[%1480] : memref<128xf32, #tpu.memory_space<smem>>
    %1482 = arith.index_cast %1478 : i32 to index
    %c0_583 = arith.constant 0 : index
    %1483 = vector.load %arg3[%1482, %c0_583] : memref<32x128xf32, #tpu.memory_space<vmem>>, vector<1x128xf32>
    %1484 = vector.broadcast %1481 : f32 to vector<1x128xf32>
    %1485 = arith.mulf %1484, %1483 : vector<1x128xf32>
    %1486 = arith.addf %1473, %1485 : vector<1x128xf32>
    %c5_i32_584 = arith.constant 5 : i32
    %1487 = arith.addi %1420, %c5_i32_584 : i32
    %1488 = arith.index_cast %1487 : i32 to index
    %1489 = memref.load %arg1[%1488] : memref<128xi32, #tpu.memory_space<smem>>
    %c0_i32_585 = arith.constant 0 : i32
    %c31_i32_586 = arith.constant 31 : i32
    %1490 = arith.maxsi %c0_i32_585, %1489 : i32
    %1491 = arith.minsi %c31_i32_586, %1490 : i32
    %c5_i32_587 = arith.constant 5 : i32
    %1492 = arith.addi %1420, %c5_i32_587 : i32
    %1493 = arith.index_cast %1492 : i32 to index
    %1494 = memref.load %arg2[%1493] : memref<128xf32, #tpu.memory_space<smem>>
    %1495 = arith.index_cast %1491 : i32 to index
    %c0_588 = arith.constant 0 : index
    %1496 = vector.load %arg3[%1495, %c0_588] : memref<32x128xf32, #tpu.memory_space<vmem>>, vector<1x128xf32>
    %1497 = vector.broadcast %1494 : f32 to vector<1x128xf32>
    %1498 = arith.mulf %1497, %1496 : vector<1x128xf32>
    %1499 = arith.addf %1486, %1498 : vector<1x128xf32>
    %c6_i32_589 = arith.constant 6 : i32
    %1500 = arith.addi %1420, %c6_i32_589 : i32
    %1501 = arith.index_cast %1500 : i32 to index
    %1502 = memref.load %arg1[%1501] : memref<128xi32, #tpu.memory_space<smem>>
    %c0_i32_590 = arith.constant 0 : i32
    %c31_i32_591 = arith.constant 31 : i32
    %1503 = arith.maxsi %c0_i32_590, %1502 : i32
    %1504 = arith.minsi %c31_i32_591, %1503 : i32
    %c6_i32_592 = arith.constant 6 : i32
    %1505 = arith.addi %1420, %c6_i32_592 : i32
    %1506 = arith.index_cast %1505 : i32 to index
    %1507 = memref.load %arg2[%1506] : memref<128xf32, #tpu.memory_space<smem>>
    %1508 = arith.index_cast %1504 : i32 to index
    %c0_593 = arith.constant 0 : index
    %1509 = vector.load %arg3[%1508, %c0_593] : memref<32x128xf32, #tpu.memory_space<vmem>>, vector<1x128xf32>
    %1510 = vector.broadcast %1507 : f32 to vector<1x128xf32>
    %1511 = arith.mulf %1510, %1509 : vector<1x128xf32>
    %1512 = arith.addf %1499, %1511 : vector<1x128xf32>
    %c7_i32_594 = arith.constant 7 : i32
    %1513 = arith.addi %1420, %c7_i32_594 : i32
    %1514 = arith.index_cast %1513 : i32 to index
    %1515 = memref.load %arg1[%1514] : memref<128xi32, #tpu.memory_space<smem>>
    %c0_i32_595 = arith.constant 0 : i32
    %c31_i32_596 = arith.constant 31 : i32
    %1516 = arith.maxsi %c0_i32_595, %1515 : i32
    %1517 = arith.minsi %c31_i32_596, %1516 : i32
    %c7_i32_597 = arith.constant 7 : i32
    %1518 = arith.addi %1420, %c7_i32_597 : i32
    %1519 = arith.index_cast %1518 : i32 to index
    %1520 = memref.load %arg2[%1519] : memref<128xf32, #tpu.memory_space<smem>>
    %1521 = arith.index_cast %1517 : i32 to index
    %c0_598 = arith.constant 0 : index
    %1522 = vector.load %arg3[%1521, %c0_598] : memref<32x128xf32, #tpu.memory_space<vmem>>, vector<1x128xf32>
    %1523 = vector.broadcast %1520 : f32 to vector<1x128xf32>
    %1524 = arith.mulf %1523, %1522 : vector<1x128xf32>
    %1525 = arith.addf %1512, %1524 : vector<1x128xf32>
    %1526 = arith.index_cast %c13_i32 : i32 to index
    %c0_599 = arith.constant 0 : index
    %1527 = vector.load %arg4[%1526, %c0_599] : memref<16x128xf32, #tpu.memory_space<vmem>>, vector<1x128xf32>
    tpu.vector_store %arg4[%1526, %c0_599], %1525 {strides = array<i32>} : memref<16x128xf32, #tpu.memory_space<vmem>>, vector<1x128xf32>,
    %c14_i32 = arith.constant 14 : i32
    %c8_i32_600 = arith.constant 8 : i32
    %1528 = arith.muli %c14_i32, %c8_i32_600 : i32
    %1529 = arith.addi %1, %1528 : i32
    %cst_601 = arith.constant 0.000000e+00 : f32
    %1530 = vector.broadcast %cst_601 : f32 to vector<1x128xf32>
    %c0_i32_602 = arith.constant 0 : i32
    %1531 = arith.addi %1529, %c0_i32_602 : i32
    %1532 = arith.index_cast %1531 : i32 to index
    %1533 = memref.load %arg1[%1532] : memref<128xi32, #tpu.memory_space<smem>>
    %c0_i32_603 = arith.constant 0 : i32
    %c31_i32_604 = arith.constant 31 : i32
    %1534 = arith.maxsi %c0_i32_603, %1533 : i32
    %1535 = arith.minsi %c31_i32_604, %1534 : i32
    %c0_i32_605 = arith.constant 0 : i32
    %1536 = arith.addi %1529, %c0_i32_605 : i32
    %1537 = arith.index_cast %1536 : i32 to index
    %1538 = memref.load %arg2[%1537] : memref<128xf32, #tpu.memory_space<smem>>
    %1539 = arith.index_cast %1535 : i32 to index
    %c0_606 = arith.constant 0 : index
    %1540 = vector.load %arg3[%1539, %c0_606] : memref<32x128xf32, #tpu.memory_space<vmem>>, vector<1x128xf32>
    %1541 = vector.broadcast %1538 : f32 to vector<1x128xf32>
    %1542 = arith.mulf %1541, %1540 : vector<1x128xf32>
    %1543 = arith.addf %1530, %1542 : vector<1x128xf32>
    %c1_i32_607 = arith.constant 1 : i32
    %1544 = arith.addi %1529, %c1_i32_607 : i32
    %1545 = arith.index_cast %1544 : i32 to index
    %1546 = memref.load %arg1[%1545] : memref<128xi32, #tpu.memory_space<smem>>
    %c0_i32_608 = arith.constant 0 : i32
    %c31_i32_609 = arith.constant 31 : i32
    %1547 = arith.maxsi %c0_i32_608, %1546 : i32
    %1548 = arith.minsi %c31_i32_609, %1547 : i32
    %c1_i32_610 = arith.constant 1 : i32
    %1549 = arith.addi %1529, %c1_i32_610 : i32
    %1550 = arith.index_cast %1549 : i32 to index
    %1551 = memref.load %arg2[%1550] : memref<128xf32, #tpu.memory_space<smem>>
    %1552 = arith.index_cast %1548 : i32 to index
    %c0_611 = arith.constant 0 : index
    %1553 = vector.load %arg3[%1552, %c0_611] : memref<32x128xf32, #tpu.memory_space<vmem>>, vector<1x128xf32>
    %1554 = vector.broadcast %1551 : f32 to vector<1x128xf32>
    %1555 = arith.mulf %1554, %1553 : vector<1x128xf32>
    %1556 = arith.addf %1543, %1555 : vector<1x128xf32>
    %c2_i32_612 = arith.constant 2 : i32
    %1557 = arith.addi %1529, %c2_i32_612 : i32
    %1558 = arith.index_cast %1557 : i32 to index
    %1559 = memref.load %arg1[%1558] : memref<128xi32, #tpu.memory_space<smem>>
    %c0_i32_613 = arith.constant 0 : i32
    %c31_i32_614 = arith.constant 31 : i32
    %1560 = arith.maxsi %c0_i32_613, %1559 : i32
    %1561 = arith.minsi %c31_i32_614, %1560 : i32
    %c2_i32_615 = arith.constant 2 : i32
    %1562 = arith.addi %1529, %c2_i32_615 : i32
    %1563 = arith.index_cast %1562 : i32 to index
    %1564 = memref.load %arg2[%1563] : memref<128xf32, #tpu.memory_space<smem>>
    %1565 = arith.index_cast %1561 : i32 to index
    %c0_616 = arith.constant 0 : index
    %1566 = vector.load %arg3[%1565, %c0_616] : memref<32x128xf32, #tpu.memory_space<vmem>>, vector<1x128xf32>
    %1567 = vector.broadcast %1564 : f32 to vector<1x128xf32>
    %1568 = arith.mulf %1567, %1566 : vector<1x128xf32>
    %1569 = arith.addf %1556, %1568 : vector<1x128xf32>
    %c3_i32_617 = arith.constant 3 : i32
    %1570 = arith.addi %1529, %c3_i32_617 : i32
    %1571 = arith.index_cast %1570 : i32 to index
    %1572 = memref.load %arg1[%1571] : memref<128xi32, #tpu.memory_space<smem>>
    %c0_i32_618 = arith.constant 0 : i32
    %c31_i32_619 = arith.constant 31 : i32
    %1573 = arith.maxsi %c0_i32_618, %1572 : i32
    %1574 = arith.minsi %c31_i32_619, %1573 : i32
    %c3_i32_620 = arith.constant 3 : i32
    %1575 = arith.addi %1529, %c3_i32_620 : i32
    %1576 = arith.index_cast %1575 : i32 to index
    %1577 = memref.load %arg2[%1576] : memref<128xf32, #tpu.memory_space<smem>>
    %1578 = arith.index_cast %1574 : i32 to index
    %c0_621 = arith.constant 0 : index
    %1579 = vector.load %arg3[%1578, %c0_621] : memref<32x128xf32, #tpu.memory_space<vmem>>, vector<1x128xf32>
    %1580 = vector.broadcast %1577 : f32 to vector<1x128xf32>
    %1581 = arith.mulf %1580, %1579 : vector<1x128xf32>
    %1582 = arith.addf %1569, %1581 : vector<1x128xf32>
    %c4_i32_622 = arith.constant 4 : i32
    %1583 = arith.addi %1529, %c4_i32_622 : i32
    %1584 = arith.index_cast %1583 : i32 to index
    %1585 = memref.load %arg1[%1584] : memref<128xi32, #tpu.memory_space<smem>>
    %c0_i32_623 = arith.constant 0 : i32
    %c31_i32_624 = arith.constant 31 : i32
    %1586 = arith.maxsi %c0_i32_623, %1585 : i32
    %1587 = arith.minsi %c31_i32_624, %1586 : i32
    %c4_i32_625 = arith.constant 4 : i32
    %1588 = arith.addi %1529, %c4_i32_625 : i32
    %1589 = arith.index_cast %1588 : i32 to index
    %1590 = memref.load %arg2[%1589] : memref<128xf32, #tpu.memory_space<smem>>
    %1591 = arith.index_cast %1587 : i32 to index
    %c0_626 = arith.constant 0 : index
    %1592 = vector.load %arg3[%1591, %c0_626] : memref<32x128xf32, #tpu.memory_space<vmem>>, vector<1x128xf32>
    %1593 = vector.broadcast %1590 : f32 to vector<1x128xf32>
    %1594 = arith.mulf %1593, %1592 : vector<1x128xf32>
    %1595 = arith.addf %1582, %1594 : vector<1x128xf32>
    %c5_i32_627 = arith.constant 5 : i32
    %1596 = arith.addi %1529, %c5_i32_627 : i32
    %1597 = arith.index_cast %1596 : i32 to index
    %1598 = memref.load %arg1[%1597] : memref<128xi32, #tpu.memory_space<smem>>
    %c0_i32_628 = arith.constant 0 : i32
    %c31_i32_629 = arith.constant 31 : i32
    %1599 = arith.maxsi %c0_i32_628, %1598 : i32
    %1600 = arith.minsi %c31_i32_629, %1599 : i32
    %c5_i32_630 = arith.constant 5 : i32
    %1601 = arith.addi %1529, %c5_i32_630 : i32
    %1602 = arith.index_cast %1601 : i32 to index
    %1603 = memref.load %arg2[%1602] : memref<128xf32, #tpu.memory_space<smem>>
    %1604 = arith.index_cast %1600 : i32 to index
    %c0_631 = arith.constant 0 : index
    %1605 = vector.load %arg3[%1604, %c0_631] : memref<32x128xf32, #tpu.memory_space<vmem>>, vector<1x128xf32>
    %1606 = vector.broadcast %1603 : f32 to vector<1x128xf32>
    %1607 = arith.mulf %1606, %1605 : vector<1x128xf32>
    %1608 = arith.addf %1595, %1607 : vector<1x128xf32>
    %c6_i32_632 = arith.constant 6 : i32
    %1609 = arith.addi %1529, %c6_i32_632 : i32
    %1610 = arith.index_cast %1609 : i32 to index
    %1611 = memref.load %arg1[%1610] : memref<128xi32, #tpu.memory_space<smem>>
    %c0_i32_633 = arith.constant 0 : i32
    %c31_i32_634 = arith.constant 31 : i32
    %1612 = arith.maxsi %c0_i32_633, %1611 : i32
    %1613 = arith.minsi %c31_i32_634, %1612 : i32
    %c6_i32_635 = arith.constant 6 : i32
    %1614 = arith.addi %1529, %c6_i32_635 : i32
    %1615 = arith.index_cast %1614 : i32 to index
    %1616 = memref.load %arg2[%1615] : memref<128xf32, #tpu.memory_space<smem>>
    %1617 = arith.index_cast %1613 : i32 to index
    %c0_636 = arith.constant 0 : index
    %1618 = vector.load %arg3[%1617, %c0_636] : memref<32x128xf32, #tpu.memory_space<vmem>>, vector<1x128xf32>
    %1619 = vector.broadcast %1616 : f32 to vector<1x128xf32>
    %1620 = arith.mulf %1619, %1618 : vector<1x128xf32>
    %1621 = arith.addf %1608, %1620 : vector<1x128xf32>
    %c7_i32_637 = arith.constant 7 : i32
    %1622 = arith.addi %1529, %c7_i32_637 : i32
    %1623 = arith.index_cast %1622 : i32 to index
    %1624 = memref.load %arg1[%1623] : memref<128xi32, #tpu.memory_space<smem>>
    %c0_i32_638 = arith.constant 0 : i32
    %c31_i32_639 = arith.constant 31 : i32
    %1625 = arith.maxsi %c0_i32_638, %1624 : i32
    %1626 = arith.minsi %c31_i32_639, %1625 : i32
    %c7_i32_640 = arith.constant 7 : i32
    %1627 = arith.addi %1529, %c7_i32_640 : i32
    %1628 = arith.index_cast %1627 : i32 to index
    %1629 = memref.load %arg2[%1628] : memref<128xf32, #tpu.memory_space<smem>>
    %1630 = arith.index_cast %1626 : i32 to index
    %c0_641 = arith.constant 0 : index
    %1631 = vector.load %arg3[%1630, %c0_641] : memref<32x128xf32, #tpu.memory_space<vmem>>, vector<1x128xf32>
    %1632 = vector.broadcast %1629 : f32 to vector<1x128xf32>
    %1633 = arith.mulf %1632, %1631 : vector<1x128xf32>
    %1634 = arith.addf %1621, %1633 : vector<1x128xf32>
    %1635 = arith.index_cast %c14_i32 : i32 to index
    %c0_642 = arith.constant 0 : index
    %1636 = vector.load %arg4[%1635, %c0_642] : memref<16x128xf32, #tpu.memory_space<vmem>>, vector<1x128xf32>
    tpu.vector_store %arg4[%1635, %c0_642], %1634 {strides = array<i32>} : memref<16x128xf32, #tpu.memory_space<vmem>>, vector<1x128xf32>,
    %c15_i32 = arith.constant 15 : i32
    %c8_i32_643 = arith.constant 8 : i32
    %1637 = arith.muli %c15_i32, %c8_i32_643 : i32
    %1638 = arith.addi %1, %1637 : i32
    %cst_644 = arith.constant 0.000000e+00 : f32
    %1639 = vector.broadcast %cst_644 : f32 to vector<1x128xf32>
    %c0_i32_645 = arith.constant 0 : i32
    %1640 = arith.addi %1638, %c0_i32_645 : i32
    %1641 = arith.index_cast %1640 : i32 to index
    %1642 = memref.load %arg1[%1641] : memref<128xi32, #tpu.memory_space<smem>>
    %c0_i32_646 = arith.constant 0 : i32
    %c31_i32_647 = arith.constant 31 : i32
    %1643 = arith.maxsi %c0_i32_646, %1642 : i32
    %1644 = arith.minsi %c31_i32_647, %1643 : i32
    %c0_i32_648 = arith.constant 0 : i32
    %1645 = arith.addi %1638, %c0_i32_648 : i32
    %1646 = arith.index_cast %1645 : i32 to index
    %1647 = memref.load %arg2[%1646] : memref<128xf32, #tpu.memory_space<smem>>
    %1648 = arith.index_cast %1644 : i32 to index
    %c0_649 = arith.constant 0 : index
    %1649 = vector.load %arg3[%1648, %c0_649] : memref<32x128xf32, #tpu.memory_space<vmem>>, vector<1x128xf32>
    %1650 = vector.broadcast %1647 : f32 to vector<1x128xf32>
    %1651 = arith.mulf %1650, %1649 : vector<1x128xf32>
    %1652 = arith.addf %1639, %1651 : vector<1x128xf32>
    %c1_i32_650 = arith.constant 1 : i32
    %1653 = arith.addi %1638, %c1_i32_650 : i32
    %1654 = arith.index_cast %1653 : i32 to index
    %1655 = memref.load %arg1[%1654] : memref<128xi32, #tpu.memory_space<smem>>
    %c0_i32_651 = arith.constant 0 : i32
    %c31_i32_652 = arith.constant 31 : i32
    %1656 = arith.maxsi %c0_i32_651, %1655 : i32
    %1657 = arith.minsi %c31_i32_652, %1656 : i32
    %c1_i32_653 = arith.constant 1 : i32
    %1658 = arith.addi %1638, %c1_i32_653 : i32
    %1659 = arith.index_cast %1658 : i32 to index
    %1660 = memref.load %arg2[%1659] : memref<128xf32, #tpu.memory_space<smem>>
    %1661 = arith.index_cast %1657 : i32 to index
    %c0_654 = arith.constant 0 : index
    %1662 = vector.load %arg3[%1661, %c0_654] : memref<32x128xf32, #tpu.memory_space<vmem>>, vector<1x128xf32>
    %1663 = vector.broadcast %1660 : f32 to vector<1x128xf32>
    %1664 = arith.mulf %1663, %1662 : vector<1x128xf32>
    %1665 = arith.addf %1652, %1664 : vector<1x128xf32>
    %c2_i32_655 = arith.constant 2 : i32
    %1666 = arith.addi %1638, %c2_i32_655 : i32
    %1667 = arith.index_cast %1666 : i32 to index
    %1668 = memref.load %arg1[%1667] : memref<128xi32, #tpu.memory_space<smem>>
    %c0_i32_656 = arith.constant 0 : i32
    %c31_i32_657 = arith.constant 31 : i32
    %1669 = arith.maxsi %c0_i32_656, %1668 : i32
    %1670 = arith.minsi %c31_i32_657, %1669 : i32
    %c2_i32_658 = arith.constant 2 : i32
    %1671 = arith.addi %1638, %c2_i32_658 : i32
    %1672 = arith.index_cast %1671 : i32 to index
    %1673 = memref.load %arg2[%1672] : memref<128xf32, #tpu.memory_space<smem>>
    %1674 = arith.index_cast %1670 : i32 to index
    %c0_659 = arith.constant 0 : index
    %1675 = vector.load %arg3[%1674, %c0_659] : memref<32x128xf32, #tpu.memory_space<vmem>>, vector<1x128xf32>
    %1676 = vector.broadcast %1673 : f32 to vector<1x128xf32>
    %1677 = arith.mulf %1676, %1675 : vector<1x128xf32>
    %1678 = arith.addf %1665, %1677 : vector<1x128xf32>
    %c3_i32_660 = arith.constant 3 : i32
    %1679 = arith.addi %1638, %c3_i32_660 : i32
    %1680 = arith.index_cast %1679 : i32 to index
    %1681 = memref.load %arg1[%1680] : memref<128xi32, #tpu.memory_space<smem>>
    %c0_i32_661 = arith.constant 0 : i32
    %c31_i32_662 = arith.constant 31 : i32
    %1682 = arith.maxsi %c0_i32_661, %1681 : i32
    %1683 = arith.minsi %c31_i32_662, %1682 : i32
    %c3_i32_663 = arith.constant 3 : i32
    %1684 = arith.addi %1638, %c3_i32_663 : i32
    %1685 = arith.index_cast %1684 : i32 to index
    %1686 = memref.load %arg2[%1685] : memref<128xf32, #tpu.memory_space<smem>>
    %1687 = arith.index_cast %1683 : i32 to index
    %c0_664 = arith.constant 0 : index
    %1688 = vector.load %arg3[%1687, %c0_664] : memref<32x128xf32, #tpu.memory_space<vmem>>, vector<1x128xf32>
    %1689 = vector.broadcast %1686 : f32 to vector<1x128xf32>
    %1690 = arith.mulf %1689, %1688 : vector<1x128xf32>
    %1691 = arith.addf %1678, %1690 : vector<1x128xf32>
    %c4_i32_665 = arith.constant 4 : i32
    %1692 = arith.addi %1638, %c4_i32_665 : i32
    %1693 = arith.index_cast %1692 : i32 to index
    %1694 = memref.load %arg1[%1693] : memref<128xi32, #tpu.memory_space<smem>>
    %c0_i32_666 = arith.constant 0 : i32
    %c31_i32_667 = arith.constant 31 : i32
    %1695 = arith.maxsi %c0_i32_666, %1694 : i32
    %1696 = arith.minsi %c31_i32_667, %1695 : i32
    %c4_i32_668 = arith.constant 4 : i32
    %1697 = arith.addi %1638, %c4_i32_668 : i32
    %1698 = arith.index_cast %1697 : i32 to index
    %1699 = memref.load %arg2[%1698] : memref<128xf32, #tpu.memory_space<smem>>
    %1700 = arith.index_cast %1696 : i32 to index
    %c0_669 = arith.constant 0 : index
    %1701 = vector.load %arg3[%1700, %c0_669] : memref<32x128xf32, #tpu.memory_space<vmem>>, vector<1x128xf32>
    %1702 = vector.broadcast %1699 : f32 to vector<1x128xf32>
    %1703 = arith.mulf %1702, %1701 : vector<1x128xf32>
    %1704 = arith.addf %1691, %1703 : vector<1x128xf32>
    %c5_i32_670 = arith.constant 5 : i32
    %1705 = arith.addi %1638, %c5_i32_670 : i32
    %1706 = arith.index_cast %1705 : i32 to index
    %1707 = memref.load %arg1[%1706] : memref<128xi32, #tpu.memory_space<smem>>
    %c0_i32_671 = arith.constant 0 : i32
    %c31_i32_672 = arith.constant 31 : i32
    %1708 = arith.maxsi %c0_i32_671, %1707 : i32
    %1709 = arith.minsi %c31_i32_672, %1708 : i32
    %c5_i32_673 = arith.constant 5 : i32
    %1710 = arith.addi %1638, %c5_i32_673 : i32
    %1711 = arith.index_cast %1710 : i32 to index
    %1712 = memref.load %arg2[%1711] : memref<128xf32, #tpu.memory_space<smem>>
    %1713 = arith.index_cast %1709 : i32 to index
    %c0_674 = arith.constant 0 : index
    %1714 = vector.load %arg3[%1713, %c0_674] : memref<32x128xf32, #tpu.memory_space<vmem>>, vector<1x128xf32>
    %1715 = vector.broadcast %1712 : f32 to vector<1x128xf32>
    %1716 = arith.mulf %1715, %1714 : vector<1x128xf32>
    %1717 = arith.addf %1704, %1716 : vector<1x128xf32>
    %c6_i32_675 = arith.constant 6 : i32
    %1718 = arith.addi %1638, %c6_i32_675 : i32
    %1719 = arith.index_cast %1718 : i32 to index
    %1720 = memref.load %arg1[%1719] : memref<128xi32, #tpu.memory_space<smem>>
    %c0_i32_676 = arith.constant 0 : i32
    %c31_i32_677 = arith.constant 31 : i32
    %1721 = arith.maxsi %c0_i32_676, %1720 : i32
    %1722 = arith.minsi %c31_i32_677, %1721 : i32
    %c6_i32_678 = arith.constant 6 : i32
    %1723 = arith.addi %1638, %c6_i32_678 : i32
    %1724 = arith.index_cast %1723 : i32 to index
    %1725 = memref.load %arg2[%1724] : memref<128xf32, #tpu.memory_space<smem>>
    %1726 = arith.index_cast %1722 : i32 to index
    %c0_679 = arith.constant 0 : index
    %1727 = vector.load %arg3[%1726, %c0_679] : memref<32x128xf32, #tpu.memory_space<vmem>>, vector<1x128xf32>
    %1728 = vector.broadcast %1725 : f32 to vector<1x128xf32>
    %1729 = arith.mulf %1728, %1727 : vector<1x128xf32>
    %1730 = arith.addf %1717, %1729 : vector<1x128xf32>
    %c7_i32_680 = arith.constant 7 : i32
    %1731 = arith.addi %1638, %c7_i32_680 : i32
    %1732 = arith.index_cast %1731 : i32 to index
    %1733 = memref.load %arg1[%1732] : memref<128xi32, #tpu.memory_space<smem>>
    %c0_i32_681 = arith.constant 0 : i32
    %c31_i32_682 = arith.constant 31 : i32
    %1734 = arith.maxsi %c0_i32_681, %1733 : i32
    %1735 = arith.minsi %c31_i32_682, %1734 : i32
    %c7_i32_683 = arith.constant 7 : i32
    %1736 = arith.addi %1638, %c7_i32_683 : i32
    %1737 = arith.index_cast %1736 : i32 to index
    %1738 = memref.load %arg2[%1737] : memref<128xf32, #tpu.memory_space<smem>>
    %1739 = arith.index_cast %1735 : i32 to index
    %c0_684 = arith.constant 0 : index
    %1740 = vector.load %arg3[%1739, %c0_684] : memref<32x128xf32, #tpu.memory_space<vmem>>, vector<1x128xf32>
    %1741 = vector.broadcast %1738 : f32 to vector<1x128xf32>
    %1742 = arith.mulf %1741, %1740 : vector<1x128xf32>
    %1743 = arith.addf %1730, %1742 : vector<1x128xf32>
    %1744 = arith.index_cast %c15_i32 : i32 to index
    %c0_685 = arith.constant 0 : index
    %1745 = vector.load %arg4[%1744, %c0_685] : memref<16x128xf32, #tpu.memory_space<vmem>>, vector<1x128xf32>
    tpu.vector_store %arg4[%1744, %c0_685], %1743 {strides = array<i32>} : memref<16x128xf32, #tpu.memory_space<vmem>>, vector<1x128xf32>,
    %c16_i32_686 = arith.constant 16 : i32
    return
  }
  func.func @transform_0(%arg0: i32) -> i32 {
    %c0_i32 = arith.constant 0 : i32
    %c0_i32_0 = arith.constant 0 : i32
    return %c0_i32 : i32
  }
  func.func @transform_1(%arg0: i32) -> i32 {
    %c0_i32 = arith.constant 0 : i32
    %c0_i32_0 = arith.constant 0 : i32
    return %c0_i32 : i32
  }
  func.func @transform_2(%arg0: i32) -> (i32, i32) {
    %c0_i32 = arith.constant 0 : i32
    %c0_i32_0 = arith.constant 0 : i32
    %c0_i32_1 = arith.constant 0 : i32
    return %c0_i32, %c0_i32_0 : i32, i32
  }
  func.func @transform_3(%arg0: i32) -> (i32, i32) {
    %c0_i32 = arith.constant 0 : i32
    %c0_i32_0 = arith.constant 0 : i32
    return %arg0, %c0_i32 : i32, i32
  }
}

</mosaic_0001>

<llo_original>
// kernel: tpu_custom_call.1
$region0: #{tpu_custom_call.1}
  #allocation0 [shape = 'u32[]', space=smem, size = 0x4, offset = 0x4, fixed_abs, tag = 'smem constant byte address 0x4 - core index']
  #allocation1 [shape = 'u32[144,128]{1,0:T(1,128)}', space=vmem, size = 0x12000, scoped, tag = 'internal scratch']
  %s0 = inlined_call_operand.hbm [shape: s32[128], index: 0, kind: input, shape index: {}]
  %s1 = inlined_call_operand.vmem [shape: f32[128], index: 1, kind: input, shape index: {}]
  %s2 = inlined_call_operand.hbm [shape: f32[32,128], index: 2, kind: input, shape index: {}]
  %s3 = inlined_call_operand.hbm [shape: f32[16,128], index: 3, kind: output, shape index: {}]
  %s4 = sld [smem:[#allocation0]]
  $region34: #{tpu_custom_call.1} parent=0
    _
  %s6 = ssub.s32 1, %s4
  %s7 = scalar_select 0, %s6, %s4
  $region1: #{tpu_custom_call.1} parent=0
    #allocation2 [shape = 'u8[512]{0}', space=smem, size = 0x200, scoped, tag = 'input window, operand 0, single buffered']
    #allocation3 [shape = 's32[1]{0}', space=sflag, size = 0x4, scoped, tag = 'scoped memory for tpu_custom_call.1']
    #allocation4 [shape = 's32[1]{0}', space=sflag, size = 0x4, scoped, tag = 'scoped memory for tpu_custom_call.1']
    #allocation5 [shape = 's32[1]{0}', space=sflag, size = 0x4, scoped, tag = 'scoped memory for tpu_custom_call.1']
    #allocation6 [shape = 's32[1]{0}', space=sflag, size = 0x4, scoped, tag = 'scoped memory for tpu_custom_call.1']
    #allocation7 [shape = 'u8[512]{0}', space=smem, size = 0x200, scoped, tag = 'input window, operand 1, single buffered']
    #allocation8 [shape = 'u8[16384]{0}', space=vmem, size = 0x4000, scoped, tag = 'input window, operand 2, single buffered']
    #allocation9 [shape = 'u8[8192]{0}', space=vmem, size = 0x2000, scoped, tag = 'output window, operand 0, single buffered']
    %8 = vsyncpa [#allocation5], 0
    %9 = vsyncpa [#allocation6], 0
    %10 = vsyncpa [#allocation3], 0
    %11 = vsyncpa [#allocation4], 0
    // Predicated region
    $region2: #{tpu_custom_call.1} parent=1 // pred_check
      _
    $region3: #{tpu_custom_call.1} parent=1 // pred_check_branch
      %13 = sbr.rel (0) target = $region5
    $region4: #{tpu_custom_call.1} parent=1 // pred_region
      %s15 = ssub.s32 16, 16
      %16 = vsyncadd [#allocation5], %s15
      %19 = dma.hbm_to_smem %s0, 16, [#allocation2], [#allocation5]
    $region5: #{tpu_custom_call.1} parent=1 // pred_fallthru
      _
    // Predicated region
    $region6: #{tpu_custom_call.1} parent=1 // pred_check
      _
    $region7: #{tpu_custom_call.1} parent=1 // pred_check_branch
      %21 = sbr.rel (0) target = $region9
    $region8: #{tpu_custom_call.1} parent=1 // pred_region
      %s23 = ssub.s32 16, 16
      %24 = vsyncadd [#allocation6], %s23
      %s26 = sshll.u32 %s1, 4
      %s27 = int_to_ptr.vmem [resolvable:$true] %s26
      %29 = dma.vmem_to_smem %s27, 16, [#allocation7], [#allocation6]
    $region9: #{tpu_custom_call.1} parent=1 // pred_fallthru
      _
    // Predicated region
    $region10: #{tpu_custom_call.1} parent=1 // pred_check
      _
    $region11: #{tpu_custom_call.1} parent=1 // pred_check_branch
      %31 = sbr.rel (0) target = $region13
    $region12: #{tpu_custom_call.1} parent=1 // pred_region
      %s33 = ssub.s32 512, 512
      %34 = vsyncadd [#allocation3], %s33
      %s35 = sshll.u32 [#allocation8], 4
      %s36 = int_to_ptr.vmem [resolvable:$true] %s35
      %41 = dma.hbm_to_vmem [thread:$0]  %s2, 512, %s36, [#allocation3], 128, 128, 8
    $region13: #{tpu_custom_call.1} parent=1 // pred_fallthru
      _
    // Predicated region
    $region14: #{tpu_custom_call.1} parent=1 // pred_check
      _
    $region15: #{tpu_custom_call.1} parent=1 // pred_check_branch
      %43 = sbr.rel (0) target = $region17
    $region16: #{tpu_custom_call.1} parent=1 // pred_region
      %44 = dma.done [#allocation5], 16
    $region17: #{tpu_custom_call.1} parent=1 // pred_fallthru
      _
    // Predicated region
    $region18: #{tpu_custom_call.1} parent=1 // pred_check
      _
    $region19: #{tpu_custom_call.1} parent=1 // pred_check_branch
      %46 = sbr.rel (0) target = $region21
    $region20: #{tpu_custom_call.1} parent=1 // pred_region
      %47 = dma.done [#allocation6], 16
    $region21: #{tpu_custom_call.1} parent=1 // pred_fallthru
      _
    // Predicated region
    $region22: #{tpu_custom_call.1} parent=1 // pred_check
      _
    $region23: #{tpu_custom_call.1} parent=1 // pred_check_branch
      %49 = sbr.rel (0) target = $region25
    $region24: #{tpu_custom_call.1} parent=1 // pred_region
      %50 = dma.done [#allocation3], 512
    $region25: #{tpu_custom_call.1} parent=1 // pred_fallthru
      _
    %51 = sfence
    %s52 = smul.u32 0, 128
    %s53 = sld [smem:[#allocation2 + %s52]]
    %p54 = scmp.gt.s32.totalorder %s53, 0
    %s55 = scalar_select %p54, %s53, 0
    %p56 = scmp.lt.s32.totalorder %s55, 31
    %s57 = scalar_select %p56, %s55, 31
    %s58 = sld [smem:[#allocation7 + %s52]]
    %s59 = scalar_lea.vmem [#allocation8], %s57
    %v60 = vld [vmem:[%s59] sm:$0x1]
    %v61 = vstv %s58
    %v62 = vmul.f32 %v61, %v60
    %v63 = vadd.f32 %v62, 0.0
    %s64 = sadd.s32 %s52, 1
    %s65 = sld [smem:[#allocation2 + %s64]]
    %p66 = scmp.gt.s32.totalorder %s65, 0
    %s67 = scalar_select %p66, %s65, 0
    %p68 = scmp.lt.s32.totalorder %s67, 31
    %s69 = scalar_select %p68, %s67, 31
    %s70 = sld [smem:[#allocation7 + %s64]]
    %s71 = scalar_lea.vmem [#allocation8], %s69
    %v72 = vld [vmem:[%s71] sm:$0x1]
    %v73 = vstv %s70
    %v74 = vmul.f32 %v73, %v72
    %v75 = vadd.f32 %v63, %v74
    %s76 = sadd.s32 %s52, 2
    %s77 = sld [smem:[#allocation2 + %s76]]
    %p78 = scmp.gt.s32.totalorder %s77, 0
    %s79 = scalar_select %p78, %s77, 0
    %p80 = scmp.lt.s32.totalorder %s79, 31
    %s81 = scalar_select %p80, %s79, 31
    %s82 = sld [smem:[#allocation7 + %s76]]
    %s83 = scalar_lea.vmem [#allocation8], %s81
    %v84 = vld [vmem:[%s83] sm:$0x1]
    %v85 = vstv %s82
    %v86 = vmul.f32 %v85, %v84
    %v87 = vadd.f32 %v75, %v86
    %s88 = sadd.s32 %s52, 3
    %s89 = sld [smem:[#allocation2 + %s88]]
    %p90 = scmp.gt.s32.totalorder %s89, 0
    %s91 = scalar_select %p90, %s89, 0
    %p92 = scmp.lt.s32.totalorder %s91, 31
    %s93 = scalar_select %p92, %s91, 31
    %s94 = sld [smem:[#allocation7 + %s88]]
    %s95 = scalar_lea.vmem [#allocation8], %s93
    %v96 = vld [vmem:[%s95] sm:$0x1]
    %v97 = vstv %s94
    %v98 = vmul.f32 %v97, %v96
    %v99 = vadd.f32 %v87, %v98
    %s100 = sadd.s32 %s52, 4
    %s101 = sld [smem:[#allocation2 + %s100]]
    %p102 = scmp.gt.s32.totalorder %s101, 0
    %s103 = scalar_select %p102, %s101, 0
    %p104 = scmp.lt.s32.totalorder %s103, 31
    %s105 = scalar_select %p104, %s103, 31
    %s106 = sld [smem:[#allocation7 + %s100]]
    %s107 = scalar_lea.vmem [#allocation8], %s105
    %v108 = vld [vmem:[%s107] sm:$0x1]
    %v109 = vstv %s106
    %v110 = vmul.f32 %v109, %v108
    %v111 = vadd.f32 %v99, %v110
    %s112 = sadd.s32 %s52, 5
    %s113 = sld [smem:[#allocation2 + %s112]]
    %p114 = scmp.gt.s32.totalorder %s113, 0
    %s115 = scalar_select %p114, %s113, 0
    %p116 = scmp.lt.s32.totalorder %s115, 31
    %s117 = scalar_select %p116, %s115, 31
    %s118 = sld [smem:[#allocation7 + %s112]]
    %s119 = scalar_lea.vmem [#allocation8], %s117
    %v120 = vld [vmem:[%s119] sm:$0x1]
    %v121 = vstv %s118
    %v122 = vmul.f32 %v121, %v120
    %v123 = vadd.f32 %v111, %v122
    %s124 = sadd.s32 %s52, 6
    %s125 = sld [smem:[#allocation2 + %s124]]
    %p126 = scmp.gt.s32.totalorder %s125, 0
    %s127 = scalar_select %p126, %s125, 0
    %p128 = scmp.lt.s32.totalorder %s127, 31
    %s129 = scalar_select %p128, %s127, 31
    %s130 = sld [smem:[#allocation7 + %s124]]
    %s131 = scalar_lea.vmem [#allocation8], %s129
    %v132 = vld [vmem:[%s131] sm:$0x1]
    %v133 = vstv %s130
    %v134 = vmul.f32 %v133, %v132
    %v135 = vadd.f32 %v123, %v134
    %s136 = sadd.s32 %s52, 7
    %s137 = sld [smem:[#allocation2 + %s136]]
    %p138 = scmp.gt.s32.totalorder %s137, 0
    %s139 = scalar_select %p138, %s137, 0
    %p140 = scmp.lt.s32.totalorder %s139, 31
    %s141 = scalar_select %p140, %s139, 31
    %s142 = sld [smem:[#allocation7 + %s136]]
    %s143 = scalar_lea.vmem [#allocation8], %s141
    %v144 = vld [vmem:[%s143] sm:$0x1]
    %v145 = vstv %s142
    %v146 = vmul.f32 %v145, %v144
    %v147 = vadd.f32 %v135, %v146
    %148 = vst [vmem:[#allocation9] sm:$0x1] %v147
    %s149 = sadd.s32 %s52, 8
    %s150 = sld [smem:[#allocation2 + %s149]]
    %p151 = scmp.gt.s32.totalorder %s150, 0
    %s152 = scalar_select %p151, %s150, 0
    %p153 = scmp.lt.s32.totalorder %s152, 31
    %s154 = scalar_select %p153, %s152, 31
    %s155 = sld [smem:[#allocation7 + %s149]]
    %s156 = scalar_lea.vmem [#allocation8], %s154
    %v157 = vld [vmem:[%s156] sm:$0x1]
    %v158 = vstv %s155
    %v159 = vmul.f32 %v158, %v157
    %v160 = vadd.f32 %v159, 0.0
    %s161 = sadd.s32 %s52, 9
    %s162 = sld [smem:[#allocation2 + %s161]]
    %p163 = scmp.gt.s32.totalorder %s162, 0
    %s164 = scalar_select %p163, %s162, 0
    %p165 = scmp.lt.s32.totalorder %s164, 31
    %s166 = scalar_select %p165, %s164, 31
    %s167 = sld [smem:[#allocation7 + %s161]]
    %s168 = scalar_lea.vmem [#allocation8], %s166
    %v169 = vld [vmem:[%s168] sm:$0x1]
    %v170 = vstv %s167
    %v171 = vmul.f32 %v170, %v169
    %v172 = vadd.f32 %v160, %v171
    %s173 = sadd.s32 %s52, 10
    %s174 = sld [smem:[#allocation2 + %s173]]
    %p175 = scmp.gt.s32.totalorder %s174, 0
    %s176 = scalar_select %p175, %s174, 0
    %p177 = scmp.lt.s32.totalorder %s176, 31
    %s178 = scalar_select %p177, %s176, 31
    %s179 = sld [smem:[#allocation7 + %s173]]
    %s180 = scalar_lea.vmem [#allocation8], %s178
    %v181 = vld [vmem:[%s180] sm:$0x1]
    %v182 = vstv %s179
    %v183 = vmul.f32 %v182, %v181
    %v184 = vadd.f32 %v172, %v183
    %s185 = sadd.s32 %s52, 11
    %s186 = sld [smem:[#allocation2 + %s185]]
    %p187 = scmp.gt.s32.totalorder %s186, 0
    %s188 = scalar_select %p187, %s186, 0
    %p189 = scmp.lt.s32.totalorder %s188, 31
    %s190 = scalar_select %p189, %s188, 31
    %s191 = sld [smem:[#allocation7 + %s185]]
    %s192 = scalar_lea.vmem [#allocation8], %s190
    %v193 = vld [vmem:[%s192] sm:$0x1]
    %v194 = vstv %s191
    %v195 = vmul.f32 %v194, %v193
    %v196 = vadd.f32 %v184, %v195
    %s197 = sadd.s32 %s52, 12
    %s198 = sld [smem:[#allocation2 + %s197]]
    %p199 = scmp.gt.s32.totalorder %s198, 0
    %s200 = scalar_select %p199, %s198, 0
    %p201 = scmp.lt.s32.totalorder %s200, 31
    %s202 = scalar_select %p201, %s200, 31
    %s203 = sld [smem:[#allocation7 + %s197]]
    %s204 = scalar_lea.vmem [#allocation8], %s202
    %v205 = vld [vmem:[%s204] sm:$0x1]
    %v206 = vstv %s203
    %v207 = vmul.f32 %v206, %v205
    %v208 = vadd.f32 %v196, %v207
    %s209 = sadd.s32 %s52, 13
    %s210 = sld [smem:[#allocation2 + %s209]]
    %p211 = scmp.gt.s32.totalorder %s210, 0
    %s212 = scalar_select %p211, %s210, 0
    %p213 = scmp.lt.s32.totalorder %s212, 31
    %s214 = scalar_select %p213, %s212, 31
    %s215 = sld [smem:[#allocation7 + %s209]]
    %s216 = scalar_lea.vmem [#allocation8], %s214
    %v217 = vld [vmem:[%s216] sm:$0x1]
    %v218 = vstv %s215
    %v219 = vmul.f32 %v218, %v217
    %v220 = vadd.f32 %v208, %v219
    %s221 = sadd.s32 %s52, 14
    %s222 = sld [smem:[#allocation2 + %s221]]
    %p223 = scmp.gt.s32.totalorder %s222, 0
    %s224 = scalar_select %p223, %s222, 0
    %p225 = scmp.lt.s32.totalorder %s224, 31
    %s226 = scalar_select %p225, %s224, 31
    %s227 = sld [smem:[#allocation7 + %s221]]
    %s228 = scalar_lea.vmem [#allocation8], %s226
    %v229 = vld [vmem:[%s228] sm:$0x1]
    %v230 = vstv %s227
    %v231 = vmul.f32 %v230, %v229
    %v232 = vadd.f32 %v220, %v231
    %s233 = sadd.s32 %s52, 15
    %s234 = sld [smem:[#allocation2 + %s233]]
    %p235 = scmp.gt.s32.totalorder %s234, 0
    %s236 = scalar_select %p235, %s234, 0
    %p237 = scmp.lt.s32.totalorder %s236, 31
    %s238 = scalar_select %p237, %s236, 31
    %s239 = sld [smem:[#allocation7 + %s233]]
    %s240 = scalar_lea.vmem [#allocation8], %s238
    %v241 = vld [vmem:[%s240] sm:$0x1]
    %v242 = vstv %s239
    %v243 = vmul.f32 %v242, %v241
    %v244 = vadd.f32 %v232, %v243
    %245 = vst [vmem:[#allocation9 + $0x1] sm:$0x1] %v244
    %s246 = sadd.s32 %s52, 16
    %s247 = sld [smem:[#allocation2 + %s246]]
    %p248 = scmp.gt.s32.totalorder %s247, 0
    %s249 = scalar_select %p248, %s247, 0
    %p250 = scmp.lt.s32.totalorder %s249, 31
    %s251 = scalar_select %p250, %s249, 31
    %s252 = sld [smem:[#allocation7 + %s246]]
    %s253 = scalar_lea.vmem [#allocation8], %s251
    %v254 = vld [vmem:[%s253] sm:$0x1]
    %v255 = vstv %s252
    %v256 = vmul.f32 %v255, %v254
    %v257 = vadd.f32 %v256, 0.0
    %s258 = sadd.s32 %s52, 17
    %s259 = sld [smem:[#allocation2 + %s258]]
    %p260 = scmp.gt.s32.totalorder %s259, 0
    %s261 = scalar_select %p260, %s259, 0
    %p262 = scmp.lt.s32.totalorder %s261, 31
    %s263 = scalar_select %p262, %s261, 31
    %s264 = sld [smem:[#allocation7 + %s258]]
    %s265 = scalar_lea.vmem [#allocation8], %s263
    %v266 = vld [vmem:[%s265] sm:$0x1]
    %v267 = vstv %s264
    %v268 = vmul.f32 %v267, %v266
    %v269 = vadd.f32 %v257, %v268
    %s270 = sadd.s32 %s52, 18
    %s271 = sld [smem:[#allocation2 + %s270]]
    %p272 = scmp.gt.s32.totalorder %s271, 0
    %s273 = scalar_select %p272, %s271, 0
    %p274 = scmp.lt.s32.totalorder %s273, 31
    %s275 = scalar_select %p274, %s273, 31
    %s276 = sld [smem:[#allocation7 + %s270]]
    %s277 = scalar_lea.vmem [#allocation8], %s275
    %v278 = vld [vmem:[%s277] sm:$0x1]
    %v279 = vstv %s276
    %v280 = vmul.f32 %v279, %v278
    %v281 = vadd.f32 %v269, %v280
    %s282 = sadd.s32 %s52, 19
    %s283 = sld [smem:[#allocation2 + %s282]]
    %p284 = scmp.gt.s32.totalorder %s283, 0
    %s285 = scalar_select %p284, %s283, 0
    %p286 = scmp.lt.s32.totalorder %s285, 31
    %s287 = scalar_select %p286, %s285, 31
    %s288 = sld [smem:[#allocation7 + %s282]]
    %s289 = scalar_lea.vmem [#allocation8], %s287
    %v290 = vld [vmem:[%s289] sm:$0x1]
    %v291 = vstv %s288
    %v292 = vmul.f32 %v291, %v290
    %v293 = vadd.f32 %v281, %v292
    %s294 = sadd.s32 %s52, 20
    %s295 = sld [smem:[#allocation2 + %s294]]
    %p296 = scmp.gt.s32.totalorder %s295, 0
    %s297 = scalar_select %p296, %s295, 0
    %p298 = scmp.lt.s32.totalorder %s297, 31
    %s299 = scalar_select %p298, %s297, 31
    %s300 = sld [smem:[#allocation7 + %s294]]
    %s301 = scalar_lea.vmem [#allocation8], %s299
    %v302 = vld [vmem:[%s301] sm:$0x1]
    %v303 = vstv %s300
    %v304 = vmul.f32 %v303, %v302
    %v305 = vadd.f32 %v293, %v304
    %s306 = sadd.s32 %s52, 21
    %s307 = sld [smem:[#allocation2 + %s306]]
    %p308 = scmp.gt.s32.totalorder %s307, 0
    %s309 = scalar_select %p308, %s307, 0
    %p310 = scmp.lt.s32.totalorder %s309, 31
    %s311 = scalar_select %p310, %s309, 31
    %s312 = sld [smem:[#allocation7 + %s306]]
    %s313 = scalar_lea.vmem [#allocation8], %s311
    %v314 = vld [vmem:[%s313] sm:$0x1]
    %v315 = vstv %s312
    %v316 = vmul.f32 %v315, %v314
    %v317 = vadd.f32 %v305, %v316
    %s318 = sadd.s32 %s52, 22
    %s319 = sld [smem:[#allocation2 + %s318]]
    %p320 = scmp.gt.s32.totalorder %s319, 0
    %s321 = scalar_select %p320, %s319, 0
    %p322 = scmp.lt.s32.totalorder %s321, 31
    %s323 = scalar_select %p322, %s321, 31
    %s324 = sld [smem:[#allocation7 + %s318]]
    %s325 = scalar_lea.vmem [#allocation8], %s323
    %v326 = vld [vmem:[%s325] sm:$0x1]
    %v327 = vstv %s324
    %v328 = vmul.f32 %v327, %v326
    %v329 = vadd.f32 %v317, %v328
    %s330 = sadd.s32 %s52, 23
    %s331 = sld [smem:[#allocation2 + %s330]]
    %p332 = scmp.gt.s32.totalorder %s331, 0
    %s333 = scalar_select %p332, %s331, 0
    %p334 = scmp.lt.s32.totalorder %s333, 31
    %s335 = scalar_select %p334, %s333, 31
    %s336 = sld [smem:[#allocation7 + %s330]]
    %s337 = scalar_lea.vmem [#allocation8], %s335
    %v338 = vld [vmem:[%s337] sm:$0x1]
    %v339 = vstv %s336
    %v340 = vmul.f32 %v339, %v338
    %v341 = vadd.f32 %v329, %v340
    %342 = vst [vmem:[#allocation9 + $0x2] sm:$0x1] %v341
    %s343 = sadd.s32 %s52, 24
    %s344 = sld [smem:[#allocation2 + %s343]]
    %p345 = scmp.gt.s32.totalorder %s344, 0
    %s346 = scalar_select %p345, %s344, 0
    %p347 = scmp.lt.s32.totalorder %s346, 31
    %s348 = scalar_select %p347, %s346, 31
    %s349 = sld [smem:[#allocation7 + %s343]]
    %s350 = scalar_lea.vmem [#allocation8], %s348
    %v351 = vld [vmem:[%s350] sm:$0x1]
    %v352 = vstv %s349
    %v353 = vmul.f32 %v352, %v351
    %v354 = vadd.f32 %v353, 0.0
    %s355 = sadd.s32 %s52, 25
    %s356 = sld [smem:[#allocation2 + %s355]]
    %p357 = scmp.gt.s32.totalorder %s356, 0
    %s358 = scalar_select %p357, %s356, 0
    %p359 = scmp.lt.s32.totalorder %s358, 31
    %s360 = scalar_select %p359, %s358, 31
    %s361 = sld [smem:[#allocation7 + %s355]]
    %s362 = scalar_lea.vmem [#allocation8], %s360
    %v363 = vld [vmem:[%s362] sm:$0x1]
    %v364 = vstv %s361
    %v365 = vmul.f32 %v364, %v363
    %v366 = vadd.f32 %v354, %v365
    %s367 = sadd.s32 %s52, 26
    %s368 = sld [smem:[#allocation2 + %s367]]
    %p369 = scmp.gt.s32.totalorder %s368, 0
    %s370 = scalar_select %p369, %s368, 0
    %p371 = scmp.lt.s32.totalorder %s370, 31
    %s372 = scalar_select %p371, %s370, 31
    %s373 = sld [smem:[#allocation7 + %s367]]
    %s374 = scalar_lea.vmem [#allocation8], %s372
    %v375 = vld [vmem:[%s374] sm:$0x1]
    %v376 = vstv %s373
    %v377 = vmul.f32 %v376, %v375
    %v378 = vadd.f32 %v366, %v377
    %s379 = sadd.s32 %s52, 27
    %s380 = sld [smem:[#allocation2 + %s379]]
    %p381 = scmp.gt.s32.totalorder %s380, 0
    %s382 = scalar_select %p381, %s380, 0
    %p383 = scmp.lt.s32.totalorder %s382, 31
    %s384 = scalar_select %p383, %s382, 31
    %s385 = sld [smem:[#allocation7 + %s379]]
    %s386 = scalar_lea.vmem [#allocation8], %s384
    %v387 = vld [vmem:[%s386] sm:$0x1]
    %v388 = vstv %s385
    %v389 = vmul.f32 %v388, %v387
    %v390 = vadd.f32 %v378, %v389
    %s391 = sadd.s32 %s52, 28
    %s392 = sld [smem:[#allocation2 + %s391]]
    %p393 = scmp.gt.s32.totalorder %s392, 0
    %s394 = scalar_select %p393, %s392, 0
    %p395 = scmp.lt.s32.totalorder %s394, 31
    %s396 = scalar_select %p395, %s394, 31
    %s397 = sld [smem:[#allocation7 + %s391]]
    %s398 = scalar_lea.vmem [#allocation8], %s396
    %v399 = vld [vmem:[%s398] sm:$0x1]
    %v400 = vstv %s397
    %v401 = vmul.f32 %v400, %v399
    %v402 = vadd.f32 %v390, %v401
    %s403 = sadd.s32 %s52, 29
    %s404 = sld [smem:[#allocation2 + %s403]]
    %p405 = scmp.gt.s32.totalorder %s404, 0
    %s406 = scalar_select %p405, %s404, 0
    %p407 = scmp.lt.s32.totalorder %s406, 31
    %s408 = scalar_select %p407, %s406, 31
    %s409 = sld [smem:[#allocation7 + %s403]]
    %s410 = scalar_lea.vmem [#allocation8], %s408
    %v411 = vld [vmem:[%s410] sm:$0x1]
    %v412 = vstv %s409
    %v413 = vmul.f32 %v412, %v411
    %v414 = vadd.f32 %v402, %v413
    %s415 = sadd.s32 %s52, 30
    %s416 = sld [smem:[#allocation2 + %s415]]
    %p417 = scmp.gt.s32.totalorder %s416, 0
    %s418 = scalar_select %p417, %s416, 0
    %p419 = scmp.lt.s32.totalorder %s418, 31
    %s420 = scalar_select %p419, %s418, 31
    %s421 = sld [smem:[#allocation7 + %s415]]
    %s422 = scalar_lea.vmem [#allocation8], %s420
    %v423 = vld [vmem:[%s422] sm:$0x1]
    %v424 = vstv %s421
    %v425 = vmul.f32 %v424, %v423
    %v426 = vadd.f32 %v414, %v425
    %s427 = sadd.s32 %s52, 31
    %s428 = sld [smem:[#allocation2 + %s427]]
    %p429 = scmp.gt.s32.totalorder %s428, 0
    %s430 = scalar_select %p429, %s428, 0
    %p431 = scmp.lt.s32.totalorder %s430, 31
    %s432 = scalar_select %p431, %s430, 31
    %s433 = sld [smem:[#allocation7 + %s427]]
    %s434 = scalar_lea.vmem [#allocation8], %s432
    %v435 = vld [vmem:[%s434] sm:$0x1]
    %v436 = vstv %s433
    %v437 = vmul.f32 %v436, %v435
    %v438 = vadd.f32 %v426, %v437
    %439 = vst [vmem:[#allocation9 + $0x3] sm:$0x1] %v438
    %s440 = sadd.s32 %s52, 32
    %s441 = sld [smem:[#allocation2 + %s440]]
    %p442 = scmp.gt.s32.totalorder %s441, 0
    %s443 = scalar_select %p442, %s441, 0
    %p444 = scmp.lt.s32.totalorder %s443, 31
    %s445 = scalar_select %p444, %s443, 31
    %s446 = sld [smem:[#allocation7 + %s440]]
    %s447 = scalar_lea.vmem [#allocation8], %s445
    %v448 = vld [vmem:[%s447] sm:$0x1]
    %v449 = vstv %s446
    %v450 = vmul.f32 %v449, %v448
    %v451 = vadd.f32 %v450, 0.0
    %s452 = sadd.s32 %s52, 33
    %s453 = sld [smem:[#allocation2 + %s452]]
    %p454 = scmp.gt.s32.totalorder %s453, 0
    %s455 = scalar_select %p454, %s453, 0
    %p456 = scmp.lt.s32.totalorder %s455, 31
    %s457 = scalar_select %p456, %s455, 31
    %s458 = sld [smem:[#allocation7 + %s452]]
    %s459 = scalar_lea.vmem [#allocation8], %s457
    %v460 = vld [vmem:[%s459] sm:$0x1]
    %v461 = vstv %s458
    %v462 = vmul.f32 %v461, %v460
    %v463 = vadd.f32 %v451, %v462
    %s464 = sadd.s32 %s52, 34
    %s465 = sld [smem:[#allocation2 + %s464]]
    %p466 = scmp.gt.s32.totalorder %s465, 0
    %s467 = scalar_select %p466, %s465, 0
    %p468 = scmp.lt.s32.totalorder %s467, 31
    %s469 = scalar_select %p468, %s467, 31
    %s470 = sld [smem:[#allocation7 + %s464]]
    %s471 = scalar_lea.vmem [#allocation8], %s469
    %v472 = vld [vmem:[%s471] sm:$0x1]
    %v473 = vstv %s470
    %v474 = vmul.f32 %v473, %v472
    %v475 = vadd.f32 %v463, %v474
    %s476 = sadd.s32 %s52, 35
    %s477 = sld [smem:[#allocation2 + %s476]]
    %p478 = scmp.gt.s32.totalorder %s477, 0
    %s479 = scalar_select %p478, %s477, 0
    %p480 = scmp.lt.s32.totalorder %s479, 31
    %s481 = scalar_select %p480, %s479, 31
    %s482 = sld [smem:[#allocation7 + %s476]]
    %s483 = scalar_lea.vmem [#allocation8], %s481
    %v484 = vld [vmem:[%s483] sm:$0x1]
    %v485 = vstv %s482
    %v486 = vmul.f32 %v485, %v484
    %v487 = vadd.f32 %v475, %v486
    %s488 = sadd.s32 %s52, 36
    %s489 = sld [smem:[#allocation2 + %s488]]
    %p490 = scmp.gt.s32.totalorder %s489, 0
    %s491 = scalar_select %p490, %s489, 0
    %p492 = scmp.lt.s32.totalorder %s491, 31
    %s493 = scalar_select %p492, %s491, 31
    %s494 = sld [smem:[#allocation7 + %s488]]
    %s495 = scalar_lea.vmem [#allocation8], %s493
    %v496 = vld [vmem:[%s495] sm:$0x1]
    %v497 = vstv %s494
    %v498 = vmul.f32 %v497, %v496
    %v499 = vadd.f32 %v487, %v498
    %s500 = sadd.s32 %s52, 37
    %s501 = sld [smem:[#allocation2 + %s500]]
    %p502 = scmp.gt.s32.totalorder %s501, 0
    %s503 = scalar_select %p502, %s501, 0
    %p504 = scmp.lt.s32.totalorder %s503, 31
    %s505 = scalar_select %p504, %s503, 31
    %s506 = sld [smem:[#allocation7 + %s500]]
    %s507 = scalar_lea.vmem [#allocation8], %s505
    %v508 = vld [vmem:[%s507] sm:$0x1]
    %v509 = vstv %s506
    %v510 = vmul.f32 %v509, %v508
    %v511 = vadd.f32 %v499, %v510
    %s512 = sadd.s32 %s52, 38
    %s513 = sld [smem:[#allocation2 + %s512]]
    %p514 = scmp.gt.s32.totalorder %s513, 0
    %s515 = scalar_select %p514, %s513, 0
    %p516 = scmp.lt.s32.totalorder %s515, 31
    %s517 = scalar_select %p516, %s515, 31
    %s518 = sld [smem:[#allocation7 + %s512]]
    %s519 = scalar_lea.vmem [#allocation8], %s517
    %v520 = vld [vmem:[%s519] sm:$0x1]
    %v521 = vstv %s518
    %v522 = vmul.f32 %v521, %v520
    %v523 = vadd.f32 %v511, %v522
    %s524 = sadd.s32 %s52, 39
    %s525 = sld [smem:[#allocation2 + %s524]]
    %p526 = scmp.gt.s32.totalorder %s525, 0
    %s527 = scalar_select %p526, %s525, 0
    %p528 = scmp.lt.s32.totalorder %s527, 31
    %s529 = scalar_select %p528, %s527, 31
    %s530 = sld [smem:[#allocation7 + %s524]]
    %s531 = scalar_lea.vmem [#allocation8], %s529
    %v532 = vld [vmem:[%s531] sm:$0x1]
    %v533 = vstv %s530
    %v534 = vmul.f32 %v533, %v532
    %v535 = vadd.f32 %v523, %v534
    %536 = vst [vmem:[#allocation9 + $0x4] sm:$0x1] %v535
    %s537 = sadd.s32 %s52, 40
    %s538 = sld [smem:[#allocation2 + %s537]]
    %p539 = scmp.gt.s32.totalorder %s538, 0
    %s540 = scalar_select %p539, %s538, 0
    %p541 = scmp.lt.s32.totalorder %s540, 31
    %s542 = scalar_select %p541, %s540, 31
    %s543 = sld [smem:[#allocation7 + %s537]]
    %s544 = scalar_lea.vmem [#allocation8], %s542
    %v545 = vld [vmem:[%s544] sm:$0x1]
    %v546 = vstv %s543
    %v547 = vmul.f32 %v546, %v545
    %v548 = vadd.f32 %v547, 0.0
    %s549 = sadd.s32 %s52, 41
    %s550 = sld [smem:[#allocation2 + %s549]]
    %p551 = scmp.gt.s32.totalorder %s550, 0
    %s552 = scalar_select %p551, %s550, 0
    %p553 = scmp.lt.s32.totalorder %s552, 31
    %s554 = scalar_select %p553, %s552, 31
    %s555 = sld [smem:[#allocation7 + %s549]]
    %s556 = scalar_lea.vmem [#allocation8], %s554
    %v557 = vld [vmem:[%s556] sm:$0x1]
    %v558 = vstv %s555
    %v559 = vmul.f32 %v558, %v557
    %v560 = vadd.f32 %v548, %v559
    %s561 = sadd.s32 %s52, 42
    %s562 = sld [smem:[#allocation2 + %s561]]
    %p563 = scmp.gt.s32.totalorder %s562, 0
    %s564 = scalar_select %p563, %s562, 0
    %p565 = scmp.lt.s32.totalorder %s564, 31
    %s566 = scalar_select %p565, %s564, 31
    %s567 = sld [smem:[#allocation7 + %s561]]
    %s568 = scalar_lea.vmem [#allocation8], %s566
    %v569 = vld [vmem:[%s568] sm:$0x1]
    %v570 = vstv %s567
    %v571 = vmul.f32 %v570, %v569
    %v572 = vadd.f32 %v560, %v571
    %s573 = sadd.s32 %s52, 43
    %s574 = sld [smem:[#allocation2 + %s573]]
    %p575 = scmp.gt.s32.totalorder %s574, 0
    %s576 = scalar_select %p575, %s574, 0
    %p577 = scmp.lt.s32.totalorder %s576, 31
    %s578 = scalar_select %p577, %s576, 31
    %s579 = sld [smem:[#allocation7 + %s573]]
    %s580 = scalar_lea.vmem [#allocation8], %s578
    %v581 = vld [vmem:[%s580] sm:$0x1]
    %v582 = vstv %s579
    %v583 = vmul.f32 %v582, %v581
    %v584 = vadd.f32 %v572, %v583
    %s585 = sadd.s32 %s52, 44
    %s586 = sld [smem:[#allocation2 + %s585]]
    %p587 = scmp.gt.s32.totalorder %s586, 0
    %s588 = scalar_select %p587, %s586, 0
    %p589 = scmp.lt.s32.totalorder %s588, 31
    %s590 = scalar_select %p589, %s588, 31
    %s591 = sld [smem:[#allocation7 + %s585]]
    %s592 = scalar_lea.vmem [#allocation8], %s590
    %v593 = vld [vmem:[%s592] sm:$0x1]
    %v594 = vstv %s591
    %v595 = vmul.f32 %v594, %v593
    %v596 = vadd.f32 %v584, %v595
    %s597 = sadd.s32 %s52, 45
    %s598 = sld [smem:[#allocation2 + %s597]]
    %p599 = scmp.gt.s32.totalorder %s598, 0
    %s600 = scalar_select %p599, %s598, 0
    %p601 = scmp.lt.s32.totalorder %s600, 31
    %s602 = scalar_select %p601, %s600, 31
    %s603 = sld [smem:[#allocation7 + %s597]]
    %s604 = scalar_lea.vmem [#allocation8], %s602
    %v605 = vld [vmem:[%s604] sm:$0x1]
    %v606 = vstv %s603
    %v607 = vmul.f32 %v606, %v605
    %v608 = vadd.f32 %v596, %v607
    %s609 = sadd.s32 %s52, 46
    %s610 = sld [smem:[#allocation2 + %s609]]
    %p611 = scmp.gt.s32.totalorder %s610, 0
    %s612 = scalar_select %p611, %s610, 0
    %p613 = scmp.lt.s32.totalorder %s612, 31
    %s614 = scalar_select %p613, %s612, 31
    %s615 = sld [smem:[#allocation7 + %s609]]
    %s616 = scalar_lea.vmem [#allocation8], %s614
    %v617 = vld [vmem:[%s616] sm:$0x1]
    %v618 = vstv %s615
    %v619 = vmul.f32 %v618, %v617
    %v620 = vadd.f32 %v608, %v619
    %s621 = sadd.s32 %s52, 47
    %s622 = sld [smem:[#allocation2 + %s621]]
    %p623 = scmp.gt.s32.totalorder %s622, 0
    %s624 = scalar_select %p623, %s622, 0
    %p625 = scmp.lt.s32.totalorder %s624, 31
    %s626 = scalar_select %p625, %s624, 31
    %s627 = sld [smem:[#allocation7 + %s621]]
    %s628 = scalar_lea.vmem [#allocation8], %s626
    %v629 = vld [vmem:[%s628] sm:$0x1]
    %v630 = vstv %s627
    %v631 = vmul.f32 %v630, %v629
    %v632 = vadd.f32 %v620, %v631
    %633 = vst [vmem:[#allocation9 + $0x5] sm:$0x1] %v632
    %s634 = sadd.s32 %s52, 48
    %s635 = sld [smem:[#allocation2 + %s634]]
    %p636 = scmp.gt.s32.totalorder %s635, 0
    %s637 = scalar_select %p636, %s635, 0
    %p638 = scmp.lt.s32.totalorder %s637, 31
    %s639 = scalar_select %p638, %s637, 31
    %s640 = sld [smem:[#allocation7 + %s634]]
    %s641 = scalar_lea.vmem [#allocation8], %s639
    %v642 = vld [vmem:[%s641] sm:$0x1]
    %v643 = vstv %s640
    %v644 = vmul.f32 %v643, %v642
    %v645 = vadd.f32 %v644, 0.0
    %s646 = sadd.s32 %s52, 49
    %s647 = sld [smem:[#allocation2 + %s646]]
    %p648 = scmp.gt.s32.totalorder %s647, 0
    %s649 = scalar_select %p648, %s647, 0
    %p650 = scmp.lt.s32.totalorder %s649, 31
    %s651 = scalar_select %p650, %s649, 31
    %s652 = sld [smem:[#allocation7 + %s646]]
    %s653 = scalar_lea.vmem [#allocation8], %s651
    %v654 = vld [vmem:[%s653] sm:$0x1]
    %v655 = vstv %s652
    %v656 = vmul.f32 %v655, %v654
    %v657 = vadd.f32 %v645, %v656
    %s658 = sadd.s32 %s52, 50
    %s659 = sld [smem:[#allocation2 + %s658]]
    %p660 = scmp.gt.s32.totalorder %s659, 0
    %s661 = scalar_select %p660, %s659, 0
    %p662 = scmp.lt.s32.totalorder %s661, 31
    %s663 = scalar_select %p662, %s661, 31
    %s664 = sld [smem:[#allocation7 + %s658]]
    %s665 = scalar_lea.vmem [#allocation8], %s663
    %v666 = vld [vmem:[%s665] sm:$0x1]
    %v667 = vstv %s664
    %v668 = vmul.f32 %v667, %v666
    %v669 = vadd.f32 %v657, %v668
    %s670 = sadd.s32 %s52, 51
    %s671 = sld [smem:[#allocation2 + %s670]]
    %p672 = scmp.gt.s32.totalorder %s671, 0
    %s673 = scalar_select %p672, %s671, 0
    %p674 = scmp.lt.s32.totalorder %s673, 31
    %s675 = scalar_select %p674, %s673, 31
    %s676 = sld [smem:[#allocation7 + %s670]]
    %s677 = scalar_lea.vmem [#allocation8], %s675
    %v678 = vld [vmem:[%s677] sm:$0x1]
    %v679 = vstv %s676
    %v680 = vmul.f32 %v679, %v678
    %v681 = vadd.f32 %v669, %v680
    %s682 = sadd.s32 %s52, 52
    %s683 = sld [smem:[#allocation2 + %s682]]
    %p684 = scmp.gt.s32.totalorder %s683, 0
    %s685 = scalar_select %p684, %s683, 0
    %p686 = scmp.lt.s32.totalorder %s685, 31
    %s687 = scalar_select %p686, %s685, 31
    %s688 = sld [smem:[#allocation7 + %s682]]
    %s689 = scalar_lea.vmem [#allocation8], %s687
    %v690 = vld [vmem:[%s689] sm:$0x1]
    %v691 = vstv %s688
    %v692 = vmul.f32 %v691, %v690
    %v693 = vadd.f32 %v681, %v692
    %s694 = sadd.s32 %s52, 53
    %s695 = sld [smem:[#allocation2 + %s694]]
    %p696 = scmp.gt.s32.totalorder %s695, 0
    %s697 = scalar_select %p696, %s695, 0
    %p698 = scmp.lt.s32.totalorder %s697, 31
    %s699 = scalar_select %p698, %s697, 31
    %s700 = sld [smem:[#allocation7 + %s694]]
    %s701 = scalar_lea.vmem [#allocation8], %s699
    %v702 = vld [vmem:[%s701] sm:$0x1]
    %v703 = vstv %s700
    %v704 = vmul.f32 %v703, %v702
    %v705 = vadd.f32 %v693, %v704
    %s706 = sadd.s32 %s52, 54
    %s707 = sld [smem:[#allocation2 + %s706]]
    %p708 = scmp.gt.s32.totalorder %s707, 0
    %s709 = scalar_select %p708, %s707, 0
    %p710 = scmp.lt.s32.totalorder %s709, 31
    %s711 = scalar_select %p710, %s709, 31
    %s712 = sld [smem:[#allocation7 + %s706]]
    %s713 = scalar_lea.vmem [#allocation8], %s711
    %v714 = vld [vmem:[%s713] sm:$0x1]
    %v715 = vstv %s712
    %v716 = vmul.f32 %v715, %v714
    %v717 = vadd.f32 %v705, %v716
    %s718 = sadd.s32 %s52, 55
    %s719 = sld [smem:[#allocation2 + %s718]]
    %p720 = scmp.gt.s32.totalorder %s719, 0
    %s721 = scalar_select %p720, %s719, 0
    %p722 = scmp.lt.s32.totalorder %s721, 31
    %s723 = scalar_select %p722, %s721, 31
    %s724 = sld [smem:[#allocation7 + %s718]]
    %s725 = scalar_lea.vmem [#allocation8], %s723
    %v726 = vld [vmem:[%s725] sm:$0x1]
    %v727 = vstv %s724
    %v728 = vmul.f32 %v727, %v726
    %v729 = vadd.f32 %v717, %v728
    %730 = vst [vmem:[#allocation9 + $0x6] sm:$0x1] %v729
    %s731 = sadd.s32 %s52, 56
    %s732 = sld [smem:[#allocation2 + %s731]]
    %p733 = scmp.gt.s32.totalorder %s732, 0
    %s734 = scalar_select %p733, %s732, 0
    %p735 = scmp.lt.s32.totalorder %s734, 31
    %s736 = scalar_select %p735, %s734, 31
    %s737 = sld [smem:[#allocation7 + %s731]]
    %s738 = scalar_lea.vmem [#allocation8], %s736
    %v739 = vld [vmem:[%s738] sm:$0x1]
    %v740 = vstv %s737
    %v741 = vmul.f32 %v740, %v739
    %v742 = vadd.f32 %v741, 0.0
    %s743 = sadd.s32 %s52, 57
    %s744 = sld [smem:[#allocation2 + %s743]]
    %p745 = scmp.gt.s32.totalorder %s744, 0
    %s746 = scalar_select %p745, %s744, 0
    %p747 = scmp.lt.s32.totalorder %s746, 31
    %s748 = scalar_select %p747, %s746, 31
    %s749 = sld [smem:[#allocation7 + %s743]]
    %s750 = scalar_lea.vmem [#allocation8], %s748
    %v751 = vld [vmem:[%s750] sm:$0x1]
    %v752 = vstv %s749
    %v753 = vmul.f32 %v752, %v751
    %v754 = vadd.f32 %v742, %v753
    %s755 = sadd.s32 %s52, 58
    %s756 = sld [smem:[#allocation2 + %s755]]
    %p757 = scmp.gt.s32.totalorder %s756, 0
    %s758 = scalar_select %p757, %s756, 0
    %p759 = scmp.lt.s32.totalorder %s758, 31
    %s760 = scalar_select %p759, %s758, 31
    %s761 = sld [smem:[#allocation7 + %s755]]
    %s762 = scalar_lea.vmem [#allocation8], %s760
    %v763 = vld [vmem:[%s762] sm:$0x1]
    %v764 = vstv %s761
    %v765 = vmul.f32 %v764, %v763
    %v766 = vadd.f32 %v754, %v765
    %s767 = sadd.s32 %s52, 59
    %s768 = sld [smem:[#allocation2 + %s767]]
    %p769 = scmp.gt.s32.totalorder %s768, 0
    %s770 = scalar_select %p769, %s768, 0
    %p771 = scmp.lt.s32.totalorder %s770, 31
    %s772 = scalar_select %p771, %s770, 31
    %s773 = sld [smem:[#allocation7 + %s767]]
    %s774 = scalar_lea.vmem [#allocation8], %s772
    %v775 = vld [vmem:[%s774] sm:$0x1]
    %v776 = vstv %s773
    %v777 = vmul.f32 %v776, %v775
    %v778 = vadd.f32 %v766, %v777
    %s779 = sadd.s32 %s52, 60
    %s780 = sld [smem:[#allocation2 + %s779]]
    %p781 = scmp.gt.s32.totalorder %s780, 0
    %s782 = scalar_select %p781, %s780, 0
    %p783 = scmp.lt.s32.totalorder %s782, 31
    %s784 = scalar_select %p783, %s782, 31
    %s785 = sld [smem:[#allocation7 + %s779]]
    %s786 = scalar_lea.vmem [#allocation8], %s784
    %v787 = vld [vmem:[%s786] sm:$0x1]
    %v788 = vstv %s785
    %v789 = vmul.f32 %v788, %v787
    %v790 = vadd.f32 %v778, %v789
    %s791 = sadd.s32 %s52, 61
    %s792 = sld [smem:[#allocation2 + %s791]]
    %p793 = scmp.gt.s32.totalorder %s792, 0
    %s794 = scalar_select %p793, %s792, 0
    %p795 = scmp.lt.s32.totalorder %s794, 31
    %s796 = scalar_select %p795, %s794, 31
    %s797 = sld [smem:[#allocation7 + %s791]]
    %s798 = scalar_lea.vmem [#allocation8], %s796
    %v799 = vld [vmem:[%s798] sm:$0x1]
    %v800 = vstv %s797
    %v801 = vmul.f32 %v800, %v799
    %v802 = vadd.f32 %v790, %v801
    %s803 = sadd.s32 %s52, 62
    %s804 = sld [smem:[#allocation2 + %s803]]
    %p805 = scmp.gt.s32.totalorder %s804, 0
    %s806 = scalar_select %p805, %s804, 0
    %p807 = scmp.lt.s32.totalorder %s806, 31
    %s808 = scalar_select %p807, %s806, 31
    %s809 = sld [smem:[#allocation7 + %s803]]
    %s810 = scalar_lea.vmem [#allocation8], %s808
    %v811 = vld [vmem:[%s810] sm:$0x1]
    %v812 = vstv %s809
    %v813 = vmul.f32 %v812, %v811
    %v814 = vadd.f32 %v802, %v813
    %s815 = sadd.s32 %s52, 63
    %s816 = sld [smem:[#allocation2 + %s815]]
    %p817 = scmp.gt.s32.totalorder %s816, 0
    %s818 = scalar_select %p817, %s816, 0
    %p819 = scmp.lt.s32.totalorder %s818, 31
    %s820 = scalar_select %p819, %s818, 31
    %s821 = sld [smem:[#allocation7 + %s815]]
    %s822 = scalar_lea.vmem [#allocation8], %s820
    %v823 = vld [vmem:[%s822] sm:$0x1]
    %v824 = vstv %s821
    %v825 = vmul.f32 %v824, %v823
    %v826 = vadd.f32 %v814, %v825
    %827 = vst [vmem:[#allocation9 + $0x7] sm:$0x1] %v826
    %s828 = sadd.s32 %s52, 64
    %s829 = sld [smem:[#allocation2 + %s828]]
    %p830 = scmp.gt.s32.totalorder %s829, 0
    %s831 = scalar_select %p830, %s829, 0
    %p832 = scmp.lt.s32.totalorder %s831, 31
    %s833 = scalar_select %p832, %s831, 31
    %s834 = sld [smem:[#allocation7 + %s828]]
    %s835 = scalar_lea.vmem [#allocation8], %s833
    %v836 = vld [vmem:[%s835] sm:$0x1]
    %v837 = vstv %s834
    %v838 = vmul.f32 %v837, %v836
    %v839 = vadd.f32 %v838, 0.0
    %s840 = sadd.s32 %s52, 65
    %s841 = sld [smem:[#allocation2 + %s840]]
    %p842 = scmp.gt.s32.totalorder %s841, 0
    %s843 = scalar_select %p842, %s841, 0
    %p844 = scmp.lt.s32.totalorder %s843, 31
    %s845 = scalar_select %p844, %s843, 31
    %s846 = sld [smem:[#allocation7 + %s840]]
    %s847 = scalar_lea.vmem [#allocation8], %s845
    %v848 = vld [vmem:[%s847] sm:$0x1]
    %v849 = vstv %s846
    %v850 = vmul.f32 %v849, %v848
    %v851 = vadd.f32 %v839, %v850
    %s852 = sadd.s32 %s52, 66
    %s853 = sld [smem:[#allocation2 + %s852]]
    %p854 = scmp.gt.s32.totalorder %s853, 0
    %s855 = scalar_select %p854, %s853, 0
    %p856 = scmp.lt.s32.totalorder %s855, 31
    %s857 = scalar_select %p856, %s855, 31
    %s858 = sld [smem:[#allocation7 + %s852]]
    %s859 = scalar_lea.vmem [#allocation8], %s857
    %v860 = vld [vmem:[%s859] sm:$0x1]
    %v861 = vstv %s858
    %v862 = vmul.f32 %v861, %v860
    %v863 = vadd.f32 %v851, %v862
    %s864 = sadd.s32 %s52, 67
    %s865 = sld [smem:[#allocation2 + %s864]]
    %p866 = scmp.gt.s32.totalorder %s865, 0
    %s867 = scalar_select %p866, %s865, 0
    %p868 = scmp.lt.s32.totalorder %s867, 31
    %s869 = scalar_select %p868, %s867, 31
    %s870 = sld [smem:[#allocation7 + %s864]]
    %s871 = scalar_lea.vmem [#allocation8], %s869
    %v872 = vld [vmem:[%s871] sm:$0x1]
    %v873 = vstv %s870
    %v874 = vmul.f32 %v873, %v872
    %v875 = vadd.f32 %v863, %v874
    %s876 = sadd.s32 %s52, 68
    %s877 = sld [smem:[#allocation2 + %s876]]
    %p878 = scmp.gt.s32.totalorder %s877, 0
    %s879 = scalar_select %p878, %s877, 0
    %p880 = scmp.lt.s32.totalorder %s879, 31
    %s881 = scalar_select %p880, %s879, 31
    %s882 = sld [smem:[#allocation7 + %s876]]
    %s883 = scalar_lea.vmem [#allocation8], %s881
    %v884 = vld [vmem:[%s883] sm:$0x1]
    %v885 = vstv %s882
    %v886 = vmul.f32 %v885, %v884
    %v887 = vadd.f32 %v875, %v886
    %s888 = sadd.s32 %s52, 69
    %s889 = sld [smem:[#allocation2 + %s888]]
    %p890 = scmp.gt.s32.totalorder %s889, 0
    %s891 = scalar_select %p890, %s889, 0
    %p892 = scmp.lt.s32.totalorder %s891, 31
    %s893 = scalar_select %p892, %s891, 31
    %s894 = sld [smem:[#allocation7 + %s888]]
    %s895 = scalar_lea.vmem [#allocation8], %s893
    %v896 = vld [vmem:[%s895] sm:$0x1]
    %v897 = vstv %s894
    %v898 = vmul.f32 %v897, %v896
    %v899 = vadd.f32 %v887, %v898
    %s900 = sadd.s32 %s52, 70
    %s901 = sld [smem:[#allocation2 + %s900]]
    %p902 = scmp.gt.s32.totalorder %s901, 0
    %s903 = scalar_select %p902, %s901, 0
    %p904 = scmp.lt.s32.totalorder %s903, 31
    %s905 = scalar_select %p904, %s903, 31
    %s906 = sld [smem:[#allocation7 + %s900]]
    %s907 = scalar_lea.vmem [#allocation8], %s905
    %v908 = vld [vmem:[%s907] sm:$0x1]
    %v909 = vstv %s906
    %v910 = vmul.f32 %v909, %v908
    %v911 = vadd.f32 %v899, %v910
    %s912 = sadd.s32 %s52, 71
    %s913 = sld [smem:[#allocation2 + %s912]]
    %p914 = scmp.gt.s32.totalorder %s913, 0
    %s915 = scalar_select %p914, %s913, 0
    %p916 = scmp.lt.s32.totalorder %s915, 31
    %s917 = scalar_select %p916, %s915, 31
    %s918 = sld [smem:[#allocation7 + %s912]]
    %s919 = scalar_lea.vmem [#allocation8], %s917
    %v920 = vld [vmem:[%s919] sm:$0x1]
    %v921 = vstv %s918
    %v922 = vmul.f32 %v921, %v920
    %v923 = vadd.f32 %v911, %v922
    %924 = vst [vmem:[#allocation9 + $0x8] sm:$0x1] %v923
    %s925 = sadd.s32 %s52, 72
    %s926 = sld [smem:[#allocation2 + %s925]]
    %p927 = scmp.gt.s32.totalorder %s926, 0
    %s928 = scalar_select %p927, %s926, 0
    %p929 = scmp.lt.s32.totalorder %s928, 31
    %s930 = scalar_select %p929, %s928, 31
    %s931 = sld [smem:[#allocation7 + %s925]]
    %s932 = scalar_lea.vmem [#allocation8], %s930
    %v933 = vld [vmem:[%s932] sm:$0x1]
    %v934 = vstv %s931
    %v935 = vmul.f32 %v934, %v933
    %v936 = vadd.f32 %v935, 0.0
    %s937 = sadd.s32 %s52, 73
    %s938 = sld [smem:[#allocation2 + %s937]]
    %p939 = scmp.gt.s32.totalorder %s938, 0
    %s940 = scalar_select %p939, %s938, 0
    %p941 = scmp.lt.s32.totalorder %s940, 31
    %s942 = scalar_select %p941, %s940, 31
    %s943 = sld [smem:[#allocation7 + %s937]]
    %s944 = scalar_lea.vmem [#allocation8], %s942
    %v945 = vld [vmem:[%s944] sm:$0x1]
    %v946 = vstv %s943
    %v947 = vmul.f32 %v946, %v945
    %v948 = vadd.f32 %v936, %v947
    %s949 = sadd.s32 %s52, 74
    %s950 = sld [smem:[#allocation2 + %s949]]
    %p951 = scmp.gt.s32.totalorder %s950, 0
    %s952 = scalar_select %p951, %s950, 0
    %p953 = scmp.lt.s32.totalorder %s952, 31
    %s954 = scalar_select %p953, %s952, 31
    %s955 = sld [smem:[#allocation7 + %s949]]
    %s956 = scalar_lea.vmem [#allocation8], %s954
    %v957 = vld [vmem:[%s956] sm:$0x1]
    %v958 = vstv %s955
    %v959 = vmul.f32 %v958, %v957
    %v960 = vadd.f32 %v948, %v959
    %s961 = sadd.s32 %s52, 75
    %s962 = sld [smem:[#allocation2 + %s961]]
    %p963 = scmp.gt.s32.totalorder %s962, 0
    %s964 = scalar_select %p963, %s962, 0
    %p965 = scmp.lt.s32.totalorder %s964, 31
    %s966 = scalar_select %p965, %s964, 31
    %s967 = sld [smem:[#allocation7 + %s961]]
    %s968 = scalar_lea.vmem [#allocation8], %s966
    %v969 = vld [vmem:[%s968] sm:$0x1]
    %v970 = vstv %s967
    %v971 = vmul.f32 %v970, %v969
    %v972 = vadd.f32 %v960, %v971
    %s973 = sadd.s32 %s52, 76
    %s974 = sld [smem:[#allocation2 + %s973]]
    %p975 = scmp.gt.s32.totalorder %s974, 0
    %s976 = scalar_select %p975, %s974, 0
    %p977 = scmp.lt.s32.totalorder %s976, 31
    %s978 = scalar_select %p977, %s976, 31
    %s979 = sld [smem:[#allocation7 + %s973]]
    %s980 = scalar_lea.vmem [#allocation8], %s978
    %v981 = vld [vmem:[%s980] sm:$0x1]
    %v982 = vstv %s979
    %v983 = vmul.f32 %v982, %v981
    %v984 = vadd.f32 %v972, %v983
    %s985 = sadd.s32 %s52, 77
    %s986 = sld [smem:[#allocation2 + %s985]]
    %p987 = scmp.gt.s32.totalorder %s986, 0
    %s988 = scalar_select %p987, %s986, 0
    %p989 = scmp.lt.s32.totalorder %s988, 31
    %s990 = scalar_select %p989, %s988, 31
    %s991 = sld [smem:[#allocation7 + %s985]]
    %s992 = scalar_lea.vmem [#allocation8], %s990
    %v993 = vld [vmem:[%s992] sm:$0x1]
    %v994 = vstv %s991
    %v995 = vmul.f32 %v994, %v993
    %v996 = vadd.f32 %v984, %v995
    %s997 = sadd.s32 %s52, 78
    %s998 = sld [smem:[#allocation2 + %s997]]
    %p999 = scmp.gt.s32.totalorder %s998, 0
    %s1000 = scalar_select %p999, %s998, 0
    %p1001 = scmp.lt.s32.totalorder %s1000, 31
    %s1002 = scalar_select %p1001, %s1000, 31
    %s1003 = sld [smem:[#allocation7 + %s997]]
    %s1004 = scalar_lea.vmem [#allocation8], %s1002
    %v1005 = vld [vmem:[%s1004] sm:$0x1]
    %v1006 = vstv %s1003
    %v1007 = vmul.f32 %v1006, %v1005
    %v1008 = vadd.f32 %v996, %v1007
    %s1009 = sadd.s32 %s52, 79
    %s1010 = sld [smem:[#allocation2 + %s1009]]
    %p1011 = scmp.gt.s32.totalorder %s1010, 0
    %s1012 = scalar_select %p1011, %s1010, 0
    %p1013 = scmp.lt.s32.totalorder %s1012, 31
    %s1014 = scalar_select %p1013, %s1012, 31
    %s1015 = sld [smem:[#allocation7 + %s1009]]
    %s1016 = scalar_lea.vmem [#allocation8], %s1014
    %v1017 = vld [vmem:[%s1016] sm:$0x1]
    %v1018 = vstv %s1015
    %v1019 = vmul.f32 %v1018, %v1017
    %v1020 = vadd.f32 %v1008, %v1019
    %1021 = vst [vmem:[#allocation9 + $0x9] sm:$0x1] %v1020
    %s1022 = sadd.s32 %s52, 80
    %s1023 = sld [smem:[#allocation2 + %s1022]]
    %p1024 = scmp.gt.s32.totalorder %s1023, 0
    %s1025 = scalar_select %p1024, %s1023, 0
    %p1026 = scmp.lt.s32.totalorder %s1025, 31
    %s1027 = scalar_select %p1026, %s1025, 31
    %s1028 = sld [smem:[#allocation7 + %s1022]]
    %s1029 = scalar_lea.vmem [#allocation8], %s1027
    %v1030 = vld [vmem:[%s1029] sm:$0x1]
    %v1031 = vstv %s1028
    %v1032 = vmul.f32 %v1031, %v1030
    %v1033 = vadd.f32 %v1032, 0.0
    %s1034 = sadd.s32 %s52, 81
    %s1035 = sld [smem:[#allocation2 + %s1034]]
    %p1036 = scmp.gt.s32.totalorder %s1035, 0
    %s1037 = scalar_select %p1036, %s1035, 0
    %p1038 = scmp.lt.s32.totalorder %s1037, 31
    %s1039 = scalar_select %p1038, %s1037, 31
    %s1040 = sld [smem:[#allocation7 + %s1034]]
    %s1041 = scalar_lea.vmem [#allocation8], %s1039
    %v1042 = vld [vmem:[%s1041] sm:$0x1]
    %v1043 = vstv %s1040
    %v1044 = vmul.f32 %v1043, %v1042
    %v1045 = vadd.f32 %v1033, %v1044
    %s1046 = sadd.s32 %s52, 82
    %s1047 = sld [smem:[#allocation2 + %s1046]]
    %p1048 = scmp.gt.s32.totalorder %s1047, 0
    %s1049 = scalar_select %p1048, %s1047, 0
    %p1050 = scmp.lt.s32.totalorder %s1049, 31
    %s1051 = scalar_select %p1050, %s1049, 31
    %s1052 = sld [smem:[#allocation7 + %s1046]]
    %s1053 = scalar_lea.vmem [#allocation8], %s1051
    %v1054 = vld [vmem:[%s1053] sm:$0x1]
    %v1055 = vstv %s1052
    %v1056 = vmul.f32 %v1055, %v1054
    %v1057 = vadd.f32 %v1045, %v1056
    %s1058 = sadd.s32 %s52, 83
    %s1059 = sld [smem:[#allocation2 + %s1058]]
    %p1060 = scmp.gt.s32.totalorder %s1059, 0
    %s1061 = scalar_select %p1060, %s1059, 0
    %p1062 = scmp.lt.s32.totalorder %s1061, 31
    %s1063 = scalar_select %p1062, %s1061, 31
    %s1064 = sld [smem:[#allocation7 + %s1058]]
    %s1065 = scalar_lea.vmem [#allocation8], %s1063
    %v1066 = vld [vmem:[%s1065] sm:$0x1]
    %v1067 = vstv %s1064
    %v1068 = vmul.f32 %v1067, %v1066
    %v1069 = vadd.f32 %v1057, %v1068
    %s1070 = sadd.s32 %s52, 84
    %s1071 = sld [smem:[#allocation2 + %s1070]]
    %p1072 = scmp.gt.s32.totalorder %s1071, 0
    %s1073 = scalar_select %p1072, %s1071, 0
    %p1074 = scmp.lt.s32.totalorder %s1073, 31
    %s1075 = scalar_select %p1074, %s1073, 31
    %s1076 = sld [smem:[#allocation7 + %s1070]]
    %s1077 = scalar_lea.vmem [#allocation8], %s1075
    %v1078 = vld [vmem:[%s1077] sm:$0x1]
    %v1079 = vstv %s1076
    %v1080 = vmul.f32 %v1079, %v1078
    %v1081 = vadd.f32 %v1069, %v1080
    %s1082 = sadd.s32 %s52, 85
    %s1083 = sld [smem:[#allocation2 + %s1082]]
    %p1084 = scmp.gt.s32.totalorder %s1083, 0
    %s1085 = scalar_select %p1084, %s1083, 0
    %p1086 = scmp.lt.s32.totalorder %s1085, 31
    %s1087 = scalar_select %p1086, %s1085, 31
    %s1088 = sld [smem:[#allocation7 + %s1082]]
    %s1089 = scalar_lea.vmem [#allocation8], %s1087
    %v1090 = vld [vmem:[%s1089] sm:$0x1]
    %v1091 = vstv %s1088
    %v1092 = vmul.f32 %v1091, %v1090
    %v1093 = vadd.f32 %v1081, %v1092
    %s1094 = sadd.s32 %s52, 86
    %s1095 = sld [smem:[#allocation2 + %s1094]]
    %p1096 = scmp.gt.s32.totalorder %s1095, 0
    %s1097 = scalar_select %p1096, %s1095, 0
    %p1098 = scmp.lt.s32.totalorder %s1097, 31
    %s1099 = scalar_select %p1098, %s1097, 31
    %s1100 = sld [smem:[#allocation7 + %s1094]]
    %s1101 = scalar_lea.vmem [#allocation8], %s1099
    %v1102 = vld [vmem:[%s1101] sm:$0x1]
    %v1103 = vstv %s1100
    %v1104 = vmul.f32 %v1103, %v1102
    %v1105 = vadd.f32 %v1093, %v1104
    %s1106 = sadd.s32 %s52, 87
    %s1107 = sld [smem:[#allocation2 + %s1106]]
    %p1108 = scmp.gt.s32.totalorder %s1107, 0
    %s1109 = scalar_select %p1108, %s1107, 0
    %p1110 = scmp.lt.s32.totalorder %s1109, 31
    %s1111 = scalar_select %p1110, %s1109, 31
    %s1112 = sld [smem:[#allocation7 + %s1106]]
    %s1113 = scalar_lea.vmem [#allocation8], %s1111
    %v1114 = vld [vmem:[%s1113] sm:$0x1]
    %v1115 = vstv %s1112
    %v1116 = vmul.f32 %v1115, %v1114
    %v1117 = vadd.f32 %v1105, %v1116
    %1118 = vst [vmem:[#allocation9 + $0xa] sm:$0x1] %v1117
    %s1119 = sadd.s32 %s52, 88
    %s1120 = sld [smem:[#allocation2 + %s1119]]
    %p1121 = scmp.gt.s32.totalorder %s1120, 0
    %s1122 = scalar_select %p1121, %s1120, 0
    %p1123 = scmp.lt.s32.totalorder %s1122, 31
    %s1124 = scalar_select %p1123, %s1122, 31
    %s1125 = sld [smem:[#allocation7 + %s1119]]
    %s1126 = scalar_lea.vmem [#allocation8], %s1124
    %v1127 = vld [vmem:[%s1126] sm:$0x1]
    %v1128 = vstv %s1125
    %v1129 = vmul.f32 %v1128, %v1127
    %v1130 = vadd.f32 %v1129, 0.0
    %s1131 = sadd.s32 %s52, 89
    %s1132 = sld [smem:[#allocation2 + %s1131]]
    %p1133 = scmp.gt.s32.totalorder %s1132, 0
    %s1134 = scalar_select %p1133, %s1132, 0
    %p1135 = scmp.lt.s32.totalorder %s1134, 31
    %s1136 = scalar_select %p1135, %s1134, 31
    %s1137 = sld [smem:[#allocation7 + %s1131]]
    %s1138 = scalar_lea.vmem [#allocation8], %s1136
    %v1139 = vld [vmem:[%s1138] sm:$0x1]
    %v1140 = vstv %s1137
    %v1141 = vmul.f32 %v1140, %v1139
    %v1142 = vadd.f32 %v1130, %v1141
    %s1143 = sadd.s32 %s52, 90
    %s1144 = sld [smem:[#allocation2 + %s1143]]
    %p1145 = scmp.gt.s32.totalorder %s1144, 0
    %s1146 = scalar_select %p1145, %s1144, 0
    %p1147 = scmp.lt.s32.totalorder %s1146, 31
    %s1148 = scalar_select %p1147, %s1146, 31
    %s1149 = sld [smem:[#allocation7 + %s1143]]
    %s1150 = scalar_lea.vmem [#allocation8], %s1148
    %v1151 = vld [vmem:[%s1150] sm:$0x1]
    %v1152 = vstv %s1149
    %v1153 = vmul.f32 %v1152, %v1151
    %v1154 = vadd.f32 %v1142, %v1153
    %s1155 = sadd.s32 %s52, 91
    %s1156 = sld [smem:[#allocation2 + %s1155]]
    %p1157 = scmp.gt.s32.totalorder %s1156, 0
    %s1158 = scalar_select %p1157, %s1156, 0
    %p1159 = scmp.lt.s32.totalorder %s1158, 31
    %s1160 = scalar_select %p1159, %s1158, 31
    %s1161 = sld [smem:[#allocation7 + %s1155]]
    %s1162 = scalar_lea.vmem [#allocation8], %s1160
    %v1163 = vld [vmem:[%s1162] sm:$0x1]
    %v1164 = vstv %s1161
    %v1165 = vmul.f32 %v1164, %v1163
    %v1166 = vadd.f32 %v1154, %v1165
    %s1167 = sadd.s32 %s52, 92
    %s1168 = sld [smem:[#allocation2 + %s1167]]
    %p1169 = scmp.gt.s32.totalorder %s1168, 0
    %s1170 = scalar_select %p1169, %s1168, 0
    %p1171 = scmp.lt.s32.totalorder %s1170, 31
    %s1172 = scalar_select %p1171, %s1170, 31
    %s1173 = sld [smem:[#allocation7 + %s1167]]
    %s1174 = scalar_lea.vmem [#allocation8], %s1172
    %v1175 = vld [vmem:[%s1174] sm:$0x1]
    %v1176 = vstv %s1173
    %v1177 = vmul.f32 %v1176, %v1175
    %v1178 = vadd.f32 %v1166, %v1177
    %s1179 = sadd.s32 %s52, 93
    %s1180 = sld [smem:[#allocation2 + %s1179]]
    %p1181 = scmp.gt.s32.totalorder %s1180, 0
    %s1182 = scalar_select %p1181, %s1180, 0
    %p1183 = scmp.lt.s32.totalorder %s1182, 31
    %s1184 = scalar_select %p1183, %s1182, 31
    %s1185 = sld [smem:[#allocation7 + %s1179]]
    %s1186 = scalar_lea.vmem [#allocation8], %s1184
    %v1187 = vld [vmem:[%s1186] sm:$0x1]
    %v1188 = vstv %s1185
    %v1189 = vmul.f32 %v1188, %v1187
    %v1190 = vadd.f32 %v1178, %v1189
    %s1191 = sadd.s32 %s52, 94
    %s1192 = sld [smem:[#allocation2 + %s1191]]
    %p1193 = scmp.gt.s32.totalorder %s1192, 0
    %s1194 = scalar_select %p1193, %s1192, 0
    %p1195 = scmp.lt.s32.totalorder %s1194, 31
    %s1196 = scalar_select %p1195, %s1194, 31
    %s1197 = sld [smem:[#allocation7 + %s1191]]
    %s1198 = scalar_lea.vmem [#allocation8], %s1196
    %v1199 = vld [vmem:[%s1198] sm:$0x1]
    %v1200 = vstv %s1197
    %v1201 = vmul.f32 %v1200, %v1199
    %v1202 = vadd.f32 %v1190, %v1201
    %s1203 = sadd.s32 %s52, 95
    %s1204 = sld [smem:[#allocation2 + %s1203]]
    %p1205 = scmp.gt.s32.totalorder %s1204, 0
    %s1206 = scalar_select %p1205, %s1204, 0
    %p1207 = scmp.lt.s32.totalorder %s1206, 31
    %s1208 = scalar_select %p1207, %s1206, 31
    %s1209 = sld [smem:[#allocation7 + %s1203]]
    %s1210 = scalar_lea.vmem [#allocation8], %s1208
    %v1211 = vld [vmem:[%s1210] sm:$0x1]
    %v1212 = vstv %s1209
    %v1213 = vmul.f32 %v1212, %v1211
    %v1214 = vadd.f32 %v1202, %v1213
    %1215 = vst [vmem:[#allocation9 + $0xb] sm:$0x1] %v1214
    %s1216 = sadd.s32 %s52, 96
    %s1217 = sld [smem:[#allocation2 + %s1216]]
    %p1218 = scmp.gt.s32.totalorder %s1217, 0
    %s1219 = scalar_select %p1218, %s1217, 0
    %p1220 = scmp.lt.s32.totalorder %s1219, 31
    %s1221 = scalar_select %p1220, %s1219, 31
    %s1222 = sld [smem:[#allocation7 + %s1216]]
    %s1223 = scalar_lea.vmem [#allocation8], %s1221
    %v1224 = vld [vmem:[%s1223] sm:$0x1]
    %v1225 = vstv %s1222
    %v1226 = vmul.f32 %v1225, %v1224
    %v1227 = vadd.f32 %v1226, 0.0
    %s1228 = sadd.s32 %s52, 97
    %s1229 = sld [smem:[#allocation2 + %s1228]]
    %p1230 = scmp.gt.s32.totalorder %s1229, 0
    %s1231 = scalar_select %p1230, %s1229, 0
    %p1232 = scmp.lt.s32.totalorder %s1231, 31
    %s1233 = scalar_select %p1232, %s1231, 31
    %s1234 = sld [smem:[#allocation7 + %s1228]]
    %s1235 = scalar_lea.vmem [#allocation8], %s1233
    %v1236 = vld [vmem:[%s1235] sm:$0x1]
    %v1237 = vstv %s1234
    %v1238 = vmul.f32 %v1237, %v1236
    %v1239 = vadd.f32 %v1227, %v1238
    %s1240 = sadd.s32 %s52, 98
    %s1241 = sld [smem:[#allocation2 + %s1240]]
    %p1242 = scmp.gt.s32.totalorder %s1241, 0
    %s1243 = scalar_select %p1242, %s1241, 0
    %p1244 = scmp.lt.s32.totalorder %s1243, 31
    %s1245 = scalar_select %p1244, %s1243, 31
    %s1246 = sld [smem:[#allocation7 + %s1240]]
    %s1247 = scalar_lea.vmem [#allocation8], %s1245
    %v1248 = vld [vmem:[%s1247] sm:$0x1]
    %v1249 = vstv %s1246
    %v1250 = vmul.f32 %v1249, %v1248
    %v1251 = vadd.f32 %v1239, %v1250
    %s1252 = sadd.s32 %s52, 99
    %s1253 = sld [smem:[#allocation2 + %s1252]]
    %p1254 = scmp.gt.s32.totalorder %s1253, 0
    %s1255 = scalar_select %p1254, %s1253, 0
    %p1256 = scmp.lt.s32.totalorder %s1255, 31
    %s1257 = scalar_select %p1256, %s1255, 31
    %s1258 = sld [smem:[#allocation7 + %s1252]]
    %s1259 = scalar_lea.vmem [#allocation8], %s1257
    %v1260 = vld [vmem:[%s1259] sm:$0x1]
    %v1261 = vstv %s1258
    %v1262 = vmul.f32 %v1261, %v1260
    %v1263 = vadd.f32 %v1251, %v1262
    %s1264 = sadd.s32 %s52, 100
    %s1265 = sld [smem:[#allocation2 + %s1264]]
    %p1266 = scmp.gt.s32.totalorder %s1265, 0
    %s1267 = scalar_select %p1266, %s1265, 0
    %p1268 = scmp.lt.s32.totalorder %s1267, 31
    %s1269 = scalar_select %p1268, %s1267, 31
    %s1270 = sld [smem:[#allocation7 + %s1264]]
    %s1271 = scalar_lea.vmem [#allocation8], %s1269
    %v1272 = vld [vmem:[%s1271] sm:$0x1]
    %v1273 = vstv %s1270
    %v1274 = vmul.f32 %v1273, %v1272
    %v1275 = vadd.f32 %v1263, %v1274
    %s1276 = sadd.s32 %s52, 101
    %s1277 = sld [smem:[#allocation2 + %s1276]]
    %p1278 = scmp.gt.s32.totalorder %s1277, 0
    %s1279 = scalar_select %p1278, %s1277, 0
    %p1280 = scmp.lt.s32.totalorder %s1279, 31
    %s1281 = scalar_select %p1280, %s1279, 31
    %s1282 = sld [smem:[#allocation7 + %s1276]]
    %s1283 = scalar_lea.vmem [#allocation8], %s1281
    %v1284 = vld [vmem:[%s1283] sm:$0x1]
    %v1285 = vstv %s1282
    %v1286 = vmul.f32 %v1285, %v1284
    %v1287 = vadd.f32 %v1275, %v1286
    %s1288 = sadd.s32 %s52, 102
    %s1289 = sld [smem:[#allocation2 + %s1288]]
    %p1290 = scmp.gt.s32.totalorder %s1289, 0
    %s1291 = scalar_select %p1290, %s1289, 0
    %p1292 = scmp.lt.s32.totalorder %s1291, 31
    %s1293 = scalar_select %p1292, %s1291, 31
    %s1294 = sld [smem:[#allocation7 + %s1288]]
    %s1295 = scalar_lea.vmem [#allocation8], %s1293
    %v1296 = vld [vmem:[%s1295] sm:$0x1]
    %v1297 = vstv %s1294
    %v1298 = vmul.f32 %v1297, %v1296
    %v1299 = vadd.f32 %v1287, %v1298
    %s1300 = sadd.s32 %s52, 103
    %s1301 = sld [smem:[#allocation2 + %s1300]]
    %p1302 = scmp.gt.s32.totalorder %s1301, 0
    %s1303 = scalar_select %p1302, %s1301, 0
    %p1304 = scmp.lt.s32.totalorder %s1303, 31
    %s1305 = scalar_select %p1304, %s1303, 31
    %s1306 = sld [smem:[#allocation7 + %s1300]]
    %s1307 = scalar_lea.vmem [#allocation8], %s1305
    %v1308 = vld [vmem:[%s1307] sm:$0x1]
    %v1309 = vstv %s1306
    %v1310 = vmul.f32 %v1309, %v1308
    %v1311 = vadd.f32 %v1299, %v1310
    %1312 = vst [vmem:[#allocation9 + $0xc] sm:$0x1] %v1311
    %s1313 = sadd.s32 %s52, 104
    %s1314 = sld [smem:[#allocation2 + %s1313]]
    %p1315 = scmp.gt.s32.totalorder %s1314, 0
    %s1316 = scalar_select %p1315, %s1314, 0
    %p1317 = scmp.lt.s32.totalorder %s1316, 31
    %s1318 = scalar_select %p1317, %s1316, 31
    %s1319 = sld [smem:[#allocation7 + %s1313]]
    %s1320 = scalar_lea.vmem [#allocation8], %s1318
    %v1321 = vld [vmem:[%s1320] sm:$0x1]
    %v1322 = vstv %s1319
    %v1323 = vmul.f32 %v1322, %v1321
    %v1324 = vadd.f32 %v1323, 0.0
    %s1325 = sadd.s32 %s52, 105
    %s1326 = sld [smem:[#allocation2 + %s1325]]
    %p1327 = scmp.gt.s32.totalorder %s1326, 0
    %s1328 = scalar_select %p1327, %s1326, 0
    %p1329 = scmp.lt.s32.totalorder %s1328, 31
    %s1330 = scalar_select %p1329, %s1328, 31
    %s1331 = sld [smem:[#allocation7 + %s1325]]
    %s1332 = scalar_lea.vmem [#allocation8], %s1330
    %v1333 = vld [vmem:[%s1332] sm:$0x1]
    %v1334 = vstv %s1331
    %v1335 = vmul.f32 %v1334, %v1333
    %v1336 = vadd.f32 %v1324, %v1335
    %s1337 = sadd.s32 %s52, 106
    %s1338 = sld [smem:[#allocation2 + %s1337]]
    %p1339 = scmp.gt.s32.totalorder %s1338, 0
    %s1340 = scalar_select %p1339, %s1338, 0
    %p1341 = scmp.lt.s32.totalorder %s1340, 31
    %s1342 = scalar_select %p1341, %s1340, 31
    %s1343 = sld [smem:[#allocation7 + %s1337]]
    %s1344 = scalar_lea.vmem [#allocation8], %s1342
    %v1345 = vld [vmem:[%s1344] sm:$0x1]
    %v1346 = vstv %s1343
    %v1347 = vmul.f32 %v1346, %v1345
    %v1348 = vadd.f32 %v1336, %v1347
    %s1349 = sadd.s32 %s52, 107
    %s1350 = sld [smem:[#allocation2 + %s1349]]
    %p1351 = scmp.gt.s32.totalorder %s1350, 0
    %s1352 = scalar_select %p1351, %s1350, 0
    %p1353 = scmp.lt.s32.totalorder %s1352, 31
    %s1354 = scalar_select %p1353, %s1352, 31
    %s1355 = sld [smem:[#allocation7 + %s1349]]
    %s1356 = scalar_lea.vmem [#allocation8], %s1354
    %v1357 = vld [vmem:[%s1356] sm:$0x1]
    %v1358 = vstv %s1355
    %v1359 = vmul.f32 %v1358, %v1357
    %v1360 = vadd.f32 %v1348, %v1359
    %s1361 = sadd.s32 %s52, 108
    %s1362 = sld [smem:[#allocation2 + %s1361]]
    %p1363 = scmp.gt.s32.totalorder %s1362, 0
    %s1364 = scalar_select %p1363, %s1362, 0
    %p1365 = scmp.lt.s32.totalorder %s1364, 31
    %s1366 = scalar_select %p1365, %s1364, 31
    %s1367 = sld [smem:[#allocation7 + %s1361]]
    %s1368 = scalar_lea.vmem [#allocation8], %s1366
    %v1369 = vld [vmem:[%s1368] sm:$0x1]
    %v1370 = vstv %s1367
    %v1371 = vmul.f32 %v1370, %v1369
    %v1372 = vadd.f32 %v1360, %v1371
    %s1373 = sadd.s32 %s52, 109
    %s1374 = sld [smem:[#allocation2 + %s1373]]
    %p1375 = scmp.gt.s32.totalorder %s1374, 0
    %s1376 = scalar_select %p1375, %s1374, 0
    %p1377 = scmp.lt.s32.totalorder %s1376, 31
    %s1378 = scalar_select %p1377, %s1376, 31
    %s1379 = sld [smem:[#allocation7 + %s1373]]
    %s1380 = scalar_lea.vmem [#allocation8], %s1378
    %v1381 = vld [vmem:[%s1380] sm:$0x1]
    %v1382 = vstv %s1379
    %v1383 = vmul.f32 %v1382, %v1381
    %v1384 = vadd.f32 %v1372, %v1383
    %s1385 = sadd.s32 %s52, 110
    %s1386 = sld [smem:[#allocation2 + %s1385]]
    %p1387 = scmp.gt.s32.totalorder %s1386, 0
    %s1388 = scalar_select %p1387, %s1386, 0
    %p1389 = scmp.lt.s32.totalorder %s1388, 31
    %s1390 = scalar_select %p1389, %s1388, 31
    %s1391 = sld [smem:[#allocation7 + %s1385]]
    %s1392 = scalar_lea.vmem [#allocation8], %s1390
    %v1393 = vld [vmem:[%s1392] sm:$0x1]
    %v1394 = vstv %s1391
    %v1395 = vmul.f32 %v1394, %v1393
    %v1396 = vadd.f32 %v1384, %v1395
    %s1397 = sadd.s32 %s52, 111
    %s1398 = sld [smem:[#allocation2 + %s1397]]
    %p1399 = scmp.gt.s32.totalorder %s1398, 0
    %s1400 = scalar_select %p1399, %s1398, 0
    %p1401 = scmp.lt.s32.totalorder %s1400, 31
    %s1402 = scalar_select %p1401, %s1400, 31
    %s1403 = sld [smem:[#allocation7 + %s1397]]
    %s1404 = scalar_lea.vmem [#allocation8], %s1402
    %v1405 = vld [vmem:[%s1404] sm:$0x1]
    %v1406 = vstv %s1403
    %v1407 = vmul.f32 %v1406, %v1405
    %v1408 = vadd.f32 %v1396, %v1407
    %1409 = vst [vmem:[#allocation9 + $0xd] sm:$0x1] %v1408
    %s1410 = sadd.s32 %s52, 112
    %s1411 = sld [smem:[#allocation2 + %s1410]]
    %p1412 = scmp.gt.s32.totalorder %s1411, 0
    %s1413 = scalar_select %p1412, %s1411, 0
    %p1414 = scmp.lt.s32.totalorder %s1413, 31
    %s1415 = scalar_select %p1414, %s1413, 31
    %s1416 = sld [smem:[#allocation7 + %s1410]]
    %s1417 = scalar_lea.vmem [#allocation8], %s1415
    %v1418 = vld [vmem:[%s1417] sm:$0x1]
    %v1419 = vstv %s1416
    %v1420 = vmul.f32 %v1419, %v1418
    %v1421 = vadd.f32 %v1420, 0.0
    %s1422 = sadd.s32 %s52, 113
    %s1423 = sld [smem:[#allocation2 + %s1422]]
    %p1424 = scmp.gt.s32.totalorder %s1423, 0
    %s1425 = scalar_select %p1424, %s1423, 0
    %p1426 = scmp.lt.s32.totalorder %s1425, 31
    %s1427 = scalar_select %p1426, %s1425, 31
    %s1428 = sld [smem:[#allocation7 + %s1422]]
    %s1429 = scalar_lea.vmem [#allocation8], %s1427
    %v1430 = vld [vmem:[%s1429] sm:$0x1]
    %v1431 = vstv %s1428
    %v1432 = vmul.f32 %v1431, %v1430
    %v1433 = vadd.f32 %v1421, %v1432
    %s1434 = sadd.s32 %s52, 114
    %s1435 = sld [smem:[#allocation2 + %s1434]]
    %p1436 = scmp.gt.s32.totalorder %s1435, 0
    %s1437 = scalar_select %p1436, %s1435, 0
    %p1438 = scmp.lt.s32.totalorder %s1437, 31
    %s1439 = scalar_select %p1438, %s1437, 31
    %s1440 = sld [smem:[#allocation7 + %s1434]]
    %s1441 = scalar_lea.vmem [#allocation8], %s1439
    %v1442 = vld [vmem:[%s1441] sm:$0x1]
    %v1443 = vstv %s1440
    %v1444 = vmul.f32 %v1443, %v1442
    %v1445 = vadd.f32 %v1433, %v1444
    %s1446 = sadd.s32 %s52, 115
    %s1447 = sld [smem:[#allocation2 + %s1446]]
    %p1448 = scmp.gt.s32.totalorder %s1447, 0
    %s1449 = scalar_select %p1448, %s1447, 0
    %p1450 = scmp.lt.s32.totalorder %s1449, 31
    %s1451 = scalar_select %p1450, %s1449, 31
    %s1452 = sld [smem:[#allocation7 + %s1446]]
    %s1453 = scalar_lea.vmem [#allocation8], %s1451
    %v1454 = vld [vmem:[%s1453] sm:$0x1]
    %v1455 = vstv %s1452
    %v1456 = vmul.f32 %v1455, %v1454
    %v1457 = vadd.f32 %v1445, %v1456
    %s1458 = sadd.s32 %s52, 116
    %s1459 = sld [smem:[#allocation2 + %s1458]]
    %p1460 = scmp.gt.s32.totalorder %s1459, 0
    %s1461 = scalar_select %p1460, %s1459, 0
    %p1462 = scmp.lt.s32.totalorder %s1461, 31
    %s1463 = scalar_select %p1462, %s1461, 31
    %s1464 = sld [smem:[#allocation7 + %s1458]]
    %s1465 = scalar_lea.vmem [#allocation8], %s1463
    %v1466 = vld [vmem:[%s1465] sm:$0x1]
    %v1467 = vstv %s1464
    %v1468 = vmul.f32 %v1467, %v1466
    %v1469 = vadd.f32 %v1457, %v1468
    %s1470 = sadd.s32 %s52, 117
    %s1471 = sld [smem:[#allocation2 + %s1470]]
    %p1472 = scmp.gt.s32.totalorder %s1471, 0
    %s1473 = scalar_select %p1472, %s1471, 0
    %p1474 = scmp.lt.s32.totalorder %s1473, 31
    %s1475 = scalar_select %p1474, %s1473, 31
    %s1476 = sld [smem:[#allocation7 + %s1470]]
    %s1477 = scalar_lea.vmem [#allocation8], %s1475
    %v1478 = vld [vmem:[%s1477] sm:$0x1]
    %v1479 = vstv %s1476
    %v1480 = vmul.f32 %v1479, %v1478
    %v1481 = vadd.f32 %v1469, %v1480
    %s1482 = sadd.s32 %s52, 118
    %s1483 = sld [smem:[#allocation2 + %s1482]]
    %p1484 = scmp.gt.s32.totalorder %s1483, 0
    %s1485 = scalar_select %p1484, %s1483, 0
    %p1486 = scmp.lt.s32.totalorder %s1485, 31
    %s1487 = scalar_select %p1486, %s1485, 31
    %s1488 = sld [smem:[#allocation7 + %s1482]]
    %s1489 = scalar_lea.vmem [#allocation8], %s1487
    %v1490 = vld [vmem:[%s1489] sm:$0x1]
    %v1491 = vstv %s1488
    %v1492 = vmul.f32 %v1491, %v1490
    %v1493 = vadd.f32 %v1481, %v1492
    %s1494 = sadd.s32 %s52, 119
    %s1495 = sld [smem:[#allocation2 + %s1494]]
    %p1496 = scmp.gt.s32.totalorder %s1495, 0
    %s1497 = scalar_select %p1496, %s1495, 0
    %p1498 = scmp.lt.s32.totalorder %s1497, 31
    %s1499 = scalar_select %p1498, %s1497, 31
    %s1500 = sld [smem:[#allocation7 + %s1494]]
    %s1501 = scalar_lea.vmem [#allocation8], %s1499
    %v1502 = vld [vmem:[%s1501] sm:$0x1]
    %v1503 = vstv %s1500
    %v1504 = vmul.f32 %v1503, %v1502
    %v1505 = vadd.f32 %v1493, %v1504
    %1506 = vst [vmem:[#allocation9 + $0xe] sm:$0x1] %v1505
    %s1507 = sadd.s32 %s52, 120
    %s1508 = sld [smem:[#allocation2 + %s1507]]
    %p1509 = scmp.gt.s32.totalorder %s1508, 0
    %s1510 = scalar_select %p1509, %s1508, 0
    %p1511 = scmp.lt.s32.totalorder %s1510, 31
    %s1512 = scalar_select %p1511, %s1510, 31
    %s1513 = sld [smem:[#allocation7 + %s1507]]
    %s1514 = scalar_lea.vmem [#allocation8], %s1512
    %v1515 = vld [vmem:[%s1514] sm:$0x1]
    %v1516 = vstv %s1513
    %v1517 = vmul.f32 %v1516, %v1515
    %v1518 = vadd.f32 %v1517, 0.0
    %s1519 = sadd.s32 %s52, 121
    %s1520 = sld [smem:[#allocation2 + %s1519]]
    %p1521 = scmp.gt.s32.totalorder %s1520, 0
    %s1522 = scalar_select %p1521, %s1520, 0
    %p1523 = scmp.lt.s32.totalorder %s1522, 31
    %s1524 = scalar_select %p1523, %s1522, 31
    %s1525 = sld [smem:[#allocation7 + %s1519]]
    %s1526 = scalar_lea.vmem [#allocation8], %s1524
    %v1527 = vld [vmem:[%s1526] sm:$0x1]
    %v1528 = vstv %s1525
    %v1529 = vmul.f32 %v1528, %v1527
    %v1530 = vadd.f32 %v1518, %v1529
    %s1531 = sadd.s32 %s52, 122
    %s1532 = sld [smem:[#allocation2 + %s1531]]
    %p1533 = scmp.gt.s32.totalorder %s1532, 0
    %s1534 = scalar_select %p1533, %s1532, 0
    %p1535 = scmp.lt.s32.totalorder %s1534, 31
    %s1536 = scalar_select %p1535, %s1534, 31
    %s1537 = sld [smem:[#allocation7 + %s1531]]
    %s1538 = scalar_lea.vmem [#allocation8], %s1536
    %v1539 = vld [vmem:[%s1538] sm:$0x1]
    %v1540 = vstv %s1537
    %v1541 = vmul.f32 %v1540, %v1539
    %v1542 = vadd.f32 %v1530, %v1541
    %s1543 = sadd.s32 %s52, 123
    %s1544 = sld [smem:[#allocation2 + %s1543]]
    %p1545 = scmp.gt.s32.totalorder %s1544, 0
    %s1546 = scalar_select %p1545, %s1544, 0
    %p1547 = scmp.lt.s32.totalorder %s1546, 31
    %s1548 = scalar_select %p1547, %s1546, 31
    %s1549 = sld [smem:[#allocation7 + %s1543]]
    %s1550 = scalar_lea.vmem [#allocation8], %s1548
    %v1551 = vld [vmem:[%s1550] sm:$0x1]
    %v1552 = vstv %s1549
    %v1553 = vmul.f32 %v1552, %v1551
    %v1554 = vadd.f32 %v1542, %v1553
    %s1555 = sadd.s32 %s52, 124
    %s1556 = sld [smem:[#allocation2 + %s1555]]
    %p1557 = scmp.gt.s32.totalorder %s1556, 0
    %s1558 = scalar_select %p1557, %s1556, 0
    %p1559 = scmp.lt.s32.totalorder %s1558, 31
    %s1560 = scalar_select %p1559, %s1558, 31
    %s1561 = sld [smem:[#allocation7 + %s1555]]
    %s1562 = scalar_lea.vmem [#allocation8], %s1560
    %v1563 = vld [vmem:[%s1562] sm:$0x1]
    %v1564 = vstv %s1561
    %v1565 = vmul.f32 %v1564, %v1563
    %v1566 = vadd.f32 %v1554, %v1565
    %s1567 = sadd.s32 %s52, 125
    %s1568 = sld [smem:[#allocation2 + %s1567]]
    %p1569 = scmp.gt.s32.totalorder %s1568, 0
    %s1570 = scalar_select %p1569, %s1568, 0
    %p1571 = scmp.lt.s32.totalorder %s1570, 31
    %s1572 = scalar_select %p1571, %s1570, 31
    %s1573 = sld [smem:[#allocation7 + %s1567]]
    %s1574 = scalar_lea.vmem [#allocation8], %s1572
    %v1575 = vld [vmem:[%s1574] sm:$0x1]
    %v1576 = vstv %s1573
    %v1577 = vmul.f32 %v1576, %v1575
    %v1578 = vadd.f32 %v1566, %v1577
    %s1579 = sadd.s32 %s52, 126
    %s1580 = sld [smem:[#allocation2 + %s1579]]
    %p1581 = scmp.gt.s32.totalorder %s1580, 0
    %s1582 = scalar_select %p1581, %s1580, 0
    %p1583 = scmp.lt.s32.totalorder %s1582, 31
    %s1584 = scalar_select %p1583, %s1582, 31
    %s1585 = sld [smem:[#allocation7 + %s1579]]
    %s1586 = scalar_lea.vmem [#allocation8], %s1584
    %v1587 = vld [vmem:[%s1586] sm:$0x1]
    %v1588 = vstv %s1585
    %v1589 = vmul.f32 %v1588, %v1587
    %v1590 = vadd.f32 %v1578, %v1589
    %s1591 = sadd.s32 %s52, 127
    %s1592 = sld [smem:[#allocation2 + %s1591]]
    %p1593 = scmp.gt.s32.totalorder %s1592, 0
    %s1594 = scalar_select %p1593, %s1592, 0
    %p1595 = scmp.lt.s32.totalorder %s1594, 31
    %s1596 = scalar_select %p1595, %s1594, 31
    %s1597 = sld [smem:[#allocation7 + %s1591]]
    %s1598 = scalar_lea.vmem [#allocation8], %s1596
    %v1599 = vld [vmem:[%s1598] sm:$0x1]
    %v1600 = vstv %s1597
    %v1601 = vmul.f32 %v1600, %v1599
    %v1602 = vadd.f32 %v1590, %v1601
    %1603 = vst [vmem:[#allocation9 + $0xf] sm:$0x1] %v1602
    // Predicated region
    $region26: #{tpu_custom_call.1} parent=1 // pred_check
      _
    $region27: #{tpu_custom_call.1} parent=1 // pred_check_branch
      %1605 = sbr.rel (0) target = $region29
    $region28: #{tpu_custom_call.1} parent=1 // pred_region
      %s1607 = ssub.s32 256, 256
      %1608 = vsyncadd [#allocation4], %s1607
      %s1609 = sshll.u32 [#allocation9], 4
      %s1610 = int_to_ptr.vmem [resolvable:$true] %s1609
      %1615 = dma.vmem_to_hbm [thread:$0]  %s1610, 256, %s3, [#allocation4], 128, 128, 8
    $region29: #{tpu_custom_call.1} parent=1 // pred_fallthru
      _
    // Predicated region
    $region30: #{tpu_custom_call.1} parent=1 // pred_check
      _
    $region31: #{tpu_custom_call.1} parent=1 // pred_check_branch
      %1617 = sbr.rel (0) target = $region33
    $region32: #{tpu_custom_call.1} parent=1 // pred_region
      %1618 = dma.done [#allocation4], 256
    $region33: #{tpu_custom_call.1} parent=1 // pred_fallthru
      _
    %1619 = vsyncpa [#allocation3], 1
    %1620 = vsyncpa [#allocation4], 1
    %1621 = vsyncpa [#allocation5], 1
    %1622 = vsyncpa [#allocation6], 1

</llo_original>
